<compile_context>
chip_gen: v5e
topology: v5e:2x2
jax: 0.10.0
libtpu: 0.0.40
codegen_flags: <defaults>
</compile_context>

<pallas_src>
import jax
import jax.numpy as jnp
import numpy as np
from jax import lax
from jax.experimental import pallas as pl
from jax.experimental.pallas import tpu as pltpu


def _hash_remap(ids, num_embeddings):
    """Deterministic hash of raw int32 ids into [0, num_embeddings).

    num_embeddings must be a power of two (asserted by the wrapper).
    Only Python / numpy scalar constants are used so nothing is captured as a
    jaxpr const inside the Pallas kernel.
    """
    h = (ids * (-1640531527)).astype(jnp.uint32)   # Knuth mult. hash, int32 wrap
    h = h ^ (h >> 16)                              # logical shift (uint32)
    return (h & (num_embeddings - 1)).astype(jnp.int32)


def _make_kernel(num_embeddings):
    """Kernel over grid (F, B/TB, E/TE); E axis is the reduction axis."""

    def kernel(ids_ref, len_ref, table_ref, out_ref):
        e_step = pl.program_id(2)

        # Output block is resident across the E axis -> use it as accumulator.
        @pl.when(e_step == 0)
        def _init():
            out_ref[...] = jnp.zeros_like(out_ref)

        ids = ids_ref[0]        # [TB, L] int32
        lengths = len_ref[0]    # [TB, 1] int32
        table = table_ref[0]    # [TE, D] bfloat16
        TB, L = ids.shape
        TE, D = table.shape

        # --- managed-collision remap (elementwise, VPU) ---
        remapped = _hash_remap(ids, num_embeddings)                   # [TB, L]

        # --- validity mask for padded jagged bags ---
        valid = lax.broadcasted_iota(jnp.int32, (TB, L), 1) < lengths  # [TB, L]

        # ids relative to this E tile; out-of-tile ids simply never match.
        e_base = e_step * TE
        local_ids = remapped - e_base                                  # [TB, L]

        # --- per-bag histogram over this E tile, accumulated per slot l ---
        # (no [TB, L, TE] intermediate, no cross-sublane reduce)
        e_iota = lax.broadcasted_iota(jnp.int32, (TB, TE), 1)          # hoisted
        counts = jnp.zeros((TB, TE), jnp.float32)
        for l in range(L):  # L is small & static -> fully unrolled
            hit = (e_iota == local_ids[:, l:l + 1]) & valid[:, l:l + 1]
            counts = counts + hit.astype(jnp.float32)

        # --- sum-pool as MXU matmul: pooled[b,:] += counts[b,:] @ table ---
        # counts are exact small integers -> bf16 cast is lossless; the table
        # is already bf16; accumulation stays in f32.
        out_ref[0] += jnp.dot(counts.astype(jnp.bfloat16), table,
                              preferred_element_type=jnp.float32)

    return kernel


def mc_embedding_bag_collection(ids, lengths, tables, feature_names, *,
                                block_b=128, block_e=512):
    """ids [F,B,L] i32, lengths [F,B] i32, tables [F,E,D] f32 ->
    dict {feature_name: [B, D] f32} (sum-pooled per-feature embeddings)."""
    F, B, L = ids.shape
    Ft, E, D = tables.shape
    assert Ft == F and len(feature_names) == F
    assert E & (E - 1) == 0, "num_embeddings must be a power of two (hash remap)"
    block_e = min(block_e, E)
    block_b = min(block_b, B)
    assert B % block_b == 0 and E % block_e == 0
    assert block_b % 8 == 0 and block_e % 128 == 0 and D % 128 == 0, \
        "tile shapes must respect the (8, 128) TPU tiling"

    lengths3 = lengths.reshape(F, B, 1).astype(jnp.int32)
    # bf16 table halves the dominant HBM traffic; matmul accumulates in f32.
    tables_bf16 = tables.astype(jnp.bfloat16)

    grid = (F, B // block_b, E // block_e)
    kernel = _make_kernel(E)

    cost = pl.CostEstimate(
        flops=2 * F * B * E * D,
        transcendentals=0,
        bytes_accessed=F * (E * D * 2 + B * L * 4 + B * 4 + B * D * 4),
    )

    out = pl.pallas_call(
        kernel,
        out_shape=jax.ShapeDtypeStruct((F, B, D), jnp.float32),
        grid_spec=pltpu.PrefetchScalarGridSpec(
            num_scalar_prefetch=0,
            grid=grid,
            in_specs=[
                pl.BlockSpec((1, block_b, L), lambda f, b, e: (f, b, 0)),
                pl.BlockSpec((1, block_b, 1), lambda f, b, e: (f, b, 0)),
                pl.BlockSpec((1, block_e, D), lambda f, b, e: (f, e, 0)),
            ],
            out_specs=pl.BlockSpec((1, block_b, D), lambda f, b, e: (f, b, 0)),
        ),
        compiler_params=pltpu.CompilerParams(
            dimension_semantics=("parallel", "parallel", "arbitrary"),
            vmem_limit_bytes=32 * 1024 * 1024,  # safe on v5e/v6e/v7x
        ),
        cost_estimate=cost,
    )(ids, lengths3, tables_bf16)

    return {name: out[i] for i, name in enumerate(feature_names)}


def reference(ids, lengths, tables):
    """Pure-JAX reference of the same semantics (bf16 table, f32 accumulate)."""
    F, B, L = ids.shape
    E = tables.shape[1]
    remapped = _hash_remap(ids, E)                                   # [F,B,L]
    valid = (jnp.arange(L)[None, None, :] < lengths[:, :, None])     # [F,B,L]
    tbl = tables.astype(jnp.bfloat16).astype(jnp.float32)            # match kernel rounding
    gathered = jnp.take_along_axis(
        tbl[:, None, :, :],                                          # [F,1,E,D]
        remapped[:, :, :, None],                                     # [F,B,L,1]
        axis=2,
    )                                                                # [F,B,L,D]
    return jnp.sum(gathered * valid[..., None].astype(jnp.float32), axis=2)


if __name__ == "__main__":
    # Synthetic configuration (stands in for List[EmbeddingBagConfig]).
    F = 4            # number of features / tables
    B = 256          # batch size (bags per feature)  -> 2 bag tiles of 128
    L = 8            # max bag length (jagged dim, padded)
    E = 1024         # num_embeddings per table (zch_size), power of 2
    D = 128          # embedding_dim (lane-dense output)
    INPUT_HASH_SIZE = 100_000
    feature_names = [f"feature_{i}" for i in range(F)]

    key = jax.random.PRNGKey(0)
    k_tab, k_ids, k_len = jax.random.split(key, 3)

    # Deterministic embedding-table init (synthetic, not a checkpoint load).
    tables = jax.random.normal(k_tab, (F, E, D), dtype=jnp.float32) * 0.05
    # Raw feature values in [0, input_hash_size) and jagged bag lengths.
    ids = jax.random.randint(k_ids, (F, B, L), 0, INPUT_HASH_SIZE, dtype=jnp.int32)
    lengths = jax.random.randint(k_len, (F, B), 0, L + 1, dtype=jnp.int32)

    out_dict = mc_embedding_bag_collection(ids, lengths, tables, feature_names,
                                           block_b=128, block_e=512)
    out = jnp.stack([out_dict[n] for n in feature_names], axis=0)
    jax.block_until_ready(out)

    ref = reference(ids, lengths, tables)
    assert out.shape == (F, B, D)
    err = jnp.max(jnp.abs(out - ref))
    assert jnp.allclose(out, ref, atol=1e-3, rtol=1e-3), f"mismatch vs reference (max abs err {err})"

    print("KERNEL_OK")
</pallas_src>

<mosaic_0001>
module attributes {stable_mosaic.version = 11 : i64} {
  func.func @kernel(%arg0: i32, %arg1: i32, %arg2: i32, %arg3: memref<1x128x8xi32, #tpu.memory_space<vmem>>, %arg4: memref<1x128x1xi32, #tpu.memory_space<vmem>>, %arg5: memref<1x512x128xbf16, #tpu.memory_space<vmem>>, %arg6: memref<1x128x128xf32, #tpu.memory_space<vmem>>) attributes {dimension_semantics = [#tpu.dimension_semantics<parallel>, #tpu.dimension_semantics<parallel>, #tpu.dimension_semantics<arbitrary>], iteration_bounds = array<i64: 4, 2, 2>, scalar_prefetch = 0 : i64, scratch_operands = 0 : i64, tpu.core_type = #tpu.core_type<tc>, window_params = [{transform_indices = @transform_0, window_bounds = array<i64: 1, 128, 8>}, {transform_indices = @transform_1, window_bounds = array<i64: 1, 128, 1>}, {transform_indices = @transform_2, window_bounds = array<i64: 1, 512, 128>}, {transform_indices = @transform_3, window_bounds = array<i64: 1, 128, 128>}]} {
    %c0_i32 = arith.constant 0 : i32
    %0 = arith.cmpi eq, %arg2, %c0_i32 : i32
    %1 = arith.extui %0 : i1 to i32
    %c0_i32_0 = arith.constant 0 : i32
    %2 = arith.cmpi ne, %1, %c0_i32_0 : i32
    scf.if %2 {
      %cst_16 = arith.constant 0.000000e+00 : f32
      %104 = vector.broadcast %cst_16 : f32 to vector<1x128x128xf32>
      %c0_17 = arith.constant 0 : index
      %c0_18 = arith.constant 0 : index
      %c0_19 = arith.constant 0 : index
      %105 = vector.load %arg6[%c0_17, %c0_18, %c0_19] : memref<1x128x128xf32, #tpu.memory_space<vmem>>, vector<1x128x128xf32>
      tpu.vector_store %arg6[%c0_17, %c0_18, %c0_19], %104 {strides = array<i32>} : memref<1x128x128xf32, #tpu.memory_space<vmem>>, vector<1x128x128xf32>,
    } else {
    }
    %c0 = arith.constant 0 : index
    %c0_1 = arith.constant 0 : index
    %c0_2 = arith.constant 0 : index
    %3 = vector.load %arg3[%c0, %c0_1, %c0_2] : memref<1x128x8xi32, #tpu.memory_space<vmem>>, vector<1x128x8xi32>
    %4 = vector.shape_cast %3 : vector<1x128x8xi32> to vector<128x8xi32>
    %c0_3 = arith.constant 0 : index
    %c0_4 = arith.constant 0 : index
    %c0_5 = arith.constant 0 : index
    %5 = vector.load %arg4[%c0_3, %c0_4, %c0_5] : memref<1x128x1xi32, #tpu.memory_space<vmem>>, vector<1x128x1xi32>
    %6 = vector.shape_cast %5 : vector<1x128x1xi32> to vector<128x1xi32>
    %c0_6 = arith.constant 0 : index
    %c0_7 = arith.constant 0 : index
    %c0_8 = arith.constant 0 : index
    %7 = vector.load %arg5[%c0_6, %c0_7, %c0_8] : memref<1x512x128xbf16, #tpu.memory_space<vmem>>, vector<1x512x128xbf16>
    %8 = vector.shape_cast %7 : vector<1x512x128xbf16> to vector<512x128xbf16>
    %c-1640531527_i32 = arith.constant -1640531527 : i32
    %9 = vector.broadcast %c-1640531527_i32 : i32 to vector<128x8xi32>
    %10 = arith.muli %4, %9 : vector<128x8xi32>
    %c16_i32 = arith.constant 16 : i32
    %11 = vector.broadcast %c16_i32 : i32 to vector<128x8xi32>
    %12 = arith.shrui %10, %11 : vector<128x8xi32>
    %13 = arith.xori %10, %12 : vector<128x8xi32>
    %c1023_i32 = arith.constant 1023 : i32
    %14 = vector.broadcast %c1023_i32 : i32 to vector<128x8xi32>
    %15 = arith.andi %13, %14 : vector<128x8xi32>
    %16 = tpu.iota {dimensions = array<i32: 1>} : vector<128x8xi32>
    %17 = vector.broadcast %6 : vector<128x1xi32> to vector<128x8xi32>
    %18 = arith.cmpi slt, %16, %17 : vector<128x8xi32>
    %c512_i32 = arith.constant 512 : i32
    %19 = arith.muli %arg2, %c512_i32 : i32
    %20 = vector.broadcast %19 : i32 to vector<128x8xi32>
    %21 = arith.subi %15, %20 : vector<128x8xi32>
    %22 = tpu.iota {dimensions = array<i32: 1>} : vector<128x512xi32>
    %cst = arith.constant 0.000000e+00 : f32
    %23 = vector.broadcast %cst : f32 to vector<128x512xf32>
    %24 = vector.extract_strided_slice %21 {offsets = [0, 0], sizes = [128, 1], strides = [1, 1]} : vector<128x8xi32> to vector<128x1xi32>
    %25 = vector.broadcast %24 : vector<128x1xi32> to vector<128x512xi32>
    %26 = arith.cmpi eq, %22, %25 : vector<128x512xi32>
    %27 = vector.extract_strided_slice %18 {offsets = [0, 0], sizes = [128, 1], strides = [1, 1]} : vector<128x8xi1> to vector<128x1xi1>
    %28 = vector.broadcast %27 : vector<128x1xi1> to vector<128x512xi1>
    %29 = arith.andi %26, %28 : vector<128x512xi1>
    %30 = arith.extui %29 : vector<128x512xi1> to vector<128x512xi32>
    %31 = arith.sitofp %30 : vector<128x512xi32> to vector<128x512xf32>
    %32 = arith.addf %23, %31 : vector<128x512xf32>
    %33 = vector.extract_strided_slice %21 {offsets = [0, 1], sizes = [128, 1], strides = [1, 1]} : vector<128x8xi32> to vector<128x1xi32>
    %34 = vector.broadcast %33 : vector<128x1xi32> to vector<128x512xi32>
    %35 = arith.cmpi eq, %22, %34 : vector<128x512xi32>
    %36 = vector.extract_strided_slice %18 {offsets = [0, 1], sizes = [128, 1], strides = [1, 1]} : vector<128x8xi1> to vector<128x1xi1>
    %37 = vector.broadcast %36 : vector<128x1xi1> to vector<128x512xi1>
    %38 = arith.andi %35, %37 : vector<128x512xi1>
    %39 = arith.extui %38 : vector<128x512xi1> to vector<128x512xi32>
    %40 = arith.sitofp %39 : vector<128x512xi32> to vector<128x512xf32>
    %41 = arith.addf %32, %40 : vector<128x512xf32>
    %42 = vector.extract_strided_slice %21 {offsets = [0, 2], sizes = [128, 1], strides = [1, 1]} : vector<128x8xi32> to vector<128x1xi32>
    %43 = vector.broadcast %42 : vector<128x1xi32> to vector<128x512xi32>
    %44 = arith.cmpi eq, %22, %43 : vector<128x512xi32>
    %45 = vector.extract_strided_slice %18 {offsets = [0, 2], sizes = [128, 1], strides = [1, 1]} : vector<128x8xi1> to vector<128x1xi1>
    %46 = vector.broadcast %45 : vector<128x1xi1> to vector<128x512xi1>
    %47 = arith.andi %44, %46 : vector<128x512xi1>
    %48 = arith.extui %47 : vector<128x512xi1> to vector<128x512xi32>
    %49 = arith.sitofp %48 : vector<128x512xi32> to vector<128x512xf32>
    %50 = arith.addf %41, %49 : vector<128x512xf32>
    %51 = vector.extract_strided_slice %21 {offsets = [0, 3], sizes = [128, 1], strides = [1, 1]} : vector<128x8xi32> to vector<128x1xi32>
    %52 = vector.broadcast %51 : vector<128x1xi32> to vector<128x512xi32>
    %53 = arith.cmpi eq, %22, %52 : vector<128x512xi32>
    %54 = vector.extract_strided_slice %18 {offsets = [0, 3], sizes = [128, 1], strides = [1, 1]} : vector<128x8xi1> to vector<128x1xi1>
    %55 = vector.broadcast %54 : vector<128x1xi1> to vector<128x512xi1>
    %56 = arith.andi %53, %55 : vector<128x512xi1>
    %57 = arith.extui %56 : vector<128x512xi1> to vector<128x512xi32>
    %58 = arith.sitofp %57 : vector<128x512xi32> to vector<128x512xf32>
    %59 = arith.addf %50, %58 : vector<128x512xf32>
    %60 = vector.extract_strided_slice %21 {offsets = [0, 4], sizes = [128, 1], strides = [1, 1]} : vector<128x8xi32> to vector<128x1xi32>
    %61 = vector.broadcast %60 : vector<128x1xi32> to vector<128x512xi32>
    %62 = arith.cmpi eq, %22, %61 : vector<128x512xi32>
    %63 = vector.extract_strided_slice %18 {offsets = [0, 4], sizes = [128, 1], strides = [1, 1]} : vector<128x8xi1> to vector<128x1xi1>
    %64 = vector.broadcast %63 : vector<128x1xi1> to vector<128x512xi1>
    %65 = arith.andi %62, %64 : vector<128x512xi1>
    %66 = arith.extui %65 : vector<128x512xi1> to vector<128x512xi32>
    %67 = arith.sitofp %66 : vector<128x512xi32> to vector<128x512xf32>
    %68 = arith.addf %59, %67 : vector<128x512xf32>
    %69 = vector.extract_strided_slice %21 {offsets = [0, 5], sizes = [128, 1], strides = [1, 1]} : vector<128x8xi32> to vector<128x1xi32>
    %70 = vector.broadcast %69 : vector<128x1xi32> to vector<128x512xi32>
    %71 = arith.cmpi eq, %22, %70 : vector<128x512xi32>
    %72 = vector.extract_strided_slice %18 {offsets = [0, 5], sizes = [128, 1], strides = [1, 1]} : vector<128x8xi1> to vector<128x1xi1>
    %73 = vector.broadcast %72 : vector<128x1xi1> to vector<128x512xi1>
    %74 = arith.andi %71, %73 : vector<128x512xi1>
    %75 = arith.extui %74 : vector<128x512xi1> to vector<128x512xi32>
    %76 = arith.sitofp %75 : vector<128x512xi32> to vector<128x512xf32>
    %77 = arith.addf %68, %76 : vector<128x512xf32>
    %78 = vector.extract_strided_slice %21 {offsets = [0, 6], sizes = [128, 1], strides = [1, 1]} : vector<128x8xi32> to vector<128x1xi32>
    %79 = vector.broadcast %78 : vector<128x1xi32> to vector<128x512xi32>
    %80 = arith.cmpi eq, %22, %79 : vector<128x512xi32>
    %81 = vector.extract_strided_slice %18 {offsets = [0, 6], sizes = [128, 1], strides = [1, 1]} : vector<128x8xi1> to vector<128x1xi1>
    %82 = vector.broadcast %81 : vector<128x1xi1> to vector<128x512xi1>
    %83 = arith.andi %80, %82 : vector<128x512xi1>
    %84 = arith.extui %83 : vector<128x512xi1> to vector<128x512xi32>
    %85 = arith.sitofp %84 : vector<128x512xi32> to vector<128x512xf32>
    %86 = arith.addf %77, %85 : vector<128x512xf32>
    %87 = vector.extract_strided_slice %21 {offsets = [0, 7], sizes = [128, 1], strides = [1, 1]} : vector<128x8xi32> to vector<128x1xi32>
    %88 = vector.broadcast %87 : vector<128x1xi32> to vector<128x512xi32>
    %89 = arith.cmpi eq, %22, %88 : vector<128x512xi32>
    %90 = vector.extract_strided_slice %18 {offsets = [0, 7], sizes = [128, 1], strides = [1, 1]} : vector<128x8xi1> to vector<128x1xi1>
    %91 = vector.broadcast %90 : vector<128x1xi1> to vector<128x512xi1>
    %92 = arith.andi %89, %91 : vector<128x512xi1>
    %93 = arith.extui %92 : vector<128x512xi1> to vector<128x512xi32>
    %94 = arith.sitofp %93 : vector<128x512xi32> to vector<128x512xf32>
    %95 = arith.addf %86, %94 : vector<128x512xf32>
    %c0_9 = arith.constant 0 : index
    %c0_10 = arith.constant 0 : index
    %c0_11 = arith.constant 0 : index
    %96 = vector.load %arg6[%c0_9, %c0_10, %c0_11] : memref<1x128x128xf32, #tpu.memory_space<vmem>>, vector<1x128x128xf32>
    %97 = vector.shape_cast %96 : vector<1x128x128xf32> to vector<128x128xf32>
    %98 = arith.truncf %95 : vector<128x512xf32> to vector<128x512xbf16>
    %cst_12 = arith.constant dense<0.000000e+00> : vector<128x128xf32>
    %99 = tpu.matmul %98, %8, %cst_12 {dimension_numbers = #tpu.dot_dimension_numbers<[1], [0], [0], [1], [0, 0, 1, 1], [], []>} : vector<128x512xbf16>, vector<512x128xbf16>, vector<128x128xf32> -> vector<128x128xf32>
    %100 = arith.addf %97, %99 : vector<128x128xf32>
    %c0_13 = arith.constant 0 : index
    %c0_14 = arith.constant 0 : index
    %c0_15 = arith.constant 0 : index
    %101 = vector.load %arg6[%c0_13, %c0_14, %c0_15] : memref<1x128x128xf32, #tpu.memory_space<vmem>>, vector<1x128x128xf32>
    %102 = vector.shape_cast %101 : vector<1x128x128xf32> to vector<128x128xf32>
    %103 = vector.shape_cast %100 : vector<128x128xf32> to vector<1x128x128xf32>
    tpu.vector_store %arg6[%c0_13, %c0_14, %c0_15], %103 {strides = array<i32>} : memref<1x128x128xf32, #tpu.memory_space<vmem>>, vector<1x128x128xf32>,
    return
  }
  func.func @transform_0(%arg0: i32, %arg1: i32, %arg2: i32) -> (i32, i32, i32) {
    %c0_i32 = arith.constant 0 : i32
    %c0_i32_0 = arith.constant 0 : i32
    return %arg0, %arg1, %c0_i32 : i32, i32, i32
  }
  func.func @transform_1(%arg0: i32, %arg1: i32, %arg2: i32) -> (i32, i32, i32) {
    %c0_i32 = arith.constant 0 : i32
    %c0_i32_0 = arith.constant 0 : i32
    return %arg0, %arg1, %c0_i32 : i32, i32, i32
  }
  func.func @transform_2(%arg0: i32, %arg1: i32, %arg2: i32) -> (i32, i32, i32) {
    %c0_i32 = arith.constant 0 : i32
    %c0_i32_0 = arith.constant 0 : i32
    return %arg0, %arg2, %c0_i32 : i32, i32, i32
  }
  func.func @transform_3(%arg0: i32, %arg1: i32, %arg2: i32) -> (i32, i32, i32) {
    %c0_i32 = arith.constant 0 : i32
    %c0_i32_0 = arith.constant 0 : i32
    return %arg0, %arg1, %c0_i32 : i32, i32, i32
  }
}

</mosaic_0001>

<llo_original>
// kernel: tpu_custom_call.1
$region0: #{tpu_custom_call.1}
  #allocation0 [shape = 'u32[]', space=smem, size = 0x4, offset = 0x4, fixed_abs, tag = 'smem constant byte address 0x4 - core index']
  #allocation1 [shape = 'u32[72,128]{1,0:T(1,128)}', space=vmem, size = 0x9000, scoped, tag = 'internal scratch']
  %s0 = inlined_call_operand.vmem [shape: s32[4,256,8], index: 0, kind: input, shape index: {}]
  %s1 = inlined_call_operand.vmem [shape: s32[4,256,1], index: 1, kind: input, shape index: {}]
  %s2 = inlined_call_operand.vmem [shape: bf16[4,1024,128], index: 2, kind: input, shape index: {}]
  %s3 = inlined_call_operand.hbm [shape: f32[4,256,128], index: 3, kind: output, shape index: {}]
  %s4 = sld [smem:[#allocation0]]
  $region49: #{tpu_custom_call.1} parent=0
    _
  %s6 = ssub.s32 1, %s4
  %s7 = scalar_select 0, %s6, %s4
  $region1: #{tpu_custom_call.1} parent=0
    #allocation2 [shape = 'u8[131072]{0}', space=vmem, size = 0x20000, scoped, tag = 'output window, operand 0']
    #allocation3 [shape = 's32[2]{0}', space=sflag, size = 0x8, scoped, tag = 'scoped memory for tpu_custom_call.1']
    %8 = vsyncpa [#allocation3], 0
    %s9 = scalar_lea.sflag [#allocation3], 1
    %10 = vsyncpa %s9, 0
    loop: start=0, step=1, limit=18
    $region2: #{tpu_custom_call.1} parent=1 // loop_pre_header
      _
    $region3: #{tpu_custom_call.1} parent=1 // loop_header
      %s12 = sphi 0, %s16
      %p13 = scmp.ge.s32.totalorder %s12, 18
      %s19 = sphi 0, %s38
      %s20 = sphi 0, %s34
      %s21 = sphi 0, %s30
      %s22 = sphi 0, %s19
      %s23 = sphi 0, %s20
      %s24 = sphi 0, %s21
      %s25 = sphi 0, %s22
      %s26 = sphi 0, %s23
      %s27 = sphi 0, %s24
      %s43 = sphi 0, %s45
      %s46 = sphi 0, %s43
      %s47 = sphi 0, %s46
      %s63 = sphi 0, %s47
      %s71 = sphi 0, %s73
      %s74 = sphi 0, %s71
      %s75 = sphi 0, %s74
      %s91 = sphi 0, %s75
      %s99 = sphi 0, %s101
      %s102 = sphi 0, %s99
      %s103 = sphi 0, %s102
      %s119 = sphi 0, %s103
      %s127 = sphi 0, %s129
      %s130 = sphi 0, %s127
      %s131 = sphi 0, %s130
      %s147 = sphi 0, %s131
    $region4: #{tpu_custom_call.1} parent=1 // loop_header_branch
      %15 = sbr.rel (%p13) target = $region8
    $region5: #{tpu_custom_call.1} parent=1 // loop_body
      %s17 = ssub.s32 %s12, 1
      %s18 = ssub.s32 %s12, 2
      %s28 = sadd.s32 1, %s21
      %p29 = scmp.ge.s32.totalorder %s28, 2
      %s30 = scalar_select %p29, 0, %s28
      %s31 = sadd.s32 1, %s20
      %s32 = scalar_select %p29, %s31, %s20
      %p33 = scmp.ge.s32.totalorder %s32, 2
      %s34 = scalar_select %p33, 0, %s32
      %s35 = sadd.s32 1, %s19
      %s36 = scalar_select %p33, %s35, %s19
      %p37 = scmp.ge.s32.totalorder %s36, 4
      %s38 = scalar_select %p37, 0, %s36
      %s39 = ssub.s32 %s19, %s38
      %s40 = ssub.s32 %s20, %s34
      %s41 = sor.u32 %s39, %s40
      %p42 = scmp.eq.s32.totalorder %s41, 0
      %s44 = sadd.s32 %s43, 1
      %s45 = scalar_select %p42, %s43, %s44
      %p48 = pneg %p42
      %p49 = scmp.eq.s32.totalorder %s12, 15
      %p50 = por %p48, %p49
      %p51 = scmp.ne.s32.totalorder %s43, %s46
      %p52 = scmp.eq.s32.totalorder %s12, 0
      %p53 = por %p51, %p52
      %p54 = scmp.ne.s32.totalorder %s43, %s46
      %p55 = scmp.eq.s32.totalorder %s17, 15
      %p56 = por %p54, %p55
      %p57 = scmp.ne.s32.totalorder %s46, %s47
      %p58 = scmp.eq.s32.totalorder %s17, 0
      %p59 = por %p57, %p58
      %p60 = scmp.ne.s32.totalorder %s46, %s47
      %p61 = scmp.eq.s32.totalorder %s18, 15
      %p62 = por %p60, %p61
      %p64 = scmp.ne.s32.totalorder %s47, %s63
      %p65 = scmp.eq.s32.totalorder %s18, 0
      %p66 = por %p64, %p65
      %s67 = ssub.s32 %s19, %s38
      %s68 = ssub.s32 %s20, %s34
      %s69 = sor.u32 %s67, %s68
      %p70 = scmp.eq.s32.totalorder %s69, 0
      %s72 = sadd.s32 %s71, 1
      %s73 = scalar_select %p70, %s71, %s72
      %p76 = pneg %p70
      %p77 = scmp.eq.s32.totalorder %s12, 15
      %p78 = por %p76, %p77
      %p79 = scmp.ne.s32.totalorder %s71, %s74
      %p80 = scmp.eq.s32.totalorder %s12, 0
      %p81 = por %p79, %p80
      %p82 = scmp.ne.s32.totalorder %s71, %s74
      %p83 = scmp.eq.s32.totalorder %s17, 15
      %p84 = por %p82, %p83
      %p85 = scmp.ne.s32.totalorder %s74, %s75
      %p86 = scmp.eq.s32.totalorder %s17, 0
      %p87 = por %p85, %p86
      %p88 = scmp.ne.s32.totalorder %s74, %s75
      %p89 = scmp.eq.s32.totalorder %s18, 15
      %p90 = por %p88, %p89
      %p92 = scmp.ne.s32.totalorder %s75, %s91
      %p93 = scmp.eq.s32.totalorder %s18, 0
      %p94 = por %p92, %p93
      %s95 = ssub.s32 %s19, %s38
      %s96 = ssub.s32 %s21, %s30
      %s97 = sor.u32 %s95, %s96
      %p98 = scmp.eq.s32.totalorder %s97, 0
      %s100 = sadd.s32 %s99, 1
      %s101 = scalar_select %p98, %s99, %s100
      %p104 = pneg %p98
      %p105 = scmp.eq.s32.totalorder %s12, 15
      %p106 = por %p104, %p105
      %p107 = scmp.ne.s32.totalorder %s99, %s102
      %p108 = scmp.eq.s32.totalorder %s12, 0
      %p109 = por %p107, %p108
      %p110 = scmp.ne.s32.totalorder %s99, %s102
      %p111 = scmp.eq.s32.totalorder %s17, 15
      %p112 = por %p110, %p111
      %p113 = scmp.ne.s32.totalorder %s102, %s103
      %p114 = scmp.eq.s32.totalorder %s17, 0
      %p115 = por %p113, %p114
      %p116 = scmp.ne.s32.totalorder %s102, %s103
      %p117 = scmp.eq.s32.totalorder %s18, 15
      %p118 = por %p116, %p117
      %p120 = scmp.ne.s32.totalorder %s103, %s119
      %p121 = scmp.eq.s32.totalorder %s18, 0
      %p122 = por %p120, %p121
      %s123 = ssub.s32 %s19, %s38
      %s124 = ssub.s32 %s20, %s34
      %s125 = sor.u32 %s123, %s124
      %p126 = scmp.eq.s32.totalorder %s125, 0
      %s128 = sadd.s32 %s127, 1
      %s129 = scalar_select %p126, %s127, %s128
      %p132 = pneg %p126
      %p133 = scmp.eq.s32.totalorder %s12, 15
      %p134 = por %p132, %p133
      %p135 = scmp.ne.s32.totalorder %s127, %s130
      %p136 = scmp.eq.s32.totalorder %s12, 0
      %p137 = por %p135, %p136
      %p138 = scmp.ne.s32.totalorder %s127, %s130
      %p139 = scmp.eq.s32.totalorder %s17, 15
      %p140 = por %p138, %p139
      %p141 = scmp.ne.s32.totalorder %s130, %s131
      %p142 = scmp.eq.s32.totalorder %s17, 0
      %p143 = por %p141, %p142
      %p144 = scmp.ne.s32.totalorder %s130, %s131
      %p145 = scmp.eq.s32.totalorder %s18, 15
      %p146 = por %p144, %p145
      %p148 = scmp.ne.s32.totalorder %s131, %s147
      %p149 = scmp.eq.s32.totalorder %s18, 0
      %p150 = por %p148, %p149
      %p151 = scmp.le.s32.totalorder 1, %s12
      %p152 = scmp.lt.s32.totalorder %s12, 17
      %p153 = pnand %p151, %p152
      %p154 = pneg %p153
      // Predicated region
      $region9: #{tpu_custom_call.1} parent=5 // pred_check
        _
      $region10: #{tpu_custom_call.1} parent=5 // pred_check_branch
        %156 = sbr.rel (%p153) target = $region12
      $region11: #{tpu_custom_call.1} parent=5 // pred_region
        %s157 = ssub.s32 %s12, 1
      $region12: #{tpu_custom_call.1} parent=5 // pred_fallthru
        _
      %p158 = scmp.lt.s32.totalorder %s12, 16
      // Predicated region
      $region13: #{tpu_custom_call.1} parent=5 // pred_check
        %p159 = pneg %p158
      $region14: #{tpu_custom_call.1} parent=5 // pred_check_branch
        %161 = sbr.rel (%p159) target = $region16
      $region15: #{tpu_custom_call.1} parent=5 // pred_region
        // Predicated region
        $region17: #{tpu_custom_call.1} parent=15 // pred_check
          %p162 = pneg %p53
        $region18: #{tpu_custom_call.1} parent=15 // pred_check_branch
          %164 = sbr.rel (%p162) target = $region20
        $region19: #{tpu_custom_call.1} parent=15 // pred_region
          %s165 = smul.u32 16, %s20
          %p166 = scmp.lt.s32.totalorder %s19, 3
          %s167 = scalar_select %p166, %s19, 3
          %p168 = scmp.lt.s32.totalorder %s165, 31
          %s169 = scalar_select %p168, %s165, 31
          %s170 = smul.addr %s167, 32
          %s171 = sadd.s32 %s169, %s170
          %s172 = smul.addr %s171, 8
          %s173 = scalar_lea.vmem %s0, %s172
          %s174 = smul.u32 16, %s20
        $region20: #{tpu_custom_call.1} parent=15 // pred_fallthru
          _
        // Predicated region
        $region21: #{tpu_custom_call.1} parent=15 // pred_check
          %p175 = pneg %p81
        $region22: #{tpu_custom_call.1} parent=15 // pred_check_branch
          %177 = sbr.rel (%p175) target = $region24
        $region23: #{tpu_custom_call.1} parent=15 // pred_region
          %s178 = smul.u32 16, %s20
          %p179 = scmp.lt.s32.totalorder %s19, 3
          %s180 = scalar_select %p179, %s19, 3
          %p181 = scmp.lt.s32.totalorder %s178, 31
          %s182 = scalar_select %p181, %s178, 31
          %s183 = smul.addr %s180, 32
          %s184 = sadd.s32 %s182, %s183
          %s185 = smul.addr %s184, 8
          %s186 = scalar_lea.vmem %s1, %s185
          %s187 = smul.u32 16, %s20
        $region24: #{tpu_custom_call.1} parent=15 // pred_fallthru
          _
        // Predicated region
        $region25: #{tpu_custom_call.1} parent=15 // pred_check
          %p188 = pneg %p109
        $region26: #{tpu_custom_call.1} parent=15 // pred_check_branch
          %190 = sbr.rel (%p188) target = $region28
        $region27: #{tpu_custom_call.1} parent=15 // pred_region
          %s191 = smul.u32 64, %s21
          %p192 = scmp.lt.s32.totalorder %s19, 3
          %s193 = scalar_select %p192, %s19, 3
          %p194 = scmp.lt.s32.totalorder %s191, 127
          %s195 = scalar_select %p194, %s191, 127
          %s196 = smul.addr %s193, 128
          %s197 = sadd.s32 %s195, %s196
          %s198 = smul.addr %s197, 4
          %s199 = scalar_lea.vmem %s2, %s198
          %s200 = smul.u32 64, %s21
        $region28: #{tpu_custom_call.1} parent=15 // pred_fallthru
          _
      $region16: #{tpu_custom_call.1} parent=5 // pred_fallthru
        _
      %p201 = scmp.le.s32.totalorder 1, %s12
      %p202 = scmp.lt.s32.totalorder %s12, 17
      %p203 = pnand %p201, %p202
      %p204 = pneg %p203
      // Predicated region
      $region29: #{tpu_custom_call.1} parent=5 // pred_check
        _
      $region30: #{tpu_custom_call.1} parent=5 // pred_check_branch
        %206 = sbr.rel (%p203) target = $region32
      $region31: #{tpu_custom_call.1} parent=5 // pred_region
        %s207 = ssub.s32 %s12, 1
        %s208 = smul.u32 16, %s23
        %p209 = scmp.lt.s32.totalorder %s22, 3
        %s210 = scalar_select %p209, %s22, 3
        %p211 = scmp.lt.s32.totalorder %s208, 31
        %s212 = scalar_select %p211, %s208, 31
        %s213 = smul.addr %s210, 32
        %s214 = sadd.s32 %s212, %s213
        %s215 = smul.addr %s214, 8
        %s216 = scalar_lea.vmem %s0, %s215
        %p217 = pneg %p59
        %p218 = pneg %p56
        %s219 = smul.u32 16, %s23
        %p220 = scmp.lt.s32.totalorder %s22, 3
        %s221 = scalar_select %p220, %s22, 3
        %p222 = scmp.lt.s32.totalorder %s219, 31
        %s223 = scalar_select %p222, %s219, 31
        %s224 = smul.addr %s221, 32
        %s225 = sadd.s32 %s223, %s224
        %s226 = smul.addr %s225, 8
        %s227 = scalar_lea.vmem %s1, %s226
        %p228 = pneg %p87
        %p229 = pneg %p84
        %s230 = smul.u32 64, %s24
        %p231 = scmp.lt.s32.totalorder %s22, 3
        %s232 = scalar_select %p231, %s22, 3
        %p233 = scmp.lt.s32.totalorder %s230, 127
        %s234 = scalar_select %p233, %s230, 127
        %s235 = smul.addr %s232, 128
        %s236 = sadd.s32 %s234, %s235
        %s237 = smul.addr %s236, 4
        %s238 = scalar_lea.vmem %s2, %s237
        %p239 = pneg %p115
        %p240 = pneg %p112
        %p241 = pneg %p143
        %p242 = pneg %p140
        %s243 = sand.u32 %s130, 1
        %s244 = scalar_lea.sflag [#allocation3], %s243
        %s245 = sand.u32 %s130, 1
        %s246 = smul.addr %s245, 128
        %s247 = scalar_lea.vmem [#allocation2], %s246
        %s248 = smul.u32 16, %s23
        %p249 = scmp.lt.s32.totalorder %s22, 3
        %s250 = scalar_select %p249, %s22, 3
        %p251 = scmp.lt.s32.totalorder %s248, 31
        %s252 = scalar_select %p251, %s248, 31
        %s253 = smul.addr %s250, 32
        %s254 = sadd.s32 %s252, %s253
        %s255 = smul.addr %s254, 8
        %s256 = scalar_lea.vmem %s0, %s255
        %s257 = smul.u32 16, %s23
        %s258 = smul.u32 16, %s23
        %p259 = scmp.lt.s32.totalorder %s22, 3
        %s260 = scalar_select %p259, %s22, 3
        %p261 = scmp.lt.s32.totalorder %s258, 31
        %s262 = scalar_select %p261, %s258, 31
        %s263 = smul.addr %s260, 32
        %s264 = sadd.s32 %s262, %s263
        %s265 = smul.addr %s264, 8
        %s266 = scalar_lea.vmem %s1, %s265
        %s267 = smul.u32 16, %s23
        %s268 = smul.u32 64, %s24
        %p269 = scmp.lt.s32.totalorder %s22, 3
        %s270 = scalar_select %p269, %s22, 3
        %p271 = scmp.lt.s32.totalorder %s268, 127
        %s272 = scalar_select %p271, %s268, 127
        %s273 = smul.addr %s270, 128
        %s274 = sadd.s32 %s272, %s273
        %s275 = smul.addr %s274, 4
        %s276 = scalar_lea.vmem %s2, %s275
        %s277 = smul.u32 64, %s24
        %s278 = smul.u32 16, %s23
        %p279 = scmp.eq.s32.totalorder %s24, 0
        // Predicated region
        $region33: #{tpu_custom_call.1} parent=31 // pred_check
          %p280 = pneg %p279
        $region34: #{tpu_custom_call.1} parent=31 // pred_check_branch
          %282 = sbr.rel (%p280) target = $region36
        $region35: #{tpu_custom_call.1} parent=31 // pred_region
          %283 = vst [vmem:[%s247] sm:$0xff] 0.0
          %284 = vst [vmem:[%s247 + $0x8] sm:$0xff] 0.0
          %285 = vst [vmem:[%s247 + $0x10] sm:$0xff] 0.0
          %286 = vst [vmem:[%s247 + $0x18] sm:$0xff] 0.0
          %287 = vst [vmem:[%s247 + $0x20] sm:$0xff] 0.0
          %288 = vst [vmem:[%s247 + $0x28] sm:$0xff] 0.0
          %289 = vst [vmem:[%s247 + $0x30] sm:$0xff] 0.0
          %290 = vst [vmem:[%s247 + $0x38] sm:$0xff] 0.0
          %291 = vst [vmem:[%s247 + $0x40] sm:$0xff] 0.0
          %292 = vst [vmem:[%s247 + $0x48] sm:$0xff] 0.0
          %293 = vst [vmem:[%s247 + $0x50] sm:$0xff] 0.0
          %294 = vst [vmem:[%s247 + $0x58] sm:$0xff] 0.0
          %295 = vst [vmem:[%s247 + $0x60] sm:$0xff] 0.0
          %296 = vst [vmem:[%s247 + $0x68] sm:$0xff] 0.0
          %297 = vst [vmem:[%s247 + $0x70] sm:$0xff] 0.0
          %298 = vst [vmem:[%s247 + $0x78] sm:$0xff] 0.0
        $region36: #{tpu_custom_call.1} parent=31 // pred_fallthru
          _
        %v299 = vld [vmem:[%s256] sm:$0xff]
        %v300 = vld [vmem:[%s256 + $0x8] sm:$0xff]
        %v301 = vld [vmem:[%s256 + $0x10] sm:$0xff]
        %v302 = vld [vmem:[%s256 + $0x18] sm:$0xff]
        %v303 = vld [vmem:[%s256 + $0x20] sm:$0xff]
        %v304 = vld [vmem:[%s256 + $0x28] sm:$0xff]
        %v305 = vld [vmem:[%s256 + $0x30] sm:$0xff]
        %v306 = vld [vmem:[%s256 + $0x38] sm:$0xff]
        %v307 = vld [vmem:[%s256 + $0x40] sm:$0xff]
        %v308 = vld [vmem:[%s256 + $0x48] sm:$0xff]
        %v309 = vld [vmem:[%s256 + $0x50] sm:$0xff]
        %v310 = vld [vmem:[%s256 + $0x58] sm:$0xff]
        %v311 = vld [vmem:[%s256 + $0x60] sm:$0xff]
        %v312 = vld [vmem:[%s256 + $0x68] sm:$0xff]
        %v313 = vld [vmem:[%s256 + $0x70] sm:$0xff]
        %v314 = vld [vmem:[%s256 + $0x78] sm:$0xff]
        %v315 = vld [vmem:[%s266] sm:$0xff]
        %v316 = vld [vmem:[%s266 + $0x8] sm:$0xff]
        %v317 = vld [vmem:[%s266 + $0x10] sm:$0xff]
        %v318 = vld [vmem:[%s266 + $0x18] sm:$0xff]
        %v319 = vld [vmem:[%s266 + $0x20] sm:$0xff]
        %v320 = vld [vmem:[%s266 + $0x28] sm:$0xff]
        %v321 = vld [vmem:[%s266 + $0x30] sm:$0xff]
        %v322 = vld [vmem:[%s266 + $0x38] sm:$0xff]
        %v323 = vld [vmem:[%s266 + $0x40] sm:$0xff]
        %v324 = vld [vmem:[%s266 + $0x48] sm:$0xff]
        %v325 = vld [vmem:[%s266 + $0x50] sm:$0xff]
        %v326 = vld [vmem:[%s266 + $0x58] sm:$0xff]
        %v327 = vld [vmem:[%s266 + $0x60] sm:$0xff]
        %v328 = vld [vmem:[%s266 + $0x68] sm:$0xff]
        %v329 = vld [vmem:[%s266 + $0x70] sm:$0xff]
        %v330 = vld [vmem:[%s266 + $0x78] sm:$0xff]
        %v331 = vld [vmem:[%s276] sm:$0xf]
        %v332 = vld [vmem:[%s276 + $0x4] sm:$0xf]
        %v333 = vld [vmem:[%s276 + $0x8] sm:$0xf]
        %v334 = vld [vmem:[%s276 + $0xc] sm:$0xf]
        %v335 = vld [vmem:[%s276 + $0x10] sm:$0xf]
        %v336 = vld [vmem:[%s276 + $0x14] sm:$0xf]
        %v337 = vld [vmem:[%s276 + $0x18] sm:$0xf]
        %v338 = vld [vmem:[%s276 + $0x1c] sm:$0xf]
        %v339 = vld [vmem:[%s276 + $0x20] sm:$0xf]
        %v340 = vld [vmem:[%s276 + $0x24] sm:$0xf]
        %v341 = vld [vmem:[%s276 + $0x28] sm:$0xf]
        %v342 = vld [vmem:[%s276 + $0x2c] sm:$0xf]
        %v343 = vld [vmem:[%s276 + $0x30] sm:$0xf]
        %v344 = vld [vmem:[%s276 + $0x34] sm:$0xf]
        %v345 = vld [vmem:[%s276 + $0x38] sm:$0xf]
        %v346 = vld [vmem:[%s276 + $0x3c] sm:$0xf]
        %v347 = vld [vmem:[%s276 + $0x40] sm:$0xf]
        %v348 = vld [vmem:[%s276 + $0x44] sm:$0xf]
        %v349 = vld [vmem:[%s276 + $0x48] sm:$0xf]
        %v350 = vld [vmem:[%s276 + $0x4c] sm:$0xf]
        %v351 = vld [vmem:[%s276 + $0x50] sm:$0xf]
        %v352 = vld [vmem:[%s276 + $0x54] sm:$0xf]
        %v353 = vld [vmem:[%s276 + $0x58] sm:$0xf]
        %v354 = vld [vmem:[%s276 + $0x5c] sm:$0xf]
        %v355 = vld [vmem:[%s276 + $0x60] sm:$0xf]
        %v356 = vld [vmem:[%s276 + $0x64] sm:$0xf]
        %v357 = vld [vmem:[%s276 + $0x68] sm:$0xf]
        %v358 = vld [vmem:[%s276 + $0x6c] sm:$0xf]
        %v359 = vld [vmem:[%s276 + $0x70] sm:$0xf]
        %v360 = vld [vmem:[%s276 + $0x74] sm:$0xf]
        %v361 = vld [vmem:[%s276 + $0x78] sm:$0xf]
        %v362 = vld [vmem:[%s276 + $0x7c] sm:$0xf]
        %v363 = vld [vmem:[%s276 + $0x80] sm:$0xf]
        %v364 = vld [vmem:[%s276 + $0x84] sm:$0xf]
        %v365 = vld [vmem:[%s276 + $0x88] sm:$0xf]
        %v366 = vld [vmem:[%s276 + $0x8c] sm:$0xf]
        %v367 = vld [vmem:[%s276 + $0x90] sm:$0xf]
        %v368 = vld [vmem:[%s276 + $0x94] sm:$0xf]
        %v369 = vld [vmem:[%s276 + $0x98] sm:$0xf]
        %v370 = vld [vmem:[%s276 + $0x9c] sm:$0xf]
        %v371 = vld [vmem:[%s276 + $0xa0] sm:$0xf]
        %v372 = vld [vmem:[%s276 + $0xa4] sm:$0xf]
        %v373 = vld [vmem:[%s276 + $0xa8] sm:$0xf]
        %v374 = vld [vmem:[%s276 + $0xac] sm:$0xf]
        %v375 = vld [vmem:[%s276 + $0xb0] sm:$0xf]
        %v376 = vld [vmem:[%s276 + $0xb4] sm:$0xf]
        %v377 = vld [vmem:[%s276 + $0xb8] sm:$0xf]
        %v378 = vld [vmem:[%s276 + $0xbc] sm:$0xf]
        %v379 = vld [vmem:[%s276 + $0xc0] sm:$0xf]
        %v380 = vld [vmem:[%s276 + $0xc4] sm:$0xf]
        %v381 = vld [vmem:[%s276 + $0xc8] sm:$0xf]
        %v382 = vld [vmem:[%s276 + $0xcc] sm:$0xf]
        %v383 = vld [vmem:[%s276 + $0xd0] sm:$0xf]
        %v384 = vld [vmem:[%s276 + $0xd4] sm:$0xf]
        %v385 = vld [vmem:[%s276 + $0xd8] sm:$0xf]
        %v386 = vld [vmem:[%s276 + $0xdc] sm:$0xf]
        %v387 = vld [vmem:[%s276 + $0xe0] sm:$0xf]
        %v388 = vld [vmem:[%s276 + $0xe4] sm:$0xf]
        %v389 = vld [vmem:[%s276 + $0xe8] sm:$0xf]
        %v390 = vld [vmem:[%s276 + $0xec] sm:$0xf]
        %v391 = vld [vmem:[%s276 + $0xf0] sm:$0xf]
        %v392 = vld [vmem:[%s276 + $0xf4] sm:$0xf]
        %v393 = vld [vmem:[%s276 + $0xf8] sm:$0xf]
        %v394 = vld [vmem:[%s276 + $0xfc] sm:$0xf]
        %v395 = vmul.u32 %v299, 2654435769
        %v396 = vmul.u32 %v300, 2654435769
        %v397 = vmul.u32 %v301, 2654435769
        %v398 = vmul.u32 %v302, 2654435769
        %v399 = vmul.u32 %v303, 2654435769
        %v400 = vmul.u32 %v304, 2654435769
        %v401 = vmul.u32 %v305, 2654435769
        %v402 = vmul.u32 %v306, 2654435769
        %v403 = vmul.u32 %v307, 2654435769
        %v404 = vmul.u32 %v308, 2654435769
        %v405 = vmul.u32 %v309, 2654435769
        %v406 = vmul.u32 %v310, 2654435769
        %v407 = vmul.u32 %v311, 2654435769
        %v408 = vmul.u32 %v312, 2654435769
        %v409 = vmul.u32 %v313, 2654435769
        %v410 = vmul.u32 %v314, 2654435769
        %v411 = vshrl.u32 %v395, 16
        %v412 = vshrl.u32 %v396, 16
        %v413 = vshrl.u32 %v397, 16
        %v414 = vshrl.u32 %v398, 16
        %v415 = vshrl.u32 %v399, 16
        %v416 = vshrl.u32 %v400, 16
        %v417 = vshrl.u32 %v401, 16
        %v418 = vshrl.u32 %v402, 16
        %v419 = vshrl.u32 %v403, 16
        %v420 = vshrl.u32 %v404, 16
        %v421 = vshrl.u32 %v405, 16
        %v422 = vshrl.u32 %v406, 16
        %v423 = vshrl.u32 %v407, 16
        %v424 = vshrl.u32 %v408, 16
        %v425 = vshrl.u32 %v409, 16
        %v426 = vshrl.u32 %v410, 16
        %v427 = vxor.u32 %v395, %v411
        %v428 = vxor.u32 %v396, %v412
        %v429 = vxor.u32 %v397, %v413
        %v430 = vxor.u32 %v398, %v414
        %v431 = vxor.u32 %v399, %v415
        %v432 = vxor.u32 %v400, %v416
        %v433 = vxor.u32 %v401, %v417
        %v434 = vxor.u32 %v402, %v418
        %v435 = vxor.u32 %v403, %v419
        %v436 = vxor.u32 %v404, %v420
        %v437 = vxor.u32 %v405, %v421
        %v438 = vxor.u32 %v406, %v422
        %v439 = vxor.u32 %v407, %v423
        %v440 = vxor.u32 %v408, %v424
        %v441 = vxor.u32 %v409, %v425
        %v442 = vxor.u32 %v410, %v426
        %v443 = vand.u32 %v427, 1023
        %v444 = vand.u32 %v428, 1023
        %v445 = vand.u32 %v429, 1023
        %v446 = vand.u32 %v430, 1023
        %v447 = vand.u32 %v431, 1023
        %v448 = vand.u32 %v432, 1023
        %v449 = vand.u32 %v433, 1023
        %v450 = vand.u32 %v434, 1023
        %v451 = vand.u32 %v435, 1023
        %v452 = vand.u32 %v436, 1023
        %v453 = vand.u32 %v437, 1023
        %v454 = vand.u32 %v438, 1023
        %v455 = vand.u32 %v439, 1023
        %v456 = vand.u32 %v440, 1023
        %v457 = vand.u32 %v441, 1023
        %v458 = vand.u32 %v442, 1023
        %v459 = vlaneseq
        %v460 = vand.u32 %v459, 127
        %461 = vset.pattern.permute.xlu0 0
        %462 = vperm.xlu0 %461, %v315
        %v463 = vpop.permute.xlu0 %462
        %464 = vset.pattern.permute.xlu0 0
        %465 = vperm.xlu0 %464, %v316
        %v466 = vpop.permute.xlu0 %465
        %467 = vset.pattern.permute.xlu0 0
        %468 = vperm.xlu0 %467, %v317
        %v469 = vpop.permute.xlu0 %468
        %470 = vset.pattern.permute.xlu0 0
        %471 = vperm.xlu0 %470, %v318
        %v472 = vpop.permute.xlu0 %471
        %473 = vset.pattern.permute.xlu0 0
        %474 = vperm.xlu0 %473, %v319
        %v475 = vpop.permute.xlu0 %474
        %476 = vset.pattern.permute.xlu0 0
        %477 = vperm.xlu0 %476, %v320
        %v478 = vpop.permute.xlu0 %477
        %479 = vset.pattern.permute.xlu0 0
        %480 = vperm.xlu0 %479, %v321
        %v481 = vpop.permute.xlu0 %480
        %482 = vset.pattern.permute.xlu0 0
        %483 = vperm.xlu0 %482, %v322
        %v484 = vpop.permute.xlu0 %483
        %485 = vset.pattern.permute.xlu0 0
        %486 = vperm.xlu0 %485, %v323
        %v487 = vpop.permute.xlu0 %486
        %488 = vset.pattern.permute.xlu0 0
        %489 = vperm.xlu0 %488, %v324
        %v490 = vpop.permute.xlu0 %489
        %491 = vset.pattern.permute.xlu0 0
        %492 = vperm.xlu0 %491, %v325
        %v493 = vpop.permute.xlu0 %492
        %494 = vset.pattern.permute.xlu0 0
        %495 = vperm.xlu0 %494, %v326
        %v496 = vpop.permute.xlu0 %495
        %497 = vset.pattern.permute.xlu0 0
        %498 = vperm.xlu0 %497, %v327
        %v499 = vpop.permute.xlu0 %498
        %500 = vset.pattern.permute.xlu0 0
        %501 = vperm.xlu0 %500, %v328
        %v502 = vpop.permute.xlu0 %501
        %503 = vset.pattern.permute.xlu0 0
        %504 = vperm.xlu0 %503, %v329
        %v505 = vpop.permute.xlu0 %504
        %506 = vset.pattern.permute.xlu0 0
        %507 = vperm.xlu0 %506, %v330
        %v508 = vpop.permute.xlu0 %507
        %vm509 = vcmp.lt.s32.totalorder %v460, %v463
        %vm510 = vcmp.lt.s32.totalorder %v460, %v466
        %vm511 = vcmp.lt.s32.totalorder %v460, %v469
        %vm512 = vcmp.lt.s32.totalorder %v460, %v472
        %vm513 = vcmp.lt.s32.totalorder %v460, %v475
        %vm514 = vcmp.lt.s32.totalorder %v460, %v478
        %vm515 = vcmp.lt.s32.totalorder %v460, %v481
        %vm516 = vcmp.lt.s32.totalorder %v460, %v484
        %vm517 = vcmp.lt.s32.totalorder %v460, %v487
        %vm518 = vcmp.lt.s32.totalorder %v460, %v490
        %vm519 = vcmp.lt.s32.totalorder %v460, %v493
        %vm520 = vcmp.lt.s32.totalorder %v460, %v496
        %vm521 = vcmp.lt.s32.totalorder %v460, %v499
        %vm522 = vcmp.lt.s32.totalorder %v460, %v502
        %vm523 = vcmp.lt.s32.totalorder %v460, %v505
        %vm524 = vcmp.lt.s32.totalorder %v460, %v508
        %s525 = smul.u32 %s24, 512
        %v526 = vstv %s525
        %v527 = vsub.s32 %v443, %v526
        %v528 = vsub.s32 %v444, %v526
        %v529 = vsub.s32 %v445, %v526
        %v530 = vsub.s32 %v446, %v526
        %v531 = vsub.s32 %v447, %v526
        %v532 = vsub.s32 %v448, %v526
        %v533 = vsub.s32 %v449, %v526
        %v534 = vsub.s32 %v450, %v526
        %v535 = vsub.s32 %v451, %v526
        %v536 = vsub.s32 %v452, %v526
        %v537 = vsub.s32 %v453, %v526
        %v538 = vsub.s32 %v454, %v526
        %v539 = vsub.s32 %v455, %v526
        %v540 = vsub.s32 %v456, %v526
        %v541 = vsub.s32 %v457, %v526
        %v542 = vsub.s32 %v458, %v526
        %v543 = vadd.s32 %v460, 128
        %v544 = vadd.s32 %v460, 256
        %v545 = vadd.s32 %v460, 384
        %546 = vset.pattern.permute.xlu0 0
        %547 = vperm.xlu0 %546, %v527
        %v548 = vpop.permute.xlu0 %547
        %549 = vset.pattern.permute.xlu0 0
        %550 = vperm.xlu0 %549, %v528
        %v551 = vpop.permute.xlu0 %550
        %552 = vset.pattern.permute.xlu0 0
        %553 = vperm.xlu0 %552, %v529
        %v554 = vpop.permute.xlu0 %553
        %555 = vset.pattern.permute.xlu0 0
        %556 = vperm.xlu0 %555, %v530
        %v557 = vpop.permute.xlu0 %556
        %558 = vset.pattern.permute.xlu0 0
        %559 = vperm.xlu0 %558, %v531
        %v560 = vpop.permute.xlu0 %559
        %561 = vset.pattern.permute.xlu0 0
        %562 = vperm.xlu0 %561, %v532
        %v563 = vpop.permute.xlu0 %562
        %564 = vset.pattern.permute.xlu0 0
        %565 = vperm.xlu0 %564, %v533
        %v566 = vpop.permute.xlu0 %565
        %567 = vset.pattern.permute.xlu0 0
        %568 = vperm.xlu0 %567, %v534
        %v569 = vpop.permute.xlu0 %568
        %570 = vset.pattern.permute.xlu0 0
        %571 = vperm.xlu0 %570, %v535
        %v572 = vpop.permute.xlu0 %571
        %573 = vset.pattern.permute.xlu0 0
        %574 = vperm.xlu0 %573, %v536
        %v575 = vpop.permute.xlu0 %574
        %576 = vset.pattern.permute.xlu0 0
        %577 = vperm.xlu0 %576, %v537
        %v578 = vpop.permute.xlu0 %577
        %579 = vset.pattern.permute.xlu0 0
        %580 = vperm.xlu0 %579, %v538
        %v581 = vpop.permute.xlu0 %580
        %582 = vset.pattern.permute.xlu0 0
        %583 = vperm.xlu0 %582, %v539
        %v584 = vpop.permute.xlu0 %583
        %585 = vset.pattern.permute.xlu0 0
        %586 = vperm.xlu0 %585, %v540
        %v587 = vpop.permute.xlu0 %586
        %588 = vset.pattern.permute.xlu0 0
        %589 = vperm.xlu0 %588, %v541
        %v590 = vpop.permute.xlu0 %589
        %591 = vset.pattern.permute.xlu0 0
        %592 = vperm.xlu0 %591, %v542
        %v593 = vpop.permute.xlu0 %592
        %vm594 = vcmp.eq.s32.totalorder %v460, %v548
        %vm595 = vcmp.eq.s32.totalorder %v543, %v548
        %vm596 = vcmp.eq.s32.totalorder %v544, %v548
        %vm597 = vcmp.eq.s32.totalorder %v545, %v548
        %vm598 = vcmp.eq.s32.totalorder %v460, %v551
        %vm599 = vcmp.eq.s32.totalorder %v543, %v551
        %vm600 = vcmp.eq.s32.totalorder %v544, %v551
        %vm601 = vcmp.eq.s32.totalorder %v545, %v551
        %vm602 = vcmp.eq.s32.totalorder %v460, %v554
        %vm603 = vcmp.eq.s32.totalorder %v543, %v554
        %vm604 = vcmp.eq.s32.totalorder %v544, %v554
        %vm605 = vcmp.eq.s32.totalorder %v545, %v554
        %vm606 = vcmp.eq.s32.totalorder %v460, %v557
        %vm607 = vcmp.eq.s32.totalorder %v543, %v557
        %vm608 = vcmp.eq.s32.totalorder %v544, %v557
        %vm609 = vcmp.eq.s32.totalorder %v545, %v557
        %vm610 = vcmp.eq.s32.totalorder %v460, %v560
        %vm611 = vcmp.eq.s32.totalorder %v543, %v560
        %vm612 = vcmp.eq.s32.totalorder %v544, %v560
        %vm613 = vcmp.eq.s32.totalorder %v545, %v560
        %vm614 = vcmp.eq.s32.totalorder %v460, %v563
        %vm615 = vcmp.eq.s32.totalorder %v543, %v563
        %vm616 = vcmp.eq.s32.totalorder %v544, %v563
        %vm617 = vcmp.eq.s32.totalorder %v545, %v563
        %vm618 = vcmp.eq.s32.totalorder %v460, %v566
        %vm619 = vcmp.eq.s32.totalorder %v543, %v566
        %vm620 = vcmp.eq.s32.totalorder %v544, %v566
        %vm621 = vcmp.eq.s32.totalorder %v545, %v566
        %vm622 = vcmp.eq.s32.totalorder %v460, %v569
        %vm623 = vcmp.eq.s32.totalorder %v543, %v569
        %vm624 = vcmp.eq.s32.totalorder %v544, %v569
        %vm625 = vcmp.eq.s32.totalorder %v545, %v569
        %vm626 = vcmp.eq.s32.totalorder %v460, %v572
        %vm627 = vcmp.eq.s32.totalorder %v543, %v572
        %vm628 = vcmp.eq.s32.totalorder %v544, %v572
        %vm629 = vcmp.eq.s32.totalorder %v545, %v572
        %vm630 = vcmp.eq.s32.totalorder %v460, %v575
        %vm631 = vcmp.eq.s32.totalorder %v543, %v575
        %vm632 = vcmp.eq.s32.totalorder %v544, %v575
        %vm633 = vcmp.eq.s32.totalorder %v545, %v575
        %vm634 = vcmp.eq.s32.totalorder %v460, %v578
        %vm635 = vcmp.eq.s32.totalorder %v543, %v578
        %vm636 = vcmp.eq.s32.totalorder %v544, %v578
        %vm637 = vcmp.eq.s32.totalorder %v545, %v578
        %vm638 = vcmp.eq.s32.totalorder %v460, %v581
        %vm639 = vcmp.eq.s32.totalorder %v543, %v581
        %vm640 = vcmp.eq.s32.totalorder %v544, %v581
        %vm641 = vcmp.eq.s32.totalorder %v545, %v581
        %vm642 = vcmp.eq.s32.totalorder %v460, %v584
        %vm643 = vcmp.eq.s32.totalorder %v543, %v584
        %vm644 = vcmp.eq.s32.totalorder %v544, %v584
        %vm645 = vcmp.eq.s32.totalorder %v545, %v584
        %vm646 = vcmp.eq.s32.totalorder %v460, %v587
        %vm647 = vcmp.eq.s32.totalorder %v543, %v587
        %vm648 = vcmp.eq.s32.totalorder %v544, %v587
        %vm649 = vcmp.eq.s32.totalorder %v545, %v587
        %vm650 = vcmp.eq.s32.totalorder %v460, %v590
        %vm651 = vcmp.eq.s32.totalorder %v543, %v590
        %vm652 = vcmp.eq.s32.totalorder %v544, %v590
        %vm653 = vcmp.eq.s32.totalorder %v545, %v590
        %vm654 = vcmp.eq.s32.totalorder %v460, %v593
        %vm655 = vcmp.eq.s32.totalorder %v543, %v593
        %vm656 = vcmp.eq.s32.totalorder %v544, %v593
        %vm657 = vcmp.eq.s32.totalorder %v545, %v593
        %v658 = vsel %vm509, 1, 0
        %v659 = vsel %vm510, 1, 0
        %v660 = vsel %vm511, 1, 0
        %v661 = vsel %vm512, 1, 0
        %v662 = vsel %vm513, 1, 0
        %v663 = vsel %vm514, 1, 0
        %v664 = vsel %vm515, 1, 0
        %v665 = vsel %vm516, 1, 0
        %v666 = vsel %vm517, 1, 0
        %v667 = vsel %vm518, 1, 0
        %v668 = vsel %vm519, 1, 0
        %v669 = vsel %vm520, 1, 0
        %v670 = vsel %vm521, 1, 0
        %v671 = vsel %vm522, 1, 0
        %v672 = vsel %vm523, 1, 0
        %v673 = vsel %vm524, 1, 0
        %674 = vset.pattern.permute.xlu0 0
        %675 = vperm.xlu0 %674, %v658
        %v676 = vpop.permute.xlu0 %675
        %677 = vset.pattern.permute.xlu0 0
        %678 = vperm.xlu0 %677, %v659
        %v679 = vpop.permute.xlu0 %678
        %680 = vset.pattern.permute.xlu0 0
        %681 = vperm.xlu0 %680, %v660
        %v682 = vpop.permute.xlu0 %681
        %683 = vset.pattern.permute.xlu0 0
        %684 = vperm.xlu0 %683, %v661
        %v685 = vpop.permute.xlu0 %684
        %686 = vset.pattern.permute.xlu0 0
        %687 = vperm.xlu0 %686, %v662
        %v688 = vpop.permute.xlu0 %687
        %689 = vset.pattern.permute.xlu0 0
        %690 = vperm.xlu0 %689, %v663
        %v691 = vpop.permute.xlu0 %690
        %692 = vset.pattern.permute.xlu0 0
        %693 = vperm.xlu0 %692, %v664
        %v694 = vpop.permute.xlu0 %693
        %695 = vset.pattern.permute.xlu0 0
        %696 = vperm.xlu0 %695, %v665
        %v697 = vpop.permute.xlu0 %696
        %698 = vset.pattern.permute.xlu0 0
        %699 = vperm.xlu0 %698, %v666
        %v700 = vpop.permute.xlu0 %699
        %701 = vset.pattern.permute.xlu0 0
        %702 = vperm.xlu0 %701, %v667
        %v703 = vpop.permute.xlu0 %702
        %704 = vset.pattern.permute.xlu0 0
        %705 = vperm.xlu0 %704, %v668
        %v706 = vpop.permute.xlu0 %705
        %707 = vset.pattern.permute.xlu0 0
        %708 = vperm.xlu0 %707, %v669
        %v709 = vpop.permute.xlu0 %708
        %710 = vset.pattern.permute.xlu0 0
        %711 = vperm.xlu0 %710, %v670
        %v712 = vpop.permute.xlu0 %711
        %713 = vset.pattern.permute.xlu0 0
        %714 = vperm.xlu0 %713, %v671
        %v715 = vpop.permute.xlu0 %714
        %716 = vset.pattern.permute.xlu0 0
        %717 = vperm.xlu0 %716, %v672
        %v718 = vpop.permute.xlu0 %717
        %719 = vset.pattern.permute.xlu0 0
        %720 = vperm.xlu0 %719, %v673
        %v721 = vpop.permute.xlu0 %720
        %vm722 = vcmp.eq.s32.totalorder %v676, 1
        %vm723 = vcmp.eq.s32.totalorder %v679, 1
        %vm724 = vcmp.eq.s32.totalorder %v682, 1
        %vm725 = vcmp.eq.s32.totalorder %v685, 1
        %vm726 = vcmp.eq.s32.totalorder %v688, 1
        %vm727 = vcmp.eq.s32.totalorder %v691, 1
        %vm728 = vcmp.eq.s32.totalorder %v694, 1
        %vm729 = vcmp.eq.s32.totalorder %v697, 1
        %vm730 = vcmp.eq.s32.totalorder %v700, 1
        %vm731 = vcmp.eq.s32.totalorder %v703, 1
        %vm732 = vcmp.eq.s32.totalorder %v706, 1
        %vm733 = vcmp.eq.s32.totalorder %v709, 1
        %vm734 = vcmp.eq.s32.totalorder %v712, 1
        %vm735 = vcmp.eq.s32.totalorder %v715, 1
        %vm736 = vcmp.eq.s32.totalorder %v718, 1
        %vm737 = vcmp.eq.s32.totalorder %v721, 1
        %vm738 = vmand %vm594, %vm722
        %vm739 = vmand %vm595, %vm722
        %vm740 = vmand %vm596, %vm722
        %vm741 = vmand %vm597, %vm722
        %vm742 = vmand %vm598, %vm723
        %vm743 = vmand %vm599, %vm723
        %vm744 = vmand %vm600, %vm723
        %vm745 = vmand %vm601, %vm723
        %vm746 = vmand %vm602, %vm724
        %vm747 = vmand %vm603, %vm724
        %vm748 = vmand %vm604, %vm724
        %vm749 = vmand %vm605, %vm724
        %vm750 = vmand %vm606, %vm725
        %vm751 = vmand %vm607, %vm725
        %vm752 = vmand %vm608, %vm725
        %vm753 = vmand %vm609, %vm725
        %vm754 = vmand %vm610, %vm726
        %vm755 = vmand %vm611, %vm726
        %vm756 = vmand %vm612, %vm726
        %vm757 = vmand %vm613, %vm726
        %vm758 = vmand %vm614, %vm727
        %vm759 = vmand %vm615, %vm727
        %vm760 = vmand %vm616, %vm727
        %vm761 = vmand %vm617, %vm727
        %vm762 = vmand %vm618, %vm728
        %vm763 = vmand %vm619, %vm728
        %vm764 = vmand %vm620, %vm728
        %vm765 = vmand %vm621, %vm728
        %vm766 = vmand %vm622, %vm729
        %vm767 = vmand %vm623, %vm729
        %vm768 = vmand %vm624, %vm729
        %vm769 = vmand %vm625, %vm729
        %vm770 = vmand %vm626, %vm730
        %vm771 = vmand %vm627, %vm730
        %vm772 = vmand %vm628, %vm730
        %vm773 = vmand %vm629, %vm730
        %vm774 = vmand %vm630, %vm731
        %vm775 = vmand %vm631, %vm731
        %vm776 = vmand %vm632, %vm731
        %vm777 = vmand %vm633, %vm731
        %vm778 = vmand %vm634, %vm732
        %vm779 = vmand %vm635, %vm732
        %vm780 = vmand %vm636, %vm732
        %vm781 = vmand %vm637, %vm732
        %vm782 = vmand %vm638, %vm733
        %vm783 = vmand %vm639, %vm733
        %vm784 = vmand %vm640, %vm733
        %vm785 = vmand %vm641, %vm733
        %vm786 = vmand %vm642, %vm734
        %vm787 = vmand %vm643, %vm734
        %vm788 = vmand %vm644, %vm734
        %vm789 = vmand %vm645, %vm734
        %vm790 = vmand %vm646, %vm735
        %vm791 = vmand %vm647, %vm735
        %vm792 = vmand %vm648, %vm735
        %vm793 = vmand %vm649, %vm735
        %vm794 = vmand %vm650, %vm736
        %vm795 = vmand %vm651, %vm736
        %vm796 = vmand %vm652, %vm736
        %vm797 = vmand %vm653, %vm736
        %vm798 = vmand %vm654, %vm737
        %vm799 = vmand %vm655, %vm737
        %vm800 = vmand %vm656, %vm737
        %vm801 = vmand %vm657, %vm737
        %v802 = vsel %vm738, 1, 0
        %v803 = vsel %vm739, 1, 0
        %v804 = vsel %vm740, 1, 0
        %v805 = vsel %vm741, 1, 0
        %v806 = vsel %vm742, 1, 0
        %v807 = vsel %vm743, 1, 0
        %v808 = vsel %vm744, 1, 0
        %v809 = vsel %vm745, 1, 0
        %v810 = vsel %vm746, 1, 0
        %v811 = vsel %vm747, 1, 0
        %v812 = vsel %vm748, 1, 0
        %v813 = vsel %vm749, 1, 0
        %v814 = vsel %vm750, 1, 0
        %v815 = vsel %vm751, 1, 0
        %v816 = vsel %vm752, 1, 0
        %v817 = vsel %vm753, 1, 0
        %v818 = vsel %vm754, 1, 0
        %v819 = vsel %vm755, 1, 0
        %v820 = vsel %vm756, 1, 0
        %v821 = vsel %vm757, 1, 0
        %v822 = vsel %vm758, 1, 0
        %v823 = vsel %vm759, 1, 0
        %v824 = vsel %vm760, 1, 0
        %v825 = vsel %vm761, 1, 0
        %v826 = vsel %vm762, 1, 0
        %v827 = vsel %vm763, 1, 0
        %v828 = vsel %vm764, 1, 0
        %v829 = vsel %vm765, 1, 0
        %v830 = vsel %vm766, 1, 0
        %v831 = vsel %vm767, 1, 0
        %v832 = vsel %vm768, 1, 0
        %v833 = vsel %vm769, 1, 0
        %v834 = vsel %vm770, 1, 0
        %v835 = vsel %vm771, 1, 0
        %v836 = vsel %vm772, 1, 0
        %v837 = vsel %vm773, 1, 0
        %v838 = vsel %vm774, 1, 0
        %v839 = vsel %vm775, 1, 0
        %v840 = vsel %vm776, 1, 0
        %v841 = vsel %vm777, 1, 0
        %v842 = vsel %vm778, 1, 0
        %v843 = vsel %vm779, 1, 0
        %v844 = vsel %vm780, 1, 0
        %v845 = vsel %vm781, 1, 0
        %v846 = vsel %vm782, 1, 0
        %v847 = vsel %vm783, 1, 0
        %v848 = vsel %vm784, 1, 0
        %v849 = vsel %vm785, 1, 0
        %v850 = vsel %vm786, 1, 0
        %v851 = vsel %vm787, 1, 0
        %v852 = vsel %vm788, 1, 0
        %v853 = vsel %vm789, 1, 0
        %v854 = vsel %vm790, 1, 0
        %v855 = vsel %vm791, 1, 0
        %v856 = vsel %vm792, 1, 0
        %v857 = vsel %vm793, 1, 0
        %v858 = vsel %vm794, 1, 0
        %v859 = vsel %vm795, 1, 0
        %v860 = vsel %vm796, 1, 0
        %v861 = vsel %vm797, 1, 0
        %v862 = vsel %vm798, 1, 0
        %v863 = vsel %vm799, 1, 0
        %v864 = vsel %vm800, 1, 0
        %v865 = vsel %vm801, 1, 0
        %v866 = vcvt.s32.f32 %v802
        %v867 = vcvt.s32.f32 %v803
        %v868 = vcvt.s32.f32 %v804
        %v869 = vcvt.s32.f32 %v805
        %v870 = vcvt.s32.f32 %v806
        %v871 = vcvt.s32.f32 %v807
        %v872 = vcvt.s32.f32 %v808
        %v873 = vcvt.s32.f32 %v809
        %v874 = vcvt.s32.f32 %v810
        %v875 = vcvt.s32.f32 %v811
        %v876 = vcvt.s32.f32 %v812
        %v877 = vcvt.s32.f32 %v813
        %v878 = vcvt.s32.f32 %v814
        %v879 = vcvt.s32.f32 %v815
        %v880 = vcvt.s32.f32 %v816
        %v881 = vcvt.s32.f32 %v817
        %v882 = vcvt.s32.f32 %v818
        %v883 = vcvt.s32.f32 %v819
        %v884 = vcvt.s32.f32 %v820
        %v885 = vcvt.s32.f32 %v821
        %v886 = vcvt.s32.f32 %v822
        %v887 = vcvt.s32.f32 %v823
        %v888 = vcvt.s32.f32 %v824
        %v889 = vcvt.s32.f32 %v825
        %v890 = vcvt.s32.f32 %v826
        %v891 = vcvt.s32.f32 %v827
        %v892 = vcvt.s32.f32 %v828
        %v893 = vcvt.s32.f32 %v829
        %v894 = vcvt.s32.f32 %v830
        %v895 = vcvt.s32.f32 %v831
        %v896 = vcvt.s32.f32 %v832
        %v897 = vcvt.s32.f32 %v833
        %v898 = vcvt.s32.f32 %v834
        %v899 = vcvt.s32.f32 %v835
        %v900 = vcvt.s32.f32 %v836
        %v901 = vcvt.s32.f32 %v837
        %v902 = vcvt.s32.f32 %v838
        %v903 = vcvt.s32.f32 %v839
        %v904 = vcvt.s32.f32 %v840
        %v905 = vcvt.s32.f32 %v841
        %v906 = vcvt.s32.f32 %v842
        %v907 = vcvt.s32.f32 %v843
        %v908 = vcvt.s32.f32 %v844
        %v909 = vcvt.s32.f32 %v845
        %v910 = vcvt.s32.f32 %v846
        %v911 = vcvt.s32.f32 %v847
        %v912 = vcvt.s32.f32 %v848
        %v913 = vcvt.s32.f32 %v849
        %v914 = vcvt.s32.f32 %v850
        %v915 = vcvt.s32.f32 %v851
        %v916 = vcvt.s32.f32 %v852
        %v917 = vcvt.s32.f32 %v853
        %v918 = vcvt.s32.f32 %v854
        %v919 = vcvt.s32.f32 %v855
        %v920 = vcvt.s32.f32 %v856
        %v921 = vcvt.s32.f32 %v857
        %v922 = vcvt.s32.f32 %v858
        %v923 = vcvt.s32.f32 %v859
        %v924 = vcvt.s32.f32 %v860
        %v925 = vcvt.s32.f32 %v861
        %v926 = vcvt.s32.f32 %v862
        %v927 = vcvt.s32.f32 %v863
        %v928 = vcvt.s32.f32 %v864
        %v929 = vcvt.s32.f32 %v865
        %v930 = vadd.f32 %v866, 0.0
        %v931 = vadd.f32 %v867, 0.0
        %v932 = vadd.f32 %v868, 0.0
        %v933 = vadd.f32 %v869, 0.0
        %v934 = vadd.f32 %v870, 0.0
        %v935 = vadd.f32 %v871, 0.0
        %v936 = vadd.f32 %v872, 0.0
        %v937 = vadd.f32 %v873, 0.0
        %v938 = vadd.f32 %v874, 0.0
        %v939 = vadd.f32 %v875, 0.0
        %v940 = vadd.f32 %v876, 0.0
        %v941 = vadd.f32 %v877, 0.0
        %v942 = vadd.f32 %v878, 0.0
        %v943 = vadd.f32 %v879, 0.0
        %v944 = vadd.f32 %v880, 0.0
        %v945 = vadd.f32 %v881, 0.0
        %v946 = vadd.f32 %v882, 0.0
        %v947 = vadd.f32 %v883, 0.0
        %v948 = vadd.f32 %v884, 0.0
        %v949 = vadd.f32 %v885, 0.0
        %v950 = vadd.f32 %v886, 0.0
        %v951 = vadd.f32 %v887, 0.0
        %v952 = vadd.f32 %v888, 0.0
        %v953 = vadd.f32 %v889, 0.0
        %v954 = vadd.f32 %v890, 0.0
        %v955 = vadd.f32 %v891, 0.0
        %v956 = vadd.f32 %v892, 0.0
        %v957 = vadd.f32 %v893, 0.0
        %v958 = vadd.f32 %v894, 0.0
        %v959 = vadd.f32 %v895, 0.0
        %v960 = vadd.f32 %v896, 0.0
        %v961 = vadd.f32 %v897, 0.0
        %v962 = vadd.f32 %v898, 0.0
        %v963 = vadd.f32 %v899, 0.0
        %v964 = vadd.f32 %v900, 0.0
        %v965 = vadd.f32 %v901, 0.0
        %v966 = vadd.f32 %v902, 0.0
        %v967 = vadd.f32 %v903, 0.0
        %v968 = vadd.f32 %v904, 0.0
        %v969 = vadd.f32 %v905, 0.0
        %v970 = vadd.f32 %v906, 0.0
        %v971 = vadd.f32 %v907, 0.0
        %v972 = vadd.f32 %v908, 0.0
        %v973 = vadd.f32 %v909, 0.0
        %v974 = vadd.f32 %v910, 0.0
        %v975 = vadd.f32 %v911, 0.0
        %v976 = vadd.f32 %v912, 0.0
        %v977 = vadd.f32 %v913, 0.0
        %v978 = vadd.f32 %v914, 0.0
        %v979 = vadd.f32 %v915, 0.0
        %v980 = vadd.f32 %v916, 0.0
        %v981 = vadd.f32 %v917, 0.0
        %v982 = vadd.f32 %v918, 0.0
        %v983 = vadd.f32 %v919, 0.0
        %v984 = vadd.f32 %v920, 0.0
        %v985 = vadd.f32 %v921, 0.0
        %v986 = vadd.f32 %v922, 0.0
        %v987 = vadd.f32 %v923, 0.0
        %v988 = vadd.f32 %v924, 0.0
        %v989 = vadd.f32 %v925, 0.0
        %v990 = vadd.f32 %v926, 0.0
        %v991 = vadd.f32 %v927, 0.0
        %v992 = vadd.f32 %v928, 0.0
        %v993 = vadd.f32 %v929, 0.0
        %994 = vset.pattern.permute.xlu0 1
        %995 = vperm.xlu0 %994, %v527
        %v996 = vpop.permute.xlu0 %995
        %997 = vset.pattern.permute.xlu0 1
        %998 = vperm.xlu0 %997, %v528
        %v999 = vpop.permute.xlu0 %998
        %1000 = vset.pattern.permute.xlu0 1
        %1001 = vperm.xlu0 %1000, %v529
        %v1002 = vpop.permute.xlu0 %1001
        %1003 = vset.pattern.permute.xlu0 1
        %1004 = vperm.xlu0 %1003, %v530
        %v1005 = vpop.permute.xlu0 %1004
        %1006 = vset.pattern.permute.xlu0 1
        %1007 = vperm.xlu0 %1006, %v531
        %v1008 = vpop.permute.xlu0 %1007
        %1009 = vset.pattern.permute.xlu0 1
        %1010 = vperm.xlu0 %1009, %v532
        %v1011 = vpop.permute.xlu0 %1010
        %1012 = vset.pattern.permute.xlu0 1
        %1013 = vperm.xlu0 %1012, %v533
        %v1014 = vpop.permute.xlu0 %1013
        %1015 = vset.pattern.permute.xlu0 1
        %1016 = vperm.xlu0 %1015, %v534
        %v1017 = vpop.permute.xlu0 %1016
        %1018 = vset.pattern.permute.xlu0 1
        %1019 = vperm.xlu0 %1018, %v535
        %v1020 = vpop.permute.xlu0 %1019
        %1021 = vset.pattern.permute.xlu0 1
        %1022 = vperm.xlu0 %1021, %v536
        %v1023 = vpop.permute.xlu0 %1022
        %1024 = vset.pattern.permute.xlu0 1
        %1025 = vperm.xlu0 %1024, %v537
        %v1026 = vpop.permute.xlu0 %1025
        %1027 = vset.pattern.permute.xlu0 1
        %1028 = vperm.xlu0 %1027, %v538
        %v1029 = vpop.permute.xlu0 %1028
        %1030 = vset.pattern.permute.xlu0 1
        %1031 = vperm.xlu0 %1030, %v539
        %v1032 = vpop.permute.xlu0 %1031
        %1033 = vset.pattern.permute.xlu0 1
        %1034 = vperm.xlu0 %1033, %v540
        %v1035 = vpop.permute.xlu0 %1034
        %1036 = vset.pattern.permute.xlu0 1
        %1037 = vperm.xlu0 %1036, %v541
        %v1038 = vpop.permute.xlu0 %1037
        %1039 = vset.pattern.permute.xlu0 1
        %1040 = vperm.xlu0 %1039, %v542
        %v1041 = vpop.permute.xlu0 %1040
        %vm1042 = vcmp.eq.s32.totalorder %v460, %v996
        %vm1043 = vcmp.eq.s32.totalorder %v543, %v996
        %vm1044 = vcmp.eq.s32.totalorder %v544, %v996
        %vm1045 = vcmp.eq.s32.totalorder %v545, %v996
        %vm1046 = vcmp.eq.s32.totalorder %v460, %v999
        %vm1047 = vcmp.eq.s32.totalorder %v543, %v999
        %vm1048 = vcmp.eq.s32.totalorder %v544, %v999
        %vm1049 = vcmp.eq.s32.totalorder %v545, %v999
        %vm1050 = vcmp.eq.s32.totalorder %v460, %v1002
        %vm1051 = vcmp.eq.s32.totalorder %v543, %v1002
        %vm1052 = vcmp.eq.s32.totalorder %v544, %v1002
        %vm1053 = vcmp.eq.s32.totalorder %v545, %v1002
        %vm1054 = vcmp.eq.s32.totalorder %v460, %v1005
        %vm1055 = vcmp.eq.s32.totalorder %v543, %v1005
        %vm1056 = vcmp.eq.s32.totalorder %v544, %v1005
        %vm1057 = vcmp.eq.s32.totalorder %v545, %v1005
        %vm1058 = vcmp.eq.s32.totalorder %v460, %v1008
        %vm1059 = vcmp.eq.s32.totalorder %v543, %v1008
        %vm1060 = vcmp.eq.s32.totalorder %v544, %v1008
        %vm1061 = vcmp.eq.s32.totalorder %v545, %v1008
        %vm1062 = vcmp.eq.s32.totalorder %v460, %v1011
        %vm1063 = vcmp.eq.s32.totalorder %v543, %v1011
        %vm1064 = vcmp.eq.s32.totalorder %v544, %v1011
        %vm1065 = vcmp.eq.s32.totalorder %v545, %v1011
        %vm1066 = vcmp.eq.s32.totalorder %v460, %v1014
        %vm1067 = vcmp.eq.s32.totalorder %v543, %v1014
        %vm1068 = vcmp.eq.s32.totalorder %v544, %v1014
        %vm1069 = vcmp.eq.s32.totalorder %v545, %v1014
        %vm1070 = vcmp.eq.s32.totalorder %v460, %v1017
        %vm1071 = vcmp.eq.s32.totalorder %v543, %v1017
        %vm1072 = vcmp.eq.s32.totalorder %v544, %v1017
        %vm1073 = vcmp.eq.s32.totalorder %v545, %v1017
        %vm1074 = vcmp.eq.s32.totalorder %v460, %v1020
        %vm1075 = vcmp.eq.s32.totalorder %v543, %v1020
        %vm1076 = vcmp.eq.s32.totalorder %v544, %v1020
        %vm1077 = vcmp.eq.s32.totalorder %v545, %v1020
        %vm1078 = vcmp.eq.s32.totalorder %v460, %v1023
        %vm1079 = vcmp.eq.s32.totalorder %v543, %v1023
        %vm1080 = vcmp.eq.s32.totalorder %v544, %v1023
        %vm1081 = vcmp.eq.s32.totalorder %v545, %v1023
        %vm1082 = vcmp.eq.s32.totalorder %v460, %v1026
        %vm1083 = vcmp.eq.s32.totalorder %v543, %v1026
        %vm1084 = vcmp.eq.s32.totalorder %v544, %v1026
        %vm1085 = vcmp.eq.s32.totalorder %v545, %v1026
        %vm1086 = vcmp.eq.s32.totalorder %v460, %v1029
        %vm1087 = vcmp.eq.s32.totalorder %v543, %v1029
        %vm1088 = vcmp.eq.s32.totalorder %v544, %v1029
        %vm1089 = vcmp.eq.s32.totalorder %v545, %v1029
        %vm1090 = vcmp.eq.s32.totalorder %v460, %v1032
        %vm1091 = vcmp.eq.s32.totalorder %v543, %v1032
        %vm1092 = vcmp.eq.s32.totalorder %v544, %v1032
        %vm1093 = vcmp.eq.s32.totalorder %v545, %v1032
        %vm1094 = vcmp.eq.s32.totalorder %v460, %v1035
        %vm1095 = vcmp.eq.s32.totalorder %v543, %v1035
        %vm1096 = vcmp.eq.s32.totalorder %v544, %v1035
        %vm1097 = vcmp.eq.s32.totalorder %v545, %v1035
        %vm1098 = vcmp.eq.s32.totalorder %v460, %v1038
        %vm1099 = vcmp.eq.s32.totalorder %v543, %v1038
        %vm1100 = vcmp.eq.s32.totalorder %v544, %v1038
        %vm1101 = vcmp.eq.s32.totalorder %v545, %v1038
        %vm1102 = vcmp.eq.s32.totalorder %v460, %v1041
        %vm1103 = vcmp.eq.s32.totalorder %v543, %v1041
        %vm1104 = vcmp.eq.s32.totalorder %v544, %v1041
        %vm1105 = vcmp.eq.s32.totalorder %v545, %v1041
        %1106 = vset.pattern.permute.xlu0 1
        %1107 = vperm.xlu0 %1106, %v658
        %v1108 = vpop.permute.xlu0 %1107
        %1109 = vset.pattern.permute.xlu0 1
        %1110 = vperm.xlu0 %1109, %v659
        %v1111 = vpop.permute.xlu0 %1110
        %1112 = vset.pattern.permute.xlu0 1
        %1113 = vperm.xlu0 %1112, %v660
        %v1114 = vpop.permute.xlu0 %1113
        %1115 = vset.pattern.permute.xlu0 1
        %1116 = vperm.xlu0 %1115, %v661
        %v1117 = vpop.permute.xlu0 %1116
        %1118 = vset.pattern.permute.xlu0 1
        %1119 = vperm.xlu0 %1118, %v662
        %v1120 = vpop.permute.xlu0 %1119
        %1121 = vset.pattern.permute.xlu0 1
        %1122 = vperm.xlu0 %1121, %v663
        %v1123 = vpop.permute.xlu0 %1122
        %1124 = vset.pattern.permute.xlu0 1
        %1125 = vperm.xlu0 %1124, %v664
        %v1126 = vpop.permute.xlu0 %1125
        %1127 = vset.pattern.permute.xlu0 1
        %1128 = vperm.xlu0 %1127, %v665
        %v1129 = vpop.permute.xlu0 %1128
        %1130 = vset.pattern.permute.xlu0 1
        %1131 = vperm.xlu0 %1130, %v666
        %v1132 = vpop.permute.xlu0 %1131
        %1133 = vset.pattern.permute.xlu0 1
        %1134 = vperm.xlu0 %1133, %v667
        %v1135 = vpop.permute.xlu0 %1134
        %1136 = vset.pattern.permute.xlu0 1
        %1137 = vperm.xlu0 %1136, %v668
        %v1138 = vpop.permute.xlu0 %1137
        %1139 = vset.pattern.permute.xlu0 1
        %1140 = vperm.xlu0 %1139, %v669
        %v1141 = vpop.permute.xlu0 %1140
        %1142 = vset.pattern.permute.xlu0 1
        %1143 = vperm.xlu0 %1142, %v670
        %v1144 = vpop.permute.xlu0 %1143
        %1145 = vset.pattern.permute.xlu0 1
        %1146 = vperm.xlu0 %1145, %v671
        %v1147 = vpop.permute.xlu0 %1146
        %1148 = vset.pattern.permute.xlu0 1
        %1149 = vperm.xlu0 %1148, %v672
        %v1150 = vpop.permute.xlu0 %1149
        %1151 = vset.pattern.permute.xlu0 1
        %1152 = vperm.xlu0 %1151, %v673
        %v1153 = vpop.permute.xlu0 %1152
        %vm1154 = vcmp.eq.s32.totalorder %v1108, 1
        %vm1155 = vcmp.eq.s32.totalorder %v1111, 1
        %vm1156 = vcmp.eq.s32.totalorder %v1114, 1
        %vm1157 = vcmp.eq.s32.totalorder %v1117, 1
        %vm1158 = vcmp.eq.s32.totalorder %v1120, 1
        %vm1159 = vcmp.eq.s32.totalorder %v1123, 1
        %vm1160 = vcmp.eq.s32.totalorder %v1126, 1
        %vm1161 = vcmp.eq.s32.totalorder %v1129, 1
        %vm1162 = vcmp.eq.s32.totalorder %v1132, 1
        %vm1163 = vcmp.eq.s32.totalorder %v1135, 1
        %vm1164 = vcmp.eq.s32.totalorder %v1138, 1
        %vm1165 = vcmp.eq.s32.totalorder %v1141, 1
        %vm1166 = vcmp.eq.s32.totalorder %v1144, 1
        %vm1167 = vcmp.eq.s32.totalorder %v1147, 1
        %vm1168 = vcmp.eq.s32.totalorder %v1150, 1
        %vm1169 = vcmp.eq.s32.totalorder %v1153, 1
        %vm1170 = vmand %vm1042, %vm1154
        %vm1171 = vmand %vm1043, %vm1154
        %vm1172 = vmand %vm1044, %vm1154
        %vm1173 = vmand %vm1045, %vm1154
        %vm1174 = vmand %vm1046, %vm1155
        %vm1175 = vmand %vm1047, %vm1155
        %vm1176 = vmand %vm1048, %vm1155
        %vm1177 = vmand %vm1049, %vm1155
        %vm1178 = vmand %vm1050, %vm1156
        %vm1179 = vmand %vm1051, %vm1156
        %vm1180 = vmand %vm1052, %vm1156
        %vm1181 = vmand %vm1053, %vm1156
        %vm1182 = vmand %vm1054, %vm1157
        %vm1183 = vmand %vm1055, %vm1157
        %vm1184 = vmand %vm1056, %vm1157
        %vm1185 = vmand %vm1057, %vm1157
        %vm1186 = vmand %vm1058, %vm1158
        %vm1187 = vmand %vm1059, %vm1158
        %vm1188 = vmand %vm1060, %vm1158
        %vm1189 = vmand %vm1061, %vm1158
        %vm1190 = vmand %vm1062, %vm1159
        %vm1191 = vmand %vm1063, %vm1159
        %vm1192 = vmand %vm1064, %vm1159
        %vm1193 = vmand %vm1065, %vm1159
        %vm1194 = vmand %vm1066, %vm1160
        %vm1195 = vmand %vm1067, %vm1160
        %vm1196 = vmand %vm1068, %vm1160
        %vm1197 = vmand %vm1069, %vm1160
        %vm1198 = vmand %vm1070, %vm1161
        %vm1199 = vmand %vm1071, %vm1161
        %vm1200 = vmand %vm1072, %vm1161
        %vm1201 = vmand %vm1073, %vm1161
        %vm1202 = vmand %vm1074, %vm1162
        %vm1203 = vmand %vm1075, %vm1162
        %vm1204 = vmand %vm1076, %vm1162
        %vm1205 = vmand %vm1077, %vm1162
        %vm1206 = vmand %vm1078, %vm1163
        %vm1207 = vmand %vm1079, %vm1163
        %vm1208 = vmand %vm1080, %vm1163
        %vm1209 = vmand %vm1081, %vm1163
        %vm1210 = vmand %vm1082, %vm1164
        %vm1211 = vmand %vm1083, %vm1164
        %vm1212 = vmand %vm1084, %vm1164
        %vm1213 = vmand %vm1085, %vm1164
        %vm1214 = vmand %vm1086, %vm1165
        %vm1215 = vmand %vm1087, %vm1165
        %vm1216 = vmand %vm1088, %vm1165
        %vm1217 = vmand %vm1089, %vm1165
        %vm1218 = vmand %vm1090, %vm1166
        %vm1219 = vmand %vm1091, %vm1166
        %vm1220 = vmand %vm1092, %vm1166
        %vm1221 = vmand %vm1093, %vm1166
        %vm1222 = vmand %vm1094, %vm1167
        %vm1223 = vmand %vm1095, %vm1167
        %vm1224 = vmand %vm1096, %vm1167
        %vm1225 = vmand %vm1097, %vm1167
        %vm1226 = vmand %vm1098, %vm1168
        %vm1227 = vmand %vm1099, %vm1168
        %vm1228 = vmand %vm1100, %vm1168
        %vm1229 = vmand %vm1101, %vm1168
        %vm1230 = vmand %vm1102, %vm1169
        %vm1231 = vmand %vm1103, %vm1169
        %vm1232 = vmand %vm1104, %vm1169
        %vm1233 = vmand %vm1105, %vm1169
        %v1234 = vsel %vm1170, 1, 0
        %v1235 = vsel %vm1171, 1, 0
        %v1236 = vsel %vm1172, 1, 0
        %v1237 = vsel %vm1173, 1, 0
        %v1238 = vsel %vm1174, 1, 0
        %v1239 = vsel %vm1175, 1, 0
        %v1240 = vsel %vm1176, 1, 0
        %v1241 = vsel %vm1177, 1, 0
        %v1242 = vsel %vm1178, 1, 0
        %v1243 = vsel %vm1179, 1, 0
        %v1244 = vsel %vm1180, 1, 0
        %v1245 = vsel %vm1181, 1, 0
        %v1246 = vsel %vm1182, 1, 0
        %v1247 = vsel %vm1183, 1, 0
        %v1248 = vsel %vm1184, 1, 0
        %v1249 = vsel %vm1185, 1, 0
        %v1250 = vsel %vm1186, 1, 0
        %v1251 = vsel %vm1187, 1, 0
        %v1252 = vsel %vm1188, 1, 0
        %v1253 = vsel %vm1189, 1, 0
        %v1254 = vsel %vm1190, 1, 0
        %v1255 = vsel %vm1191, 1, 0
        %v1256 = vsel %vm1192, 1, 0
        %v1257 = vsel %vm1193, 1, 0
        %v1258 = vsel %vm1194, 1, 0
        %v1259 = vsel %vm1195, 1, 0
        %v1260 = vsel %vm1196, 1, 0
        %v1261 = vsel %vm1197, 1, 0
        %v1262 = vsel %vm1198, 1, 0
        %v1263 = vsel %vm1199, 1, 0
        %v1264 = vsel %vm1200, 1, 0
        %v1265 = vsel %vm1201, 1, 0
        %v1266 = vsel %vm1202, 1, 0
        %v1267 = vsel %vm1203, 1, 0
        %v1268 = vsel %vm1204, 1, 0
        %v1269 = vsel %vm1205, 1, 0
        %v1270 = vsel %vm1206, 1, 0
        %v1271 = vsel %vm1207, 1, 0
        %v1272 = vsel %vm1208, 1, 0
        %v1273 = vsel %vm1209, 1, 0
        %v1274 = vsel %vm1210, 1, 0
        %v1275 = vsel %vm1211, 1, 0
        %v1276 = vsel %vm1212, 1, 0
        %v1277 = vsel %vm1213, 1, 0
        %v1278 = vsel %vm1214, 1, 0
        %v1279 = vsel %vm1215, 1, 0
        %v1280 = vsel %vm1216, 1, 0
        %v1281 = vsel %vm1217, 1, 0
        %v1282 = vsel %vm1218, 1, 0
        %v1283 = vsel %vm1219, 1, 0
        %v1284 = vsel %vm1220, 1, 0
        %v1285 = vsel %vm1221, 1, 0
        %v1286 = vsel %vm1222, 1, 0
        %v1287 = vsel %vm1223, 1, 0
        %v1288 = vsel %vm1224, 1, 0
        %v1289 = vsel %vm1225, 1, 0
        %v1290 = vsel %vm1226, 1, 0
        %v1291 = vsel %vm1227, 1, 0
        %v1292 = vsel %vm1228, 1, 0
        %v1293 = vsel %vm1229, 1, 0
        %v1294 = vsel %vm1230, 1, 0
        %v1295 = vsel %vm1231, 1, 0
        %v1296 = vsel %vm1232, 1, 0
        %v1297 = vsel %vm1233, 1, 0
        %v1298 = vcvt.s32.f32 %v1234
        %v1299 = vcvt.s32.f32 %v1235
        %v1300 = vcvt.s32.f32 %v1236
        %v1301 = vcvt.s32.f32 %v1237
        %v1302 = vcvt.s32.f32 %v1238
        %v1303 = vcvt.s32.f32 %v1239
        %v1304 = vcvt.s32.f32 %v1240
        %v1305 = vcvt.s32.f32 %v1241
        %v1306 = vcvt.s32.f32 %v1242
        %v1307 = vcvt.s32.f32 %v1243
        %v1308 = vcvt.s32.f32 %v1244
        %v1309 = vcvt.s32.f32 %v1245
        %v1310 = vcvt.s32.f32 %v1246
        %v1311 = vcvt.s32.f32 %v1247
        %v1312 = vcvt.s32.f32 %v1248
        %v1313 = vcvt.s32.f32 %v1249
        %v1314 = vcvt.s32.f32 %v1250
        %v1315 = vcvt.s32.f32 %v1251
        %v1316 = vcvt.s32.f32 %v1252
        %v1317 = vcvt.s32.f32 %v1253
        %v1318 = vcvt.s32.f32 %v1254
        %v1319 = vcvt.s32.f32 %v1255
        %v1320 = vcvt.s32.f32 %v1256
        %v1321 = vcvt.s32.f32 %v1257
        %v1322 = vcvt.s32.f32 %v1258
        %v1323 = vcvt.s32.f32 %v1259
        %v1324 = vcvt.s32.f32 %v1260
        %v1325 = vcvt.s32.f32 %v1261
        %v1326 = vcvt.s32.f32 %v1262
        %v1327 = vcvt.s32.f32 %v1263
        %v1328 = vcvt.s32.f32 %v1264
        %v1329 = vcvt.s32.f32 %v1265
        %v1330 = vcvt.s32.f32 %v1266
        %v1331 = vcvt.s32.f32 %v1267
        %v1332 = vcvt.s32.f32 %v1268
        %v1333 = vcvt.s32.f32 %v1269
        %v1334 = vcvt.s32.f32 %v1270
        %v1335 = vcvt.s32.f32 %v1271
        %v1336 = vcvt.s32.f32 %v1272
        %v1337 = vcvt.s32.f32 %v1273
        %v1338 = vcvt.s32.f32 %v1274
        %v1339 = vcvt.s32.f32 %v1275
        %v1340 = vcvt.s32.f32 %v1276
        %v1341 = vcvt.s32.f32 %v1277
        %v1342 = vcvt.s32.f32 %v1278
        %v1343 = vcvt.s32.f32 %v1279
        %v1344 = vcvt.s32.f32 %v1280
        %v1345 = vcvt.s32.f32 %v1281
        %v1346 = vcvt.s32.f32 %v1282
        %v1347 = vcvt.s32.f32 %v1283
        %v1348 = vcvt.s32.f32 %v1284
        %v1349 = vcvt.s32.f32 %v1285
        %v1350 = vcvt.s32.f32 %v1286
        %v1351 = vcvt.s32.f32 %v1287
        %v1352 = vcvt.s32.f32 %v1288
        %v1353 = vcvt.s32.f32 %v1289
        %v1354 = vcvt.s32.f32 %v1290
        %v1355 = vcvt.s32.f32 %v1291
        %v1356 = vcvt.s32.f32 %v1292
        %v1357 = vcvt.s32.f32 %v1293
        %v1358 = vcvt.s32.f32 %v1294
        %v1359 = vcvt.s32.f32 %v1295
        %v1360 = vcvt.s32.f32 %v1296
        %v1361 = vcvt.s32.f32 %v1297
        %v1362 = vadd.f32 %v930, %v1298
        %v1363 = vadd.f32 %v931, %v1299
        %v1364 = vadd.f32 %v932, %v1300
        %v1365 = vadd.f32 %v933, %v1301
        %v1366 = vadd.f32 %v934, %v1302
        %v1367 = vadd.f32 %v935, %v1303
        %v1368 = vadd.f32 %v936, %v1304
        %v1369 = vadd.f32 %v937, %v1305
        %v1370 = vadd.f32 %v938, %v1306
        %v1371 = vadd.f32 %v939, %v1307
        %v1372 = vadd.f32 %v940, %v1308
        %v1373 = vadd.f32 %v941, %v1309
        %v1374 = vadd.f32 %v942, %v1310
        %v1375 = vadd.f32 %v943, %v1311
        %v1376 = vadd.f32 %v944, %v1312
        %v1377 = vadd.f32 %v945, %v1313
        %v1378 = vadd.f32 %v946, %v1314
        %v1379 = vadd.f32 %v947, %v1315
        %v1380 = vadd.f32 %v948, %v1316
        %v1381 = vadd.f32 %v949, %v1317
        %v1382 = vadd.f32 %v950, %v1318
        %v1383 = vadd.f32 %v951, %v1319
        %v1384 = vadd.f32 %v952, %v1320
        %v1385 = vadd.f32 %v953, %v1321
        %v1386 = vadd.f32 %v954, %v1322
        %v1387 = vadd.f32 %v955, %v1323
        %v1388 = vadd.f32 %v956, %v1324
        %v1389 = vadd.f32 %v957, %v1325
        %v1390 = vadd.f32 %v958, %v1326
        %v1391 = vadd.f32 %v959, %v1327
        %v1392 = vadd.f32 %v960, %v1328
        %v1393 = vadd.f32 %v961, %v1329
        %v1394 = vadd.f32 %v962, %v1330
        %v1395 = vadd.f32 %v963, %v1331
        %v1396 = vadd.f32 %v964, %v1332
        %v1397 = vadd.f32 %v965, %v1333
        %v1398 = vadd.f32 %v966, %v1334
        %v1399 = vadd.f32 %v967, %v1335
        %v1400 = vadd.f32 %v968, %v1336
        %v1401 = vadd.f32 %v969, %v1337
        %v1402 = vadd.f32 %v970, %v1338
        %v1403 = vadd.f32 %v971, %v1339
        %v1404 = vadd.f32 %v972, %v1340
        %v1405 = vadd.f32 %v973, %v1341
        %v1406 = vadd.f32 %v974, %v1342
        %v1407 = vadd.f32 %v975, %v1343
        %v1408 = vadd.f32 %v976, %v1344
        %v1409 = vadd.f32 %v977, %v1345
        %v1410 = vadd.f32 %v978, %v1346
        %v1411 = vadd.f32 %v979, %v1347
        %v1412 = vadd.f32 %v980, %v1348
        %v1413 = vadd.f32 %v981, %v1349
        %v1414 = vadd.f32 %v982, %v1350
        %v1415 = vadd.f32 %v983, %v1351
        %v1416 = vadd.f32 %v984, %v1352
        %v1417 = vadd.f32 %v985, %v1353
        %v1418 = vadd.f32 %v986, %v1354
        %v1419 = vadd.f32 %v987, %v1355
        %v1420 = vadd.f32 %v988, %v1356
        %v1421 = vadd.f32 %v989, %v1357
        %v1422 = vadd.f32 %v990, %v1358
        %v1423 = vadd.f32 %v991, %v1359
        %v1424 = vadd.f32 %v992, %v1360
        %v1425 = vadd.f32 %v993, %v1361
        %1426 = vset.pattern.permute.xlu0 2
        %1427 = vperm.xlu0 %1426, %v527
        %v1428 = vpop.permute.xlu0 %1427
        %1429 = vset.pattern.permute.xlu0 2
        %1430 = vperm.xlu0 %1429, %v528
        %v1431 = vpop.permute.xlu0 %1430
        %1432 = vset.pattern.permute.xlu0 2
        %1433 = vperm.xlu0 %1432, %v529
        %v1434 = vpop.permute.xlu0 %1433
        %1435 = vset.pattern.permute.xlu0 2
        %1436 = vperm.xlu0 %1435, %v530
        %v1437 = vpop.permute.xlu0 %1436
        %1438 = vset.pattern.permute.xlu0 2
        %1439 = vperm.xlu0 %1438, %v531
        %v1440 = vpop.permute.xlu0 %1439
        %1441 = vset.pattern.permute.xlu0 2
        %1442 = vperm.xlu0 %1441, %v532
        %v1443 = vpop.permute.xlu0 %1442
        %1444 = vset.pattern.permute.xlu0 2
        %1445 = vperm.xlu0 %1444, %v533
        %v1446 = vpop.permute.xlu0 %1445
        %1447 = vset.pattern.permute.xlu0 2
        %1448 = vperm.xlu0 %1447, %v534
        %v1449 = vpop.permute.xlu0 %1448
        %1450 = vset.pattern.permute.xlu0 2
        %1451 = vperm.xlu0 %1450, %v535
        %v1452 = vpop.permute.xlu0 %1451
        %1453 = vset.pattern.permute.xlu0 2
        %1454 = vperm.xlu0 %1453, %v536
        %v1455 = vpop.permute.xlu0 %1454
        %1456 = vset.pattern.permute.xlu0 2
        %1457 = vperm.xlu0 %1456, %v537
        %v1458 = vpop.permute.xlu0 %1457
        %1459 = vset.pattern.permute.xlu0 2
        %1460 = vperm.xlu0 %1459, %v538
        %v1461 = vpop.permute.xlu0 %1460
        %1462 = vset.pattern.permute.xlu0 2
        %1463 = vperm.xlu0 %1462, %v539
        %v1464 = vpop.permute.xlu0 %1463
        %1465 = vset.pattern.permute.xlu0 2
        %1466 = vperm.xlu0 %1465, %v540
        %v1467 = vpop.permute.xlu0 %1466
        %1468 = vset.pattern.permute.xlu0 2
        %1469 = vperm.xlu0 %1468, %v541
        %v1470 = vpop.permute.xlu0 %1469
        %1471 = vset.pattern.permute.xlu0 2
        %1472 = vperm.xlu0 %1471, %v542
        %v1473 = vpop.permute.xlu0 %1472
        %vm1474 = vcmp.eq.s32.totalorder %v460, %v1428
        %vm1475 = vcmp.eq.s32.totalorder %v543, %v1428
        %vm1476 = vcmp.eq.s32.totalorder %v544, %v1428
        %vm1477 = vcmp.eq.s32.totalorder %v545, %v1428
        %vm1478 = vcmp.eq.s32.totalorder %v460, %v1431
        %vm1479 = vcmp.eq.s32.totalorder %v543, %v1431
        %vm1480 = vcmp.eq.s32.totalorder %v544, %v1431
        %vm1481 = vcmp.eq.s32.totalorder %v545, %v1431
        %vm1482 = vcmp.eq.s32.totalorder %v460, %v1434
        %vm1483 = vcmp.eq.s32.totalorder %v543, %v1434
        %vm1484 = vcmp.eq.s32.totalorder %v544, %v1434
        %vm1485 = vcmp.eq.s32.totalorder %v545, %v1434
        %vm1486 = vcmp.eq.s32.totalorder %v460, %v1437
        %vm1487 = vcmp.eq.s32.totalorder %v543, %v1437
        %vm1488 = vcmp.eq.s32.totalorder %v544, %v1437
        %vm1489 = vcmp.eq.s32.totalorder %v545, %v1437
        %vm1490 = vcmp.eq.s32.totalorder %v460, %v1440
        %vm1491 = vcmp.eq.s32.totalorder %v543, %v1440
        %vm1492 = vcmp.eq.s32.totalorder %v544, %v1440
        %vm1493 = vcmp.eq.s32.totalorder %v545, %v1440
        %vm1494 = vcmp.eq.s32.totalorder %v460, %v1443
        %vm1495 = vcmp.eq.s32.totalorder %v543, %v1443
        %vm1496 = vcmp.eq.s32.totalorder %v544, %v1443
        %vm1497 = vcmp.eq.s32.totalorder %v545, %v1443
        %vm1498 = vcmp.eq.s32.totalorder %v460, %v1446
        %vm1499 = vcmp.eq.s32.totalorder %v543, %v1446
        %vm1500 = vcmp.eq.s32.totalorder %v544, %v1446
        %vm1501 = vcmp.eq.s32.totalorder %v545, %v1446
        %vm1502 = vcmp.eq.s32.totalorder %v460, %v1449
        %vm1503 = vcmp.eq.s32.totalorder %v543, %v1449
        %vm1504 = vcmp.eq.s32.totalorder %v544, %v1449
        %vm1505 = vcmp.eq.s32.totalorder %v545, %v1449
        %vm1506 = vcmp.eq.s32.totalorder %v460, %v1452
        %vm1507 = vcmp.eq.s32.totalorder %v543, %v1452
        %vm1508 = vcmp.eq.s32.totalorder %v544, %v1452
        %vm1509 = vcmp.eq.s32.totalorder %v545, %v1452
        %vm1510 = vcmp.eq.s32.totalorder %v460, %v1455
        %vm1511 = vcmp.eq.s32.totalorder %v543, %v1455
        %vm1512 = vcmp.eq.s32.totalorder %v544, %v1455
        %vm1513 = vcmp.eq.s32.totalorder %v545, %v1455
        %vm1514 = vcmp.eq.s32.totalorder %v460, %v1458
        %vm1515 = vcmp.eq.s32.totalorder %v543, %v1458
        %vm1516 = vcmp.eq.s32.totalorder %v544, %v1458
        %vm1517 = vcmp.eq.s32.totalorder %v545, %v1458
        %vm1518 = vcmp.eq.s32.totalorder %v460, %v1461
        %vm1519 = vcmp.eq.s32.totalorder %v543, %v1461
        %vm1520 = vcmp.eq.s32.totalorder %v544, %v1461
        %vm1521 = vcmp.eq.s32.totalorder %v545, %v1461
        %vm1522 = vcmp.eq.s32.totalorder %v460, %v1464
        %vm1523 = vcmp.eq.s32.totalorder %v543, %v1464
        %vm1524 = vcmp.eq.s32.totalorder %v544, %v1464
        %vm1525 = vcmp.eq.s32.totalorder %v545, %v1464
        %vm1526 = vcmp.eq.s32.totalorder %v460, %v1467
        %vm1527 = vcmp.eq.s32.totalorder %v543, %v1467
        %vm1528 = vcmp.eq.s32.totalorder %v544, %v1467
        %vm1529 = vcmp.eq.s32.totalorder %v545, %v1467
        %vm1530 = vcmp.eq.s32.totalorder %v460, %v1470
        %vm1531 = vcmp.eq.s32.totalorder %v543, %v1470
        %vm1532 = vcmp.eq.s32.totalorder %v544, %v1470
        %vm1533 = vcmp.eq.s32.totalorder %v545, %v1470
        %vm1534 = vcmp.eq.s32.totalorder %v460, %v1473
        %vm1535 = vcmp.eq.s32.totalorder %v543, %v1473
        %vm1536 = vcmp.eq.s32.totalorder %v544, %v1473
        %vm1537 = vcmp.eq.s32.totalorder %v545, %v1473
        %1538 = vset.pattern.permute.xlu0 2
        %1539 = vperm.xlu0 %1538, %v658
        %v1540 = vpop.permute.xlu0 %1539
        %1541 = vset.pattern.permute.xlu0 2
        %1542 = vperm.xlu0 %1541, %v659
        %v1543 = vpop.permute.xlu0 %1542
        %1544 = vset.pattern.permute.xlu0 2
        %1545 = vperm.xlu0 %1544, %v660
        %v1546 = vpop.permute.xlu0 %1545
        %1547 = vset.pattern.permute.xlu0 2
        %1548 = vperm.xlu0 %1547, %v661
        %v1549 = vpop.permute.xlu0 %1548
        %1550 = vset.pattern.permute.xlu0 2
        %1551 = vperm.xlu0 %1550, %v662
        %v1552 = vpop.permute.xlu0 %1551
        %1553 = vset.pattern.permute.xlu0 2
        %1554 = vperm.xlu0 %1553, %v663
        %v1555 = vpop.permute.xlu0 %1554
        %1556 = vset.pattern.permute.xlu0 2
        %1557 = vperm.xlu0 %1556, %v664
        %v1558 = vpop.permute.xlu0 %1557
        %1559 = vset.pattern.permute.xlu0 2
        %1560 = vperm.xlu0 %1559, %v665
        %v1561 = vpop.permute.xlu0 %1560
        %1562 = vset.pattern.permute.xlu0 2
        %1563 = vperm.xlu0 %1562, %v666
        %v1564 = vpop.permute.xlu0 %1563
        %1565 = vset.pattern.permute.xlu0 2
        %1566 = vperm.xlu0 %1565, %v667
        %v1567 = vpop.permute.xlu0 %1566
        %1568 = vset.pattern.permute.xlu0 2
        %1569 = vperm.xlu0 %1568, %v668
        %v1570 = vpop.permute.xlu0 %1569
        %1571 = vset.pattern.permute.xlu0 2
        %1572 = vperm.xlu0 %1571, %v669
        %v1573 = vpop.permute.xlu0 %1572
        %1574 = vset.pattern.permute.xlu0 2
        %1575 = vperm.xlu0 %1574, %v670
        %v1576 = vpop.permute.xlu0 %1575
        %1577 = vset.pattern.permute.xlu0 2
        %1578 = vperm.xlu0 %1577, %v671
        %v1579 = vpop.permute.xlu0 %1578
        %1580 = vset.pattern.permute.xlu0 2
        %1581 = vperm.xlu0 %1580, %v672
        %v1582 = vpop.permute.xlu0 %1581
        %1583 = vset.pattern.permute.xlu0 2
        %1584 = vperm.xlu0 %1583, %v673
        %v1585 = vpop.permute.xlu0 %1584
        %vm1586 = vcmp.eq.s32.totalorder %v1540, 1
        %vm1587 = vcmp.eq.s32.totalorder %v1543, 1
        %vm1588 = vcmp.eq.s32.totalorder %v1546, 1
        %vm1589 = vcmp.eq.s32.totalorder %v1549, 1
        %vm1590 = vcmp.eq.s32.totalorder %v1552, 1
        %vm1591 = vcmp.eq.s32.totalorder %v1555, 1
        %vm1592 = vcmp.eq.s32.totalorder %v1558, 1
        %vm1593 = vcmp.eq.s32.totalorder %v1561, 1
        %vm1594 = vcmp.eq.s32.totalorder %v1564, 1
        %vm1595 = vcmp.eq.s32.totalorder %v1567, 1
        %vm1596 = vcmp.eq.s32.totalorder %v1570, 1
        %vm1597 = vcmp.eq.s32.totalorder %v1573, 1
        %vm1598 = vcmp.eq.s32.totalorder %v1576, 1
        %vm1599 = vcmp.eq.s32.totalorder %v1579, 1
        %vm1600 = vcmp.eq.s32.totalorder %v1582, 1
        %vm1601 = vcmp.eq.s32.totalorder %v1585, 1
        %vm1602 = vmand %vm1474, %vm1586
        %vm1603 = vmand %vm1475, %vm1586
        %vm1604 = vmand %vm1476, %vm1586
        %vm1605 = vmand %vm1477, %vm1586
        %vm1606 = vmand %vm1478, %vm1587
        %vm1607 = vmand %vm1479, %vm1587
        %vm1608 = vmand %vm1480, %vm1587
        %vm1609 = vmand %vm1481, %vm1587
        %vm1610 = vmand %vm1482, %vm1588
        %vm1611 = vmand %vm1483, %vm1588
        %vm1612 = vmand %vm1484, %vm1588
        %vm1613 = vmand %vm1485, %vm1588
        %vm1614 = vmand %vm1486, %vm1589
        %vm1615 = vmand %vm1487, %vm1589
        %vm1616 = vmand %vm1488, %vm1589
        %vm1617 = vmand %vm1489, %vm1589
        %vm1618 = vmand %vm1490, %vm1590
        %vm1619 = vmand %vm1491, %vm1590
        %vm1620 = vmand %vm1492, %vm1590
        %vm1621 = vmand %vm1493, %vm1590
        %vm1622 = vmand %vm1494, %vm1591
        %vm1623 = vmand %vm1495, %vm1591
        %vm1624 = vmand %vm1496, %vm1591
        %vm1625 = vmand %vm1497, %vm1591
        %vm1626 = vmand %vm1498, %vm1592
        %vm1627 = vmand %vm1499, %vm1592
        %vm1628 = vmand %vm1500, %vm1592
        %vm1629 = vmand %vm1501, %vm1592
        %vm1630 = vmand %vm1502, %vm1593
        %vm1631 = vmand %vm1503, %vm1593
        %vm1632 = vmand %vm1504, %vm1593
        %vm1633 = vmand %vm1505, %vm1593
        %vm1634 = vmand %vm1506, %vm1594
        %vm1635 = vmand %vm1507, %vm1594
        %vm1636 = vmand %vm1508, %vm1594
        %vm1637 = vmand %vm1509, %vm1594
        %vm1638 = vmand %vm1510, %vm1595
        %vm1639 = vmand %vm1511, %vm1595
        %vm1640 = vmand %vm1512, %vm1595
        %vm1641 = vmand %vm1513, %vm1595
        %vm1642 = vmand %vm1514, %vm1596
        %vm1643 = vmand %vm1515, %vm1596
        %vm1644 = vmand %vm1516, %vm1596
        %vm1645 = vmand %vm1517, %vm1596
        %vm1646 = vmand %vm1518, %vm1597
        %vm1647 = vmand %vm1519, %vm1597
        %vm1648 = vmand %vm1520, %vm1597
        %vm1649 = vmand %vm1521, %vm1597
        %vm1650 = vmand %vm1522, %vm1598
        %vm1651 = vmand %vm1523, %vm1598
        %vm1652 = vmand %vm1524, %vm1598
        %vm1653 = vmand %vm1525, %vm1598
        %vm1654 = vmand %vm1526, %vm1599
        %vm1655 = vmand %vm1527, %vm1599
        %vm1656 = vmand %vm1528, %vm1599
        %vm1657 = vmand %vm1529, %vm1599
        %vm1658 = vmand %vm1530, %vm1600
        %vm1659 = vmand %vm1531, %vm1600
        %vm1660 = vmand %vm1532, %vm1600
        %vm1661 = vmand %vm1533, %vm1600
        %vm1662 = vmand %vm1534, %vm1601
        %vm1663 = vmand %vm1535, %vm1601
        %vm1664 = vmand %vm1536, %vm1601
        %vm1665 = vmand %vm1537, %vm1601
        %v1666 = vsel %vm1602, 1, 0
        %v1667 = vsel %vm1603, 1, 0
        %v1668 = vsel %vm1604, 1, 0
        %v1669 = vsel %vm1605, 1, 0
        %v1670 = vsel %vm1606, 1, 0
        %v1671 = vsel %vm1607, 1, 0
        %v1672 = vsel %vm1608, 1, 0
        %v1673 = vsel %vm1609, 1, 0
        %v1674 = vsel %vm1610, 1, 0
        %v1675 = vsel %vm1611, 1, 0
        %v1676 = vsel %vm1612, 1, 0
        %v1677 = vsel %vm1613, 1, 0
        %v1678 = vsel %vm1614, 1, 0
        %v1679 = vsel %vm1615, 1, 0
        %v1680 = vsel %vm1616, 1, 0
        %v1681 = vsel %vm1617, 1, 0
        %v1682 = vsel %vm1618, 1, 0
        %v1683 = vsel %vm1619, 1, 0
        %v1684 = vsel %vm1620, 1, 0
        %v1685 = vsel %vm1621, 1, 0
        %v1686 = vsel %vm1622, 1, 0
        %v1687 = vsel %vm1623, 1, 0
        %v1688 = vsel %vm1624, 1, 0
        %v1689 = vsel %vm1625, 1, 0
        %v1690 = vsel %vm1626, 1, 0
        %v1691 = vsel %vm1627, 1, 0
        %v1692 = vsel %vm1628, 1, 0
        %v1693 = vsel %vm1629, 1, 0
        %v1694 = vsel %vm1630, 1, 0
        %v1695 = vsel %vm1631, 1, 0
        %v1696 = vsel %vm1632, 1, 0
        %v1697 = vsel %vm1633, 1, 0
        %v1698 = vsel %vm1634, 1, 0
        %v1699 = vsel %vm1635, 1, 0
        %v1700 = vsel %vm1636, 1, 0
        %v1701 = vsel %vm1637, 1, 0
        %v1702 = vsel %vm1638, 1, 0
        %v1703 = vsel %vm1639, 1, 0
        %v1704 = vsel %vm1640, 1, 0
        %v1705 = vsel %vm1641, 1, 0
        %v1706 = vsel %vm1642, 1, 0
        %v1707 = vsel %vm1643, 1, 0
        %v1708 = vsel %vm1644, 1, 0
        %v1709 = vsel %vm1645, 1, 0
        %v1710 = vsel %vm1646, 1, 0
        %v1711 = vsel %vm1647, 1, 0
        %v1712 = vsel %vm1648, 1, 0
        %v1713 = vsel %vm1649, 1, 0
        %v1714 = vsel %vm1650, 1, 0
        %v1715 = vsel %vm1651, 1, 0
        %v1716 = vsel %vm1652, 1, 0
        %v1717 = vsel %vm1653, 1, 0
        %v1718 = vsel %vm1654, 1, 0
        %v1719 = vsel %vm1655, 1, 0
        %v1720 = vsel %vm1656, 1, 0
        %v1721 = vsel %vm1657, 1, 0
        %v1722 = vsel %vm1658, 1, 0
        %v1723 = vsel %vm1659, 1, 0
        %v1724 = vsel %vm1660, 1, 0
        %v1725 = vsel %vm1661, 1, 0
        %v1726 = vsel %vm1662, 1, 0
        %v1727 = vsel %vm1663, 1, 0
        %v1728 = vsel %vm1664, 1, 0
        %v1729 = vsel %vm1665, 1, 0
        %v1730 = vcvt.s32.f32 %v1666
        %v1731 = vcvt.s32.f32 %v1667
        %v1732 = vcvt.s32.f32 %v1668
        %v1733 = vcvt.s32.f32 %v1669
        %v1734 = vcvt.s32.f32 %v1670
        %v1735 = vcvt.s32.f32 %v1671
        %v1736 = vcvt.s32.f32 %v1672
        %v1737 = vcvt.s32.f32 %v1673
        %v1738 = vcvt.s32.f32 %v1674
        %v1739 = vcvt.s32.f32 %v1675
        %v1740 = vcvt.s32.f32 %v1676
        %v1741 = vcvt.s32.f32 %v1677
        %v1742 = vcvt.s32.f32 %v1678
        %v1743 = vcvt.s32.f32 %v1679
        %v1744 = vcvt.s32.f32 %v1680
        %v1745 = vcvt.s32.f32 %v1681
        %v1746 = vcvt.s32.f32 %v1682
        %v1747 = vcvt.s32.f32 %v1683
        %v1748 = vcvt.s32.f32 %v1684
        %v1749 = vcvt.s32.f32 %v1685
        %v1750 = vcvt.s32.f32 %v1686
        %v1751 = vcvt.s32.f32 %v1687
        %v1752 = vcvt.s32.f32 %v1688
        %v1753 = vcvt.s32.f32 %v1689
        %v1754 = vcvt.s32.f32 %v1690
        %v1755 = vcvt.s32.f32 %v1691
        %v1756 = vcvt.s32.f32 %v1692
        %v1757 = vcvt.s32.f32 %v1693
        %v1758 = vcvt.s32.f32 %v1694
        %v1759 = vcvt.s32.f32 %v1695
        %v1760 = vcvt.s32.f32 %v1696
        %v1761 = vcvt.s32.f32 %v1697
        %v1762 = vcvt.s32.f32 %v1698
        %v1763 = vcvt.s32.f32 %v1699
        %v1764 = vcvt.s32.f32 %v1700
        %v1765 = vcvt.s32.f32 %v1701
        %v1766 = vcvt.s32.f32 %v1702
        %v1767 = vcvt.s32.f32 %v1703
        %v1768 = vcvt.s32.f32 %v1704
        %v1769 = vcvt.s32.f32 %v1705
        %v1770 = vcvt.s32.f32 %v1706
        %v1771 = vcvt.s32.f32 %v1707
        %v1772 = vcvt.s32.f32 %v1708
        %v1773 = vcvt.s32.f32 %v1709
        %v1774 = vcvt.s32.f32 %v1710
        %v1775 = vcvt.s32.f32 %v1711
        %v1776 = vcvt.s32.f32 %v1712
        %v1777 = vcvt.s32.f32 %v1713
        %v1778 = vcvt.s32.f32 %v1714
        %v1779 = vcvt.s32.f32 %v1715
        %v1780 = vcvt.s32.f32 %v1716
        %v1781 = vcvt.s32.f32 %v1717
        %v1782 = vcvt.s32.f32 %v1718
        %v1783 = vcvt.s32.f32 %v1719
        %v1784 = vcvt.s32.f32 %v1720
        %v1785 = vcvt.s32.f32 %v1721
        %v1786 = vcvt.s32.f32 %v1722
        %v1787 = vcvt.s32.f32 %v1723
        %v1788 = vcvt.s32.f32 %v1724
        %v1789 = vcvt.s32.f32 %v1725
        %v1790 = vcvt.s32.f32 %v1726
        %v1791 = vcvt.s32.f32 %v1727
        %v1792 = vcvt.s32.f32 %v1728
        %v1793 = vcvt.s32.f32 %v1729
        %v1794 = vadd.f32 %v1362, %v1730
        %v1795 = vadd.f32 %v1363, %v1731
        %v1796 = vadd.f32 %v1364, %v1732
        %v1797 = vadd.f32 %v1365, %v1733
        %v1798 = vadd.f32 %v1366, %v1734
        %v1799 = vadd.f32 %v1367, %v1735
        %v1800 = vadd.f32 %v1368, %v1736
        %v1801 = vadd.f32 %v1369, %v1737
        %v1802 = vadd.f32 %v1370, %v1738
        %v1803 = vadd.f32 %v1371, %v1739
        %v1804 = vadd.f32 %v1372, %v1740
        %v1805 = vadd.f32 %v1373, %v1741
        %v1806 = vadd.f32 %v1374, %v1742
        %v1807 = vadd.f32 %v1375, %v1743
        %v1808 = vadd.f32 %v1376, %v1744
        %v1809 = vadd.f32 %v1377, %v1745
        %v1810 = vadd.f32 %v1378, %v1746
        %v1811 = vadd.f32 %v1379, %v1747
        %v1812 = vadd.f32 %v1380, %v1748
        %v1813 = vadd.f32 %v1381, %v1749
        %v1814 = vadd.f32 %v1382, %v1750
        %v1815 = vadd.f32 %v1383, %v1751
        %v1816 = vadd.f32 %v1384, %v1752
        %v1817 = vadd.f32 %v1385, %v1753
        %v1818 = vadd.f32 %v1386, %v1754
        %v1819 = vadd.f32 %v1387, %v1755
        %v1820 = vadd.f32 %v1388, %v1756
        %v1821 = vadd.f32 %v1389, %v1757
        %v1822 = vadd.f32 %v1390, %v1758
        %v1823 = vadd.f32 %v1391, %v1759
        %v1824 = vadd.f32 %v1392, %v1760
        %v1825 = vadd.f32 %v1393, %v1761
        %v1826 = vadd.f32 %v1394, %v1762
        %v1827 = vadd.f32 %v1395, %v1763
        %v1828 = vadd.f32 %v1396, %v1764
        %v1829 = vadd.f32 %v1397, %v1765
        %v1830 = vadd.f32 %v1398, %v1766
        %v1831 = vadd.f32 %v1399, %v1767
        %v1832 = vadd.f32 %v1400, %v1768
        %v1833 = vadd.f32 %v1401, %v1769
        %v1834 = vadd.f32 %v1402, %v1770
        %v1835 = vadd.f32 %v1403, %v1771
        %v1836 = vadd.f32 %v1404, %v1772
        %v1837 = vadd.f32 %v1405, %v1773
        %v1838 = vadd.f32 %v1406, %v1774
        %v1839 = vadd.f32 %v1407, %v1775
        %v1840 = vadd.f32 %v1408, %v1776
        %v1841 = vadd.f32 %v1409, %v1777
        %v1842 = vadd.f32 %v1410, %v1778
        %v1843 = vadd.f32 %v1411, %v1779
        %v1844 = vadd.f32 %v1412, %v1780
        %v1845 = vadd.f32 %v1413, %v1781
        %v1846 = vadd.f32 %v1414, %v1782
        %v1847 = vadd.f32 %v1415, %v1783
        %v1848 = vadd.f32 %v1416, %v1784
        %v1849 = vadd.f32 %v1417, %v1785
        %v1850 = vadd.f32 %v1418, %v1786
        %v1851 = vadd.f32 %v1419, %v1787
        %v1852 = vadd.f32 %v1420, %v1788
        %v1853 = vadd.f32 %v1421, %v1789
        %v1854 = vadd.f32 %v1422, %v1790
        %v1855 = vadd.f32 %v1423, %v1791
        %v1856 = vadd.f32 %v1424, %v1792
        %v1857 = vadd.f32 %v1425, %v1793
        %1858 = vset.pattern.permute.xlu0 3
        %1859 = vperm.xlu0 %1858, %v527
        %v1860 = vpop.permute.xlu0 %1859
        %1861 = vset.pattern.permute.xlu0 3
        %1862 = vperm.xlu0 %1861, %v528
        %v1863 = vpop.permute.xlu0 %1862
        %1864 = vset.pattern.permute.xlu0 3
        %1865 = vperm.xlu0 %1864, %v529
        %v1866 = vpop.permute.xlu0 %1865
        %1867 = vset.pattern.permute.xlu0 3
        %1868 = vperm.xlu0 %1867, %v530
        %v1869 = vpop.permute.xlu0 %1868
        %1870 = vset.pattern.permute.xlu0 3
        %1871 = vperm.xlu0 %1870, %v531
        %v1872 = vpop.permute.xlu0 %1871
        %1873 = vset.pattern.permute.xlu0 3
        %1874 = vperm.xlu0 %1873, %v532
        %v1875 = vpop.permute.xlu0 %1874
        %1876 = vset.pattern.permute.xlu0 3
        %1877 = vperm.xlu0 %1876, %v533
        %v1878 = vpop.permute.xlu0 %1877
        %1879 = vset.pattern.permute.xlu0 3
        %1880 = vperm.xlu0 %1879, %v534
        %v1881 = vpop.permute.xlu0 %1880
        %1882 = vset.pattern.permute.xlu0 3
        %1883 = vperm.xlu0 %1882, %v535
        %v1884 = vpop.permute.xlu0 %1883
        %1885 = vset.pattern.permute.xlu0 3
        %1886 = vperm.xlu0 %1885, %v536
        %v1887 = vpop.permute.xlu0 %1886
        %1888 = vset.pattern.permute.xlu0 3
        %1889 = vperm.xlu0 %1888, %v537
        %v1890 = vpop.permute.xlu0 %1889
        %1891 = vset.pattern.permute.xlu0 3
        %1892 = vperm.xlu0 %1891, %v538
        %v1893 = vpop.permute.xlu0 %1892
        %1894 = vset.pattern.permute.xlu0 3
        %1895 = vperm.xlu0 %1894, %v539
        %v1896 = vpop.permute.xlu0 %1895
        %1897 = vset.pattern.permute.xlu0 3
        %1898 = vperm.xlu0 %1897, %v540
        %v1899 = vpop.permute.xlu0 %1898
        %1900 = vset.pattern.permute.xlu0 3
        %1901 = vperm.xlu0 %1900, %v541
        %v1902 = vpop.permute.xlu0 %1901
        %1903 = vset.pattern.permute.xlu0 3
        %1904 = vperm.xlu0 %1903, %v542
        %v1905 = vpop.permute.xlu0 %1904
        %vm1906 = vcmp.eq.s32.totalorder %v460, %v1860
        %vm1907 = vcmp.eq.s32.totalorder %v543, %v1860
        %vm1908 = vcmp.eq.s32.totalorder %v544, %v1860
        %vm1909 = vcmp.eq.s32.totalorder %v545, %v1860
        %vm1910 = vcmp.eq.s32.totalorder %v460, %v1863
        %vm1911 = vcmp.eq.s32.totalorder %v543, %v1863
        %vm1912 = vcmp.eq.s32.totalorder %v544, %v1863
        %vm1913 = vcmp.eq.s32.totalorder %v545, %v1863
        %vm1914 = vcmp.eq.s32.totalorder %v460, %v1866
        %vm1915 = vcmp.eq.s32.totalorder %v543, %v1866
        %vm1916 = vcmp.eq.s32.totalorder %v544, %v1866
        %vm1917 = vcmp.eq.s32.totalorder %v545, %v1866
        %vm1918 = vcmp.eq.s32.totalorder %v460, %v1869
        %vm1919 = vcmp.eq.s32.totalorder %v543, %v1869
        %vm1920 = vcmp.eq.s32.totalorder %v544, %v1869
        %vm1921 = vcmp.eq.s32.totalorder %v545, %v1869
        %vm1922 = vcmp.eq.s32.totalorder %v460, %v1872
        %vm1923 = vcmp.eq.s32.totalorder %v543, %v1872
        %vm1924 = vcmp.eq.s32.totalorder %v544, %v1872
        %vm1925 = vcmp.eq.s32.totalorder %v545, %v1872
        %vm1926 = vcmp.eq.s32.totalorder %v460, %v1875
        %vm1927 = vcmp.eq.s32.totalorder %v543, %v1875
        %vm1928 = vcmp.eq.s32.totalorder %v544, %v1875
        %vm1929 = vcmp.eq.s32.totalorder %v545, %v1875
        %vm1930 = vcmp.eq.s32.totalorder %v460, %v1878
        %vm1931 = vcmp.eq.s32.totalorder %v543, %v1878
        %vm1932 = vcmp.eq.s32.totalorder %v544, %v1878
        %vm1933 = vcmp.eq.s32.totalorder %v545, %v1878
        %vm1934 = vcmp.eq.s32.totalorder %v460, %v1881
        %vm1935 = vcmp.eq.s32.totalorder %v543, %v1881
        %vm1936 = vcmp.eq.s32.totalorder %v544, %v1881
        %vm1937 = vcmp.eq.s32.totalorder %v545, %v1881
        %vm1938 = vcmp.eq.s32.totalorder %v460, %v1884
        %vm1939 = vcmp.eq.s32.totalorder %v543, %v1884
        %vm1940 = vcmp.eq.s32.totalorder %v544, %v1884
        %vm1941 = vcmp.eq.s32.totalorder %v545, %v1884
        %vm1942 = vcmp.eq.s32.totalorder %v460, %v1887
        %vm1943 = vcmp.eq.s32.totalorder %v543, %v1887
        %vm1944 = vcmp.eq.s32.totalorder %v544, %v1887
        %vm1945 = vcmp.eq.s32.totalorder %v545, %v1887
        %vm1946 = vcmp.eq.s32.totalorder %v460, %v1890
        %vm1947 = vcmp.eq.s32.totalorder %v543, %v1890
        %vm1948 = vcmp.eq.s32.totalorder %v544, %v1890
        %vm1949 = vcmp.eq.s32.totalorder %v545, %v1890
        %vm1950 = vcmp.eq.s32.totalorder %v460, %v1893
        %vm1951 = vcmp.eq.s32.totalorder %v543, %v1893
        %vm1952 = vcmp.eq.s32.totalorder %v544, %v1893
        %vm1953 = vcmp.eq.s32.totalorder %v545, %v1893
        %vm1954 = vcmp.eq.s32.totalorder %v460, %v1896
        %vm1955 = vcmp.eq.s32.totalorder %v543, %v1896
        %vm1956 = vcmp.eq.s32.totalorder %v544, %v1896
        %vm1957 = vcmp.eq.s32.totalorder %v545, %v1896
        %vm1958 = vcmp.eq.s32.totalorder %v460, %v1899
        %vm1959 = vcmp.eq.s32.totalorder %v543, %v1899
        %vm1960 = vcmp.eq.s32.totalorder %v544, %v1899
        %vm1961 = vcmp.eq.s32.totalorder %v545, %v1899
        %vm1962 = vcmp.eq.s32.totalorder %v460, %v1902
        %vm1963 = vcmp.eq.s32.totalorder %v543, %v1902
        %vm1964 = vcmp.eq.s32.totalorder %v544, %v1902
        %vm1965 = vcmp.eq.s32.totalorder %v545, %v1902
        %vm1966 = vcmp.eq.s32.totalorder %v460, %v1905
        %vm1967 = vcmp.eq.s32.totalorder %v543, %v1905
        %vm1968 = vcmp.eq.s32.totalorder %v544, %v1905
        %vm1969 = vcmp.eq.s32.totalorder %v545, %v1905
        %1970 = vset.pattern.permute.xlu0 3
        %1971 = vperm.xlu0 %1970, %v658
        %v1972 = vpop.permute.xlu0 %1971
        %1973 = vset.pattern.permute.xlu0 3
        %1974 = vperm.xlu0 %1973, %v659
        %v1975 = vpop.permute.xlu0 %1974
        %1976 = vset.pattern.permute.xlu0 3
        %1977 = vperm.xlu0 %1976, %v660
        %v1978 = vpop.permute.xlu0 %1977
        %1979 = vset.pattern.permute.xlu0 3
        %1980 = vperm.xlu0 %1979, %v661
        %v1981 = vpop.permute.xlu0 %1980
        %1982 = vset.pattern.permute.xlu0 3
        %1983 = vperm.xlu0 %1982, %v662
        %v1984 = vpop.permute.xlu0 %1983
        %1985 = vset.pattern.permute.xlu0 3
        %1986 = vperm.xlu0 %1985, %v663
        %v1987 = vpop.permute.xlu0 %1986
        %1988 = vset.pattern.permute.xlu0 3
        %1989 = vperm.xlu0 %1988, %v664
        %v1990 = vpop.permute.xlu0 %1989
        %1991 = vset.pattern.permute.xlu0 3
        %1992 = vperm.xlu0 %1991, %v665
        %v1993 = vpop.permute.xlu0 %1992
        %1994 = vset.pattern.permute.xlu0 3
        %1995 = vperm.xlu0 %1994, %v666
        %v1996 = vpop.permute.xlu0 %1995
        %1997 = vset.pattern.permute.xlu0 3
        %1998 = vperm.xlu0 %1997, %v667
        %v1999 = vpop.permute.xlu0 %1998
        %2000 = vset.pattern.permute.xlu0 3
        %2001 = vperm.xlu0 %2000, %v668
        %v2002 = vpop.permute.xlu0 %2001
        %2003 = vset.pattern.permute.xlu0 3
        %2004 = vperm.xlu0 %2003, %v669
        %v2005 = vpop.permute.xlu0 %2004
        %2006 = vset.pattern.permute.xlu0 3
        %2007 = vperm.xlu0 %2006, %v670
        %v2008 = vpop.permute.xlu0 %2007
        %2009 = vset.pattern.permute.xlu0 3
        %2010 = vperm.xlu0 %2009, %v671
        %v2011 = vpop.permute.xlu0 %2010
        %2012 = vset.pattern.permute.xlu0 3
        %2013 = vperm.xlu0 %2012, %v672
        %v2014 = vpop.permute.xlu0 %2013
        %2015 = vset.pattern.permute.xlu0 3
        %2016 = vperm.xlu0 %2015, %v673
        %v2017 = vpop.permute.xlu0 %2016
        %vm2018 = vcmp.eq.s32.totalorder %v1972, 1
        %vm2019 = vcmp.eq.s32.totalorder %v1975, 1
        %vm2020 = vcmp.eq.s32.totalorder %v1978, 1
        %vm2021 = vcmp.eq.s32.totalorder %v1981, 1
        %vm2022 = vcmp.eq.s32.totalorder %v1984, 1
        %vm2023 = vcmp.eq.s32.totalorder %v1987, 1
        %vm2024 = vcmp.eq.s32.totalorder %v1990, 1
        %vm2025 = vcmp.eq.s32.totalorder %v1993, 1
        %vm2026 = vcmp.eq.s32.totalorder %v1996, 1
        %vm2027 = vcmp.eq.s32.totalorder %v1999, 1
        %vm2028 = vcmp.eq.s32.totalorder %v2002, 1
        %vm2029 = vcmp.eq.s32.totalorder %v2005, 1
        %vm2030 = vcmp.eq.s32.totalorder %v2008, 1
        %vm2031 = vcmp.eq.s32.totalorder %v2011, 1
        %vm2032 = vcmp.eq.s32.totalorder %v2014, 1
        %vm2033 = vcmp.eq.s32.totalorder %v2017, 1
        %vm2034 = vmand %vm1906, %vm2018
        %vm2035 = vmand %vm1907, %vm2018
        %vm2036 = vmand %vm1908, %vm2018
        %vm2037 = vmand %vm1909, %vm2018
        %vm2038 = vmand %vm1910, %vm2019
        %vm2039 = vmand %vm1911, %vm2019
        %vm2040 = vmand %vm1912, %vm2019
        %vm2041 = vmand %vm1913, %vm2019
        %vm2042 = vmand %vm1914, %vm2020
        %vm2043 = vmand %vm1915, %vm2020
        %vm2044 = vmand %vm1916, %vm2020
        %vm2045 = vmand %vm1917, %vm2020
        %vm2046 = vmand %vm1918, %vm2021
        %vm2047 = vmand %vm1919, %vm2021
        %vm2048 = vmand %vm1920, %vm2021
        %vm2049 = vmand %vm1921, %vm2021
        %vm2050 = vmand %vm1922, %vm2022
        %vm2051 = vmand %vm1923, %vm2022
        %vm2052 = vmand %vm1924, %vm2022
        %vm2053 = vmand %vm1925, %vm2022
        %vm2054 = vmand %vm1926, %vm2023
        %vm2055 = vmand %vm1927, %vm2023
        %vm2056 = vmand %vm1928, %vm2023
        %vm2057 = vmand %vm1929, %vm2023
        %vm2058 = vmand %vm1930, %vm2024
        %vm2059 = vmand %vm1931, %vm2024
        %vm2060 = vmand %vm1932, %vm2024
        %vm2061 = vmand %vm1933, %vm2024
        %vm2062 = vmand %vm1934, %vm2025
        %vm2063 = vmand %vm1935, %vm2025
        %vm2064 = vmand %vm1936, %vm2025
        %vm2065 = vmand %vm1937, %vm2025
        %vm2066 = vmand %vm1938, %vm2026
        %vm2067 = vmand %vm1939, %vm2026
        %vm2068 = vmand %vm1940, %vm2026
        %vm2069 = vmand %vm1941, %vm2026
        %vm2070 = vmand %vm1942, %vm2027
        %vm2071 = vmand %vm1943, %vm2027
        %vm2072 = vmand %vm1944, %vm2027
        %vm2073 = vmand %vm1945, %vm2027
        %vm2074 = vmand %vm1946, %vm2028
        %vm2075 = vmand %vm1947, %vm2028
        %vm2076 = vmand %vm1948, %vm2028
        %vm2077 = vmand %vm1949, %vm2028
        %vm2078 = vmand %vm1950, %vm2029
        %vm2079 = vmand %vm1951, %vm2029
        %vm2080 = vmand %vm1952, %vm2029
        %vm2081 = vmand %vm1953, %vm2029
        %vm2082 = vmand %vm1954, %vm2030
        %vm2083 = vmand %vm1955, %vm2030
        %vm2084 = vmand %vm1956, %vm2030
        %vm2085 = vmand %vm1957, %vm2030
        %vm2086 = vmand %vm1958, %vm2031
        %vm2087 = vmand %vm1959, %vm2031
        %vm2088 = vmand %vm1960, %vm2031
        %vm2089 = vmand %vm1961, %vm2031
        %vm2090 = vmand %vm1962, %vm2032
        %vm2091 = vmand %vm1963, %vm2032
        %vm2092 = vmand %vm1964, %vm2032
        %vm2093 = vmand %vm1965, %vm2032
        %vm2094 = vmand %vm1966, %vm2033
        %vm2095 = vmand %vm1967, %vm2033
        %vm2096 = vmand %vm1968, %vm2033
        %vm2097 = vmand %vm1969, %vm2033
        %v2098 = vsel %vm2034, 1, 0
        %v2099 = vsel %vm2035, 1, 0
        %v2100 = vsel %vm2036, 1, 0
        %v2101 = vsel %vm2037, 1, 0
        %v2102 = vsel %vm2038, 1, 0
        %v2103 = vsel %vm2039, 1, 0
        %v2104 = vsel %vm2040, 1, 0
        %v2105 = vsel %vm2041, 1, 0
        %v2106 = vsel %vm2042, 1, 0
        %v2107 = vsel %vm2043, 1, 0
        %v2108 = vsel %vm2044, 1, 0
        %v2109 = vsel %vm2045, 1, 0
        %v2110 = vsel %vm2046, 1, 0
        %v2111 = vsel %vm2047, 1, 0
        %v2112 = vsel %vm2048, 1, 0
        %v2113 = vsel %vm2049, 1, 0
        %v2114 = vsel %vm2050, 1, 0
        %v2115 = vsel %vm2051, 1, 0
        %v2116 = vsel %vm2052, 1, 0
        %v2117 = vsel %vm2053, 1, 0
        %v2118 = vsel %vm2054, 1, 0
        %v2119 = vsel %vm2055, 1, 0
        %v2120 = vsel %vm2056, 1, 0
        %v2121 = vsel %vm2057, 1, 0
        %v2122 = vsel %vm2058, 1, 0
        %v2123 = vsel %vm2059, 1, 0
        %v2124 = vsel %vm2060, 1, 0
        %v2125 = vsel %vm2061, 1, 0
        %v2126 = vsel %vm2062, 1, 0
        %v2127 = vsel %vm2063, 1, 0
        %v2128 = vsel %vm2064, 1, 0
        %v2129 = vsel %vm2065, 1, 0
        %v2130 = vsel %vm2066, 1, 0
        %v2131 = vsel %vm2067, 1, 0
        %v2132 = vsel %vm2068, 1, 0
        %v2133 = vsel %vm2069, 1, 0
        %v2134 = vsel %vm2070, 1, 0
        %v2135 = vsel %vm2071, 1, 0
        %v2136 = vsel %vm2072, 1, 0
        %v2137 = vsel %vm2073, 1, 0
        %v2138 = vsel %vm2074, 1, 0
        %v2139 = vsel %vm2075, 1, 0
        %v2140 = vsel %vm2076, 1, 0
        %v2141 = vsel %vm2077, 1, 0
        %v2142 = vsel %vm2078, 1, 0
        %v2143 = vsel %vm2079, 1, 0
        %v2144 = vsel %vm2080, 1, 0
        %v2145 = vsel %vm2081, 1, 0
        %v2146 = vsel %vm2082, 1, 0
        %v2147 = vsel %vm2083, 1, 0
        %v2148 = vsel %vm2084, 1, 0
        %v2149 = vsel %vm2085, 1, 0
        %v2150 = vsel %vm2086, 1, 0
        %v2151 = vsel %vm2087, 1, 0
        %v2152 = vsel %vm2088, 1, 0
        %v2153 = vsel %vm2089, 1, 0
        %v2154 = vsel %vm2090, 1, 0
        %v2155 = vsel %vm2091, 1, 0
        %v2156 = vsel %vm2092, 1, 0
        %v2157 = vsel %vm2093, 1, 0
        %v2158 = vsel %vm2094, 1, 0
        %v2159 = vsel %vm2095, 1, 0
        %v2160 = vsel %vm2096, 1, 0
        %v2161 = vsel %vm2097, 1, 0
        %v2162 = vcvt.s32.f32 %v2098
        %v2163 = vcvt.s32.f32 %v2099
        %v2164 = vcvt.s32.f32 %v2100
        %v2165 = vcvt.s32.f32 %v2101
        %v2166 = vcvt.s32.f32 %v2102
        %v2167 = vcvt.s32.f32 %v2103
        %v2168 = vcvt.s32.f32 %v2104
        %v2169 = vcvt.s32.f32 %v2105
        %v2170 = vcvt.s32.f32 %v2106
        %v2171 = vcvt.s32.f32 %v2107
        %v2172 = vcvt.s32.f32 %v2108
        %v2173 = vcvt.s32.f32 %v2109
        %v2174 = vcvt.s32.f32 %v2110
        %v2175 = vcvt.s32.f32 %v2111
        %v2176 = vcvt.s32.f32 %v2112
        %v2177 = vcvt.s32.f32 %v2113
        %v2178 = vcvt.s32.f32 %v2114
        %v2179 = vcvt.s32.f32 %v2115
        %v2180 = vcvt.s32.f32 %v2116
        %v2181 = vcvt.s32.f32 %v2117
        %v2182 = vcvt.s32.f32 %v2118
        %v2183 = vcvt.s32.f32 %v2119
        %v2184 = vcvt.s32.f32 %v2120
        %v2185 = vcvt.s32.f32 %v2121
        %v2186 = vcvt.s32.f32 %v2122
        %v2187 = vcvt.s32.f32 %v2123
        %v2188 = vcvt.s32.f32 %v2124
        %v2189 = vcvt.s32.f32 %v2125
        %v2190 = vcvt.s32.f32 %v2126
        %v2191 = vcvt.s32.f32 %v2127
        %v2192 = vcvt.s32.f32 %v2128
        %v2193 = vcvt.s32.f32 %v2129
        %v2194 = vcvt.s32.f32 %v2130
        %v2195 = vcvt.s32.f32 %v2131
        %v2196 = vcvt.s32.f32 %v2132
        %v2197 = vcvt.s32.f32 %v2133
        %v2198 = vcvt.s32.f32 %v2134
        %v2199 = vcvt.s32.f32 %v2135
        %v2200 = vcvt.s32.f32 %v2136
        %v2201 = vcvt.s32.f32 %v2137
        %v2202 = vcvt.s32.f32 %v2138
        %v2203 = vcvt.s32.f32 %v2139
        %v2204 = vcvt.s32.f32 %v2140
        %v2205 = vcvt.s32.f32 %v2141
        %v2206 = vcvt.s32.f32 %v2142
        %v2207 = vcvt.s32.f32 %v2143
        %v2208 = vcvt.s32.f32 %v2144
        %v2209 = vcvt.s32.f32 %v2145
        %v2210 = vcvt.s32.f32 %v2146
        %v2211 = vcvt.s32.f32 %v2147
        %v2212 = vcvt.s32.f32 %v2148
        %v2213 = vcvt.s32.f32 %v2149
        %v2214 = vcvt.s32.f32 %v2150
        %v2215 = vcvt.s32.f32 %v2151
        %v2216 = vcvt.s32.f32 %v2152
        %v2217 = vcvt.s32.f32 %v2153
        %v2218 = vcvt.s32.f32 %v2154
        %v2219 = vcvt.s32.f32 %v2155
        %v2220 = vcvt.s32.f32 %v2156
        %v2221 = vcvt.s32.f32 %v2157
        %v2222 = vcvt.s32.f32 %v2158
        %v2223 = vcvt.s32.f32 %v2159
        %v2224 = vcvt.s32.f32 %v2160
        %v2225 = vcvt.s32.f32 %v2161
        %v2226 = vadd.f32 %v1794, %v2162
        %v2227 = vadd.f32 %v1795, %v2163
        %v2228 = vadd.f32 %v1796, %v2164
        %v2229 = vadd.f32 %v1797, %v2165
        %v2230 = vadd.f32 %v1798, %v2166
        %v2231 = vadd.f32 %v1799, %v2167
        %v2232 = vadd.f32 %v1800, %v2168
        %v2233 = vadd.f32 %v1801, %v2169
        %v2234 = vadd.f32 %v1802, %v2170
        %v2235 = vadd.f32 %v1803, %v2171
        %v2236 = vadd.f32 %v1804, %v2172
        %v2237 = vadd.f32 %v1805, %v2173
        %v2238 = vadd.f32 %v1806, %v2174
        %v2239 = vadd.f32 %v1807, %v2175
        %v2240 = vadd.f32 %v1808, %v2176
        %v2241 = vadd.f32 %v1809, %v2177
        %v2242 = vadd.f32 %v1810, %v2178
        %v2243 = vadd.f32 %v1811, %v2179
        %v2244 = vadd.f32 %v1812, %v2180
        %v2245 = vadd.f32 %v1813, %v2181
        %v2246 = vadd.f32 %v1814, %v2182
        %v2247 = vadd.f32 %v1815, %v2183
        %v2248 = vadd.f32 %v1816, %v2184
        %v2249 = vadd.f32 %v1817, %v2185
        %v2250 = vadd.f32 %v1818, %v2186
        %v2251 = vadd.f32 %v1819, %v2187
        %v2252 = vadd.f32 %v1820, %v2188
        %v2253 = vadd.f32 %v1821, %v2189
        %v2254 = vadd.f32 %v1822, %v2190
        %v2255 = vadd.f32 %v1823, %v2191
        %v2256 = vadd.f32 %v1824, %v2192
        %v2257 = vadd.f32 %v1825, %v2193
        %v2258 = vadd.f32 %v1826, %v2194
        %v2259 = vadd.f32 %v1827, %v2195
        %v2260 = vadd.f32 %v1828, %v2196
        %v2261 = vadd.f32 %v1829, %v2197
        %v2262 = vadd.f32 %v1830, %v2198
        %v2263 = vadd.f32 %v1831, %v2199
        %v2264 = vadd.f32 %v1832, %v2200
        %v2265 = vadd.f32 %v1833, %v2201
        %v2266 = vadd.f32 %v1834, %v2202
        %v2267 = vadd.f32 %v1835, %v2203
        %v2268 = vadd.f32 %v1836, %v2204
        %v2269 = vadd.f32 %v1837, %v2205
        %v2270 = vadd.f32 %v1838, %v2206
        %v2271 = vadd.f32 %v1839, %v2207
        %v2272 = vadd.f32 %v1840, %v2208
        %v2273 = vadd.f32 %v1841, %v2209
        %v2274 = vadd.f32 %v1842, %v2210
        %v2275 = vadd.f32 %v1843, %v2211
        %v2276 = vadd.f32 %v1844, %v2212
        %v2277 = vadd.f32 %v1845, %v2213
        %v2278 = vadd.f32 %v1846, %v2214
        %v2279 = vadd.f32 %v1847, %v2215
        %v2280 = vadd.f32 %v1848, %v2216
        %v2281 = vadd.f32 %v1849, %v2217
        %v2282 = vadd.f32 %v1850, %v2218
        %v2283 = vadd.f32 %v1851, %v2219
        %v2284 = vadd.f32 %v1852, %v2220
        %v2285 = vadd.f32 %v1853, %v2221
        %v2286 = vadd.f32 %v1854, %v2222
        %v2287 = vadd.f32 %v1855, %v2223
        %v2288 = vadd.f32 %v1856, %v2224
        %v2289 = vadd.f32 %v1857, %v2225
        %2290 = vset.pattern.permute.xlu0 4
        %2291 = vperm.xlu0 %2290, %v527
        %v2292 = vpop.permute.xlu0 %2291
        %2293 = vset.pattern.permute.xlu0 4
        %2294 = vperm.xlu0 %2293, %v528
        %v2295 = vpop.permute.xlu0 %2294
        %2296 = vset.pattern.permute.xlu0 4
        %2297 = vperm.xlu0 %2296, %v529
        %v2298 = vpop.permute.xlu0 %2297
        %2299 = vset.pattern.permute.xlu0 4
        %2300 = vperm.xlu0 %2299, %v530
        %v2301 = vpop.permute.xlu0 %2300
        %2302 = vset.pattern.permute.xlu0 4
        %2303 = vperm.xlu0 %2302, %v531
        %v2304 = vpop.permute.xlu0 %2303
        %2305 = vset.pattern.permute.xlu0 4
        %2306 = vperm.xlu0 %2305, %v532
        %v2307 = vpop.permute.xlu0 %2306
        %2308 = vset.pattern.permute.xlu0 4
        %2309 = vperm.xlu0 %2308, %v533
        %v2310 = vpop.permute.xlu0 %2309
        %2311 = vset.pattern.permute.xlu0 4
        %2312 = vperm.xlu0 %2311, %v534
        %v2313 = vpop.permute.xlu0 %2312
        %2314 = vset.pattern.permute.xlu0 4
        %2315 = vperm.xlu0 %2314, %v535
        %v2316 = vpop.permute.xlu0 %2315
        %2317 = vset.pattern.permute.xlu0 4
        %2318 = vperm.xlu0 %2317, %v536
        %v2319 = vpop.permute.xlu0 %2318
        %2320 = vset.pattern.permute.xlu0 4
        %2321 = vperm.xlu0 %2320, %v537
        %v2322 = vpop.permute.xlu0 %2321
        %2323 = vset.pattern.permute.xlu0 4
        %2324 = vperm.xlu0 %2323, %v538
        %v2325 = vpop.permute.xlu0 %2324
        %2326 = vset.pattern.permute.xlu0 4
        %2327 = vperm.xlu0 %2326, %v539
        %v2328 = vpop.permute.xlu0 %2327
        %2329 = vset.pattern.permute.xlu0 4
        %2330 = vperm.xlu0 %2329, %v540
        %v2331 = vpop.permute.xlu0 %2330
        %2332 = vset.pattern.permute.xlu0 4
        %2333 = vperm.xlu0 %2332, %v541
        %v2334 = vpop.permute.xlu0 %2333
        %2335 = vset.pattern.permute.xlu0 4
        %2336 = vperm.xlu0 %2335, %v542
        %v2337 = vpop.permute.xlu0 %2336
        %vm2338 = vcmp.eq.s32.totalorder %v460, %v2292
        %vm2339 = vcmp.eq.s32.totalorder %v543, %v2292
        %vm2340 = vcmp.eq.s32.totalorder %v544, %v2292
        %vm2341 = vcmp.eq.s32.totalorder %v545, %v2292
        %vm2342 = vcmp.eq.s32.totalorder %v460, %v2295
        %vm2343 = vcmp.eq.s32.totalorder %v543, %v2295
        %vm2344 = vcmp.eq.s32.totalorder %v544, %v2295
        %vm2345 = vcmp.eq.s32.totalorder %v545, %v2295
        %vm2346 = vcmp.eq.s32.totalorder %v460, %v2298
        %vm2347 = vcmp.eq.s32.totalorder %v543, %v2298
        %vm2348 = vcmp.eq.s32.totalorder %v544, %v2298
        %vm2349 = vcmp.eq.s32.totalorder %v545, %v2298
        %vm2350 = vcmp.eq.s32.totalorder %v460, %v2301
        %vm2351 = vcmp.eq.s32.totalorder %v543, %v2301
        %vm2352 = vcmp.eq.s32.totalorder %v544, %v2301
        %vm2353 = vcmp.eq.s32.totalorder %v545, %v2301
        %vm2354 = vcmp.eq.s32.totalorder %v460, %v2304
        %vm2355 = vcmp.eq.s32.totalorder %v543, %v2304
        %vm2356 = vcmp.eq.s32.totalorder %v544, %v2304
        %vm2357 = vcmp.eq.s32.totalorder %v545, %v2304
        %vm2358 = vcmp.eq.s32.totalorder %v460, %v2307
        %vm2359 = vcmp.eq.s32.totalorder %v543, %v2307
        %vm2360 = vcmp.eq.s32.totalorder %v544, %v2307
        %vm2361 = vcmp.eq.s32.totalorder %v545, %v2307
        %vm2362 = vcmp.eq.s32.totalorder %v460, %v2310
        %vm2363 = vcmp.eq.s32.totalorder %v543, %v2310
        %vm2364 = vcmp.eq.s32.totalorder %v544, %v2310
        %vm2365 = vcmp.eq.s32.totalorder %v545, %v2310
        %vm2366 = vcmp.eq.s32.totalorder %v460, %v2313
        %vm2367 = vcmp.eq.s32.totalorder %v543, %v2313
        %vm2368 = vcmp.eq.s32.totalorder %v544, %v2313
        %vm2369 = vcmp.eq.s32.totalorder %v545, %v2313
        %vm2370 = vcmp.eq.s32.totalorder %v460, %v2316
        %vm2371 = vcmp.eq.s32.totalorder %v543, %v2316
        %vm2372 = vcmp.eq.s32.totalorder %v544, %v2316
        %vm2373 = vcmp.eq.s32.totalorder %v545, %v2316
        %vm2374 = vcmp.eq.s32.totalorder %v460, %v2319
        %vm2375 = vcmp.eq.s32.totalorder %v543, %v2319
        %vm2376 = vcmp.eq.s32.totalorder %v544, %v2319
        %vm2377 = vcmp.eq.s32.totalorder %v545, %v2319
        %vm2378 = vcmp.eq.s32.totalorder %v460, %v2322
        %vm2379 = vcmp.eq.s32.totalorder %v543, %v2322
        %vm2380 = vcmp.eq.s32.totalorder %v544, %v2322
        %vm2381 = vcmp.eq.s32.totalorder %v545, %v2322
        %vm2382 = vcmp.eq.s32.totalorder %v460, %v2325
        %vm2383 = vcmp.eq.s32.totalorder %v543, %v2325
        %vm2384 = vcmp.eq.s32.totalorder %v544, %v2325
        %vm2385 = vcmp.eq.s32.totalorder %v545, %v2325
        %vm2386 = vcmp.eq.s32.totalorder %v460, %v2328
        %vm2387 = vcmp.eq.s32.totalorder %v543, %v2328
        %vm2388 = vcmp.eq.s32.totalorder %v544, %v2328
        %vm2389 = vcmp.eq.s32.totalorder %v545, %v2328
        %vm2390 = vcmp.eq.s32.totalorder %v460, %v2331
        %vm2391 = vcmp.eq.s32.totalorder %v543, %v2331
        %vm2392 = vcmp.eq.s32.totalorder %v544, %v2331
        %vm2393 = vcmp.eq.s32.totalorder %v545, %v2331
        %vm2394 = vcmp.eq.s32.totalorder %v460, %v2334
        %vm2395 = vcmp.eq.s32.totalorder %v543, %v2334
        %vm2396 = vcmp.eq.s32.totalorder %v544, %v2334
        %vm2397 = vcmp.eq.s32.totalorder %v545, %v2334
        %vm2398 = vcmp.eq.s32.totalorder %v460, %v2337
        %vm2399 = vcmp.eq.s32.totalorder %v543, %v2337
        %vm2400 = vcmp.eq.s32.totalorder %v544, %v2337
        %vm2401 = vcmp.eq.s32.totalorder %v545, %v2337
        %2402 = vset.pattern.permute.xlu0 4
        %2403 = vperm.xlu0 %2402, %v658
        %v2404 = vpop.permute.xlu0 %2403
        %2405 = vset.pattern.permute.xlu0 4
        %2406 = vperm.xlu0 %2405, %v659
        %v2407 = vpop.permute.xlu0 %2406
        %2408 = vset.pattern.permute.xlu0 4
        %2409 = vperm.xlu0 %2408, %v660
        %v2410 = vpop.permute.xlu0 %2409
        %2411 = vset.pattern.permute.xlu0 4
        %2412 = vperm.xlu0 %2411, %v661
        %v2413 = vpop.permute.xlu0 %2412
        %2414 = vset.pattern.permute.xlu0 4
        %2415 = vperm.xlu0 %2414, %v662
        %v2416 = vpop.permute.xlu0 %2415
        %2417 = vset.pattern.permute.xlu0 4
        %2418 = vperm.xlu0 %2417, %v663
        %v2419 = vpop.permute.xlu0 %2418
        %2420 = vset.pattern.permute.xlu0 4
        %2421 = vperm.xlu0 %2420, %v664
        %v2422 = vpop.permute.xlu0 %2421
        %2423 = vset.pattern.permute.xlu0 4
        %2424 = vperm.xlu0 %2423, %v665
        %v2425 = vpop.permute.xlu0 %2424
        %2426 = vset.pattern.permute.xlu0 4
        %2427 = vperm.xlu0 %2426, %v666
        %v2428 = vpop.permute.xlu0 %2427
        %2429 = vset.pattern.permute.xlu0 4
        %2430 = vperm.xlu0 %2429, %v667
        %v2431 = vpop.permute.xlu0 %2430
        %2432 = vset.pattern.permute.xlu0 4
        %2433 = vperm.xlu0 %2432, %v668
        %v2434 = vpop.permute.xlu0 %2433
        %2435 = vset.pattern.permute.xlu0 4
        %2436 = vperm.xlu0 %2435, %v669
        %v2437 = vpop.permute.xlu0 %2436
        %2438 = vset.pattern.permute.xlu0 4
        %2439 = vperm.xlu0 %2438, %v670
        %v2440 = vpop.permute.xlu0 %2439
        %2441 = vset.pattern.permute.xlu0 4
        %2442 = vperm.xlu0 %2441, %v671
        %v2443 = vpop.permute.xlu0 %2442
        %2444 = vset.pattern.permute.xlu0 4
        %2445 = vperm.xlu0 %2444, %v672
        %v2446 = vpop.permute.xlu0 %2445
        %2447 = vset.pattern.permute.xlu0 4
        %2448 = vperm.xlu0 %2447, %v673
        %v2449 = vpop.permute.xlu0 %2448
        %vm2450 = vcmp.eq.s32.totalorder %v2404, 1
        %vm2451 = vcmp.eq.s32.totalorder %v2407, 1
        %vm2452 = vcmp.eq.s32.totalorder %v2410, 1
        %vm2453 = vcmp.eq.s32.totalorder %v2413, 1
        %vm2454 = vcmp.eq.s32.totalorder %v2416, 1
        %vm2455 = vcmp.eq.s32.totalorder %v2419, 1
        %vm2456 = vcmp.eq.s32.totalorder %v2422, 1
        %vm2457 = vcmp.eq.s32.totalorder %v2425, 1
        %vm2458 = vcmp.eq.s32.totalorder %v2428, 1
        %vm2459 = vcmp.eq.s32.totalorder %v2431, 1
        %vm2460 = vcmp.eq.s32.totalorder %v2434, 1
        %vm2461 = vcmp.eq.s32.totalorder %v2437, 1
        %vm2462 = vcmp.eq.s32.totalorder %v2440, 1
        %vm2463 = vcmp.eq.s32.totalorder %v2443, 1
        %vm2464 = vcmp.eq.s32.totalorder %v2446, 1
        %vm2465 = vcmp.eq.s32.totalorder %v2449, 1
        %vm2466 = vmand %vm2338, %vm2450
        %vm2467 = vmand %vm2339, %vm2450
        %vm2468 = vmand %vm2340, %vm2450
        %vm2469 = vmand %vm2341, %vm2450
        %vm2470 = vmand %vm2342, %vm2451
        %vm2471 = vmand %vm2343, %vm2451
        %vm2472 = vmand %vm2344, %vm2451
        %vm2473 = vmand %vm2345, %vm2451
        %vm2474 = vmand %vm2346, %vm2452
        %vm2475 = vmand %vm2347, %vm2452
        %vm2476 = vmand %vm2348, %vm2452
        %vm2477 = vmand %vm2349, %vm2452
        %vm2478 = vmand %vm2350, %vm2453
        %vm2479 = vmand %vm2351, %vm2453
        %vm2480 = vmand %vm2352, %vm2453
        %vm2481 = vmand %vm2353, %vm2453
        %vm2482 = vmand %vm2354, %vm2454
        %vm2483 = vmand %vm2355, %vm2454
        %vm2484 = vmand %vm2356, %vm2454
        %vm2485 = vmand %vm2357, %vm2454
        %vm2486 = vmand %vm2358, %vm2455
        %vm2487 = vmand %vm2359, %vm2455
        %vm2488 = vmand %vm2360, %vm2455
        %vm2489 = vmand %vm2361, %vm2455
        %vm2490 = vmand %vm2362, %vm2456
        %vm2491 = vmand %vm2363, %vm2456
        %vm2492 = vmand %vm2364, %vm2456
        %vm2493 = vmand %vm2365, %vm2456
        %vm2494 = vmand %vm2366, %vm2457
        %vm2495 = vmand %vm2367, %vm2457
        %vm2496 = vmand %vm2368, %vm2457
        %vm2497 = vmand %vm2369, %vm2457
        %vm2498 = vmand %vm2370, %vm2458
        %vm2499 = vmand %vm2371, %vm2458
        %vm2500 = vmand %vm2372, %vm2458
        %vm2501 = vmand %vm2373, %vm2458
        %vm2502 = vmand %vm2374, %vm2459
        %vm2503 = vmand %vm2375, %vm2459
        %vm2504 = vmand %vm2376, %vm2459
        %vm2505 = vmand %vm2377, %vm2459
        %vm2506 = vmand %vm2378, %vm2460
        %vm2507 = vmand %vm2379, %vm2460
        %vm2508 = vmand %vm2380, %vm2460
        %vm2509 = vmand %vm2381, %vm2460
        %vm2510 = vmand %vm2382, %vm2461
        %vm2511 = vmand %vm2383, %vm2461
        %vm2512 = vmand %vm2384, %vm2461
        %vm2513 = vmand %vm2385, %vm2461
        %vm2514 = vmand %vm2386, %vm2462
        %vm2515 = vmand %vm2387, %vm2462
        %vm2516 = vmand %vm2388, %vm2462
        %vm2517 = vmand %vm2389, %vm2462
        %vm2518 = vmand %vm2390, %vm2463
        %vm2519 = vmand %vm2391, %vm2463
        %vm2520 = vmand %vm2392, %vm2463
        %vm2521 = vmand %vm2393, %vm2463
        %vm2522 = vmand %vm2394, %vm2464
        %vm2523 = vmand %vm2395, %vm2464
        %vm2524 = vmand %vm2396, %vm2464
        %vm2525 = vmand %vm2397, %vm2464
        %vm2526 = vmand %vm2398, %vm2465
        %vm2527 = vmand %vm2399, %vm2465
        %vm2528 = vmand %vm2400, %vm2465
        %vm2529 = vmand %vm2401, %vm2465
        %v2530 = vsel %vm2466, 1, 0
        %v2531 = vsel %vm2467, 1, 0
        %v2532 = vsel %vm2468, 1, 0
        %v2533 = vsel %vm2469, 1, 0
        %v2534 = vsel %vm2470, 1, 0
        %v2535 = vsel %vm2471, 1, 0
        %v2536 = vsel %vm2472, 1, 0
        %v2537 = vsel %vm2473, 1, 0
        %v2538 = vsel %vm2474, 1, 0
        %v2539 = vsel %vm2475, 1, 0
        %v2540 = vsel %vm2476, 1, 0
        %v2541 = vsel %vm2477, 1, 0
        %v2542 = vsel %vm2478, 1, 0
        %v2543 = vsel %vm2479, 1, 0
        %v2544 = vsel %vm2480, 1, 0
        %v2545 = vsel %vm2481, 1, 0
        %v2546 = vsel %vm2482, 1, 0
        %v2547 = vsel %vm2483, 1, 0
        %v2548 = vsel %vm2484, 1, 0
        %v2549 = vsel %vm2485, 1, 0
        %v2550 = vsel %vm2486, 1, 0
        %v2551 = vsel %vm2487, 1, 0
        %v2552 = vsel %vm2488, 1, 0
        %v2553 = vsel %vm2489, 1, 0
        %v2554 = vsel %vm2490, 1, 0
        %v2555 = vsel %vm2491, 1, 0
        %v2556 = vsel %vm2492, 1, 0
        %v2557 = vsel %vm2493, 1, 0
        %v2558 = vsel %vm2494, 1, 0
        %v2559 = vsel %vm2495, 1, 0
        %v2560 = vsel %vm2496, 1, 0
        %v2561 = vsel %vm2497, 1, 0
        %v2562 = vsel %vm2498, 1, 0
        %v2563 = vsel %vm2499, 1, 0
        %v2564 = vsel %vm2500, 1, 0
        %v2565 = vsel %vm2501, 1, 0
        %v2566 = vsel %vm2502, 1, 0
        %v2567 = vsel %vm2503, 1, 0
        %v2568 = vsel %vm2504, 1, 0
        %v2569 = vsel %vm2505, 1, 0
        %v2570 = vsel %vm2506, 1, 0
        %v2571 = vsel %vm2507, 1, 0
        %v2572 = vsel %vm2508, 1, 0
        %v2573 = vsel %vm2509, 1, 0
        %v2574 = vsel %vm2510, 1, 0
        %v2575 = vsel %vm2511, 1, 0
        %v2576 = vsel %vm2512, 1, 0
        %v2577 = vsel %vm2513, 1, 0
        %v2578 = vsel %vm2514, 1, 0
        %v2579 = vsel %vm2515, 1, 0
        %v2580 = vsel %vm2516, 1, 0
        %v2581 = vsel %vm2517, 1, 0
        %v2582 = vsel %vm2518, 1, 0
        %v2583 = vsel %vm2519, 1, 0
        %v2584 = vsel %vm2520, 1, 0
        %v2585 = vsel %vm2521, 1, 0
        %v2586 = vsel %vm2522, 1, 0
        %v2587 = vsel %vm2523, 1, 0
        %v2588 = vsel %vm2524, 1, 0
        %v2589 = vsel %vm2525, 1, 0
        %v2590 = vsel %vm2526, 1, 0
        %v2591 = vsel %vm2527, 1, 0
        %v2592 = vsel %vm2528, 1, 0
        %v2593 = vsel %vm2529, 1, 0
        %v2594 = vcvt.s32.f32 %v2530
        %v2595 = vcvt.s32.f32 %v2531
        %v2596 = vcvt.s32.f32 %v2532
        %v2597 = vcvt.s32.f32 %v2533
        %v2598 = vcvt.s32.f32 %v2534
        %v2599 = vcvt.s32.f32 %v2535
        %v2600 = vcvt.s32.f32 %v2536
        %v2601 = vcvt.s32.f32 %v2537
        %v2602 = vcvt.s32.f32 %v2538
        %v2603 = vcvt.s32.f32 %v2539
        %v2604 = vcvt.s32.f32 %v2540
        %v2605 = vcvt.s32.f32 %v2541
        %v2606 = vcvt.s32.f32 %v2542
        %v2607 = vcvt.s32.f32 %v2543
        %v2608 = vcvt.s32.f32 %v2544
        %v2609 = vcvt.s32.f32 %v2545
        %v2610 = vcvt.s32.f32 %v2546
        %v2611 = vcvt.s32.f32 %v2547
        %v2612 = vcvt.s32.f32 %v2548
        %v2613 = vcvt.s32.f32 %v2549
        %v2614 = vcvt.s32.f32 %v2550
        %v2615 = vcvt.s32.f32 %v2551
        %v2616 = vcvt.s32.f32 %v2552
        %v2617 = vcvt.s32.f32 %v2553
        %v2618 = vcvt.s32.f32 %v2554
        %v2619 = vcvt.s32.f32 %v2555
        %v2620 = vcvt.s32.f32 %v2556
        %v2621 = vcvt.s32.f32 %v2557
        %v2622 = vcvt.s32.f32 %v2558
        %v2623 = vcvt.s32.f32 %v2559
        %v2624 = vcvt.s32.f32 %v2560
        %v2625 = vcvt.s32.f32 %v2561
        %v2626 = vcvt.s32.f32 %v2562
        %v2627 = vcvt.s32.f32 %v2563
        %v2628 = vcvt.s32.f32 %v2564
        %v2629 = vcvt.s32.f32 %v2565
        %v2630 = vcvt.s32.f32 %v2566
        %v2631 = vcvt.s32.f32 %v2567
        %v2632 = vcvt.s32.f32 %v2568
        %v2633 = vcvt.s32.f32 %v2569
        %v2634 = vcvt.s32.f32 %v2570
        %v2635 = vcvt.s32.f32 %v2571
        %v2636 = vcvt.s32.f32 %v2572
        %v2637 = vcvt.s32.f32 %v2573
        %v2638 = vcvt.s32.f32 %v2574
        %v2639 = vcvt.s32.f32 %v2575
        %v2640 = vcvt.s32.f32 %v2576
        %v2641 = vcvt.s32.f32 %v2577
        %v2642 = vcvt.s32.f32 %v2578
        %v2643 = vcvt.s32.f32 %v2579
        %v2644 = vcvt.s32.f32 %v2580
        %v2645 = vcvt.s32.f32 %v2581
        %v2646 = vcvt.s32.f32 %v2582
        %v2647 = vcvt.s32.f32 %v2583
        %v2648 = vcvt.s32.f32 %v2584
        %v2649 = vcvt.s32.f32 %v2585
        %v2650 = vcvt.s32.f32 %v2586
        %v2651 = vcvt.s32.f32 %v2587
        %v2652 = vcvt.s32.f32 %v2588
        %v2653 = vcvt.s32.f32 %v2589
        %v2654 = vcvt.s32.f32 %v2590
        %v2655 = vcvt.s32.f32 %v2591
        %v2656 = vcvt.s32.f32 %v2592
        %v2657 = vcvt.s32.f32 %v2593
        %v2658 = vadd.f32 %v2226, %v2594
        %v2659 = vadd.f32 %v2227, %v2595
        %v2660 = vadd.f32 %v2228, %v2596
        %v2661 = vadd.f32 %v2229, %v2597
        %v2662 = vadd.f32 %v2230, %v2598
        %v2663 = vadd.f32 %v2231, %v2599
        %v2664 = vadd.f32 %v2232, %v2600
        %v2665 = vadd.f32 %v2233, %v2601
        %v2666 = vadd.f32 %v2234, %v2602
        %v2667 = vadd.f32 %v2235, %v2603
        %v2668 = vadd.f32 %v2236, %v2604
        %v2669 = vadd.f32 %v2237, %v2605
        %v2670 = vadd.f32 %v2238, %v2606
        %v2671 = vadd.f32 %v2239, %v2607
        %v2672 = vadd.f32 %v2240, %v2608
        %v2673 = vadd.f32 %v2241, %v2609
        %v2674 = vadd.f32 %v2242, %v2610
        %v2675 = vadd.f32 %v2243, %v2611
        %v2676 = vadd.f32 %v2244, %v2612
        %v2677 = vadd.f32 %v2245, %v2613
        %v2678 = vadd.f32 %v2246, %v2614
        %v2679 = vadd.f32 %v2247, %v2615
        %v2680 = vadd.f32 %v2248, %v2616
        %v2681 = vadd.f32 %v2249, %v2617
        %v2682 = vadd.f32 %v2250, %v2618
        %v2683 = vadd.f32 %v2251, %v2619
        %v2684 = vadd.f32 %v2252, %v2620
        %v2685 = vadd.f32 %v2253, %v2621
        %v2686 = vadd.f32 %v2254, %v2622
        %v2687 = vadd.f32 %v2255, %v2623
        %v2688 = vadd.f32 %v2256, %v2624
        %v2689 = vadd.f32 %v2257, %v2625
        %v2690 = vadd.f32 %v2258, %v2626
        %v2691 = vadd.f32 %v2259, %v2627
        %v2692 = vadd.f32 %v2260, %v2628
        %v2693 = vadd.f32 %v2261, %v2629
        %v2694 = vadd.f32 %v2262, %v2630
        %v2695 = vadd.f32 %v2263, %v2631
        %v2696 = vadd.f32 %v2264, %v2632
        %v2697 = vadd.f32 %v2265, %v2633
        %v2698 = vadd.f32 %v2266, %v2634
        %v2699 = vadd.f32 %v2267, %v2635
        %v2700 = vadd.f32 %v2268, %v2636
        %v2701 = vadd.f32 %v2269, %v2637
        %v2702 = vadd.f32 %v2270, %v2638
        %v2703 = vadd.f32 %v2271, %v2639
        %v2704 = vadd.f32 %v2272, %v2640
        %v2705 = vadd.f32 %v2273, %v2641
        %v2706 = vadd.f32 %v2274, %v2642
        %v2707 = vadd.f32 %v2275, %v2643
        %v2708 = vadd.f32 %v2276, %v2644
        %v2709 = vadd.f32 %v2277, %v2645
        %v2710 = vadd.f32 %v2278, %v2646
        %v2711 = vadd.f32 %v2279, %v2647
        %v2712 = vadd.f32 %v2280, %v2648
        %v2713 = vadd.f32 %v2281, %v2649
        %v2714 = vadd.f32 %v2282, %v2650
        %v2715 = vadd.f32 %v2283, %v2651
        %v2716 = vadd.f32 %v2284, %v2652
        %v2717 = vadd.f32 %v2285, %v2653
        %v2718 = vadd.f32 %v2286, %v2654
        %v2719 = vadd.f32 %v2287, %v2655
        %v2720 = vadd.f32 %v2288, %v2656
        %v2721 = vadd.f32 %v2289, %v2657
        %2722 = vset.pattern.permute.xlu0 5
        %2723 = vperm.xlu0 %2722, %v527
        %v2724 = vpop.permute.xlu0 %2723
        %2725 = vset.pattern.permute.xlu0 5
        %2726 = vperm.xlu0 %2725, %v528
        %v2727 = vpop.permute.xlu0 %2726
        %2728 = vset.pattern.permute.xlu0 5
        %2729 = vperm.xlu0 %2728, %v529
        %v2730 = vpop.permute.xlu0 %2729
        %2731 = vset.pattern.permute.xlu0 5
        %2732 = vperm.xlu0 %2731, %v530
        %v2733 = vpop.permute.xlu0 %2732
        %2734 = vset.pattern.permute.xlu0 5
        %2735 = vperm.xlu0 %2734, %v531
        %v2736 = vpop.permute.xlu0 %2735
        %2737 = vset.pattern.permute.xlu0 5
        %2738 = vperm.xlu0 %2737, %v532
        %v2739 = vpop.permute.xlu0 %2738
        %2740 = vset.pattern.permute.xlu0 5
        %2741 = vperm.xlu0 %2740, %v533
        %v2742 = vpop.permute.xlu0 %2741
        %2743 = vset.pattern.permute.xlu0 5
        %2744 = vperm.xlu0 %2743, %v534
        %v2745 = vpop.permute.xlu0 %2744
        %2746 = vset.pattern.permute.xlu0 5
        %2747 = vperm.xlu0 %2746, %v535
        %v2748 = vpop.permute.xlu0 %2747
        %2749 = vset.pattern.permute.xlu0 5
        %2750 = vperm.xlu0 %2749, %v536
        %v2751 = vpop.permute.xlu0 %2750
        %2752 = vset.pattern.permute.xlu0 5
        %2753 = vperm.xlu0 %2752, %v537
        %v2754 = vpop.permute.xlu0 %2753
        %2755 = vset.pattern.permute.xlu0 5
        %2756 = vperm.xlu0 %2755, %v538
        %v2757 = vpop.permute.xlu0 %2756
        %2758 = vset.pattern.permute.xlu0 5
        %2759 = vperm.xlu0 %2758, %v539
        %v2760 = vpop.permute.xlu0 %2759
        %2761 = vset.pattern.permute.xlu0 5
        %2762 = vperm.xlu0 %2761, %v540
        %v2763 = vpop.permute.xlu0 %2762
        %2764 = vset.pattern.permute.xlu0 5
        %2765 = vperm.xlu0 %2764, %v541
        %v2766 = vpop.permute.xlu0 %2765
        %2767 = vset.pattern.permute.xlu0 5
        %2768 = vperm.xlu0 %2767, %v542
        %v2769 = vpop.permute.xlu0 %2768
        %vm2770 = vcmp.eq.s32.totalorder %v460, %v2724
        %vm2771 = vcmp.eq.s32.totalorder %v543, %v2724
        %vm2772 = vcmp.eq.s32.totalorder %v544, %v2724
        %vm2773 = vcmp.eq.s32.totalorder %v545, %v2724
        %vm2774 = vcmp.eq.s32.totalorder %v460, %v2727
        %vm2775 = vcmp.eq.s32.totalorder %v543, %v2727
        %vm2776 = vcmp.eq.s32.totalorder %v544, %v2727
        %vm2777 = vcmp.eq.s32.totalorder %v545, %v2727
        %vm2778 = vcmp.eq.s32.totalorder %v460, %v2730
        %vm2779 = vcmp.eq.s32.totalorder %v543, %v2730
        %vm2780 = vcmp.eq.s32.totalorder %v544, %v2730
        %vm2781 = vcmp.eq.s32.totalorder %v545, %v2730
        %vm2782 = vcmp.eq.s32.totalorder %v460, %v2733
        %vm2783 = vcmp.eq.s32.totalorder %v543, %v2733
        %vm2784 = vcmp.eq.s32.totalorder %v544, %v2733
        %vm2785 = vcmp.eq.s32.totalorder %v545, %v2733
        %vm2786 = vcmp.eq.s32.totalorder %v460, %v2736
        %vm2787 = vcmp.eq.s32.totalorder %v543, %v2736
        %vm2788 = vcmp.eq.s32.totalorder %v544, %v2736
        %vm2789 = vcmp.eq.s32.totalorder %v545, %v2736
        %vm2790 = vcmp.eq.s32.totalorder %v460, %v2739
        %vm2791 = vcmp.eq.s32.totalorder %v543, %v2739
        %vm2792 = vcmp.eq.s32.totalorder %v544, %v2739
        %vm2793 = vcmp.eq.s32.totalorder %v545, %v2739
        %vm2794 = vcmp.eq.s32.totalorder %v460, %v2742
        %vm2795 = vcmp.eq.s32.totalorder %v543, %v2742
        %vm2796 = vcmp.eq.s32.totalorder %v544, %v2742
        %vm2797 = vcmp.eq.s32.totalorder %v545, %v2742
        %vm2798 = vcmp.eq.s32.totalorder %v460, %v2745
        %vm2799 = vcmp.eq.s32.totalorder %v543, %v2745
        %vm2800 = vcmp.eq.s32.totalorder %v544, %v2745
        %vm2801 = vcmp.eq.s32.totalorder %v545, %v2745
        %vm2802 = vcmp.eq.s32.totalorder %v460, %v2748
        %vm2803 = vcmp.eq.s32.totalorder %v543, %v2748
        %vm2804 = vcmp.eq.s32.totalorder %v544, %v2748
        %vm2805 = vcmp.eq.s32.totalorder %v545, %v2748
        %vm2806 = vcmp.eq.s32.totalorder %v460, %v2751
        %vm2807 = vcmp.eq.s32.totalorder %v543, %v2751
        %vm2808 = vcmp.eq.s32.totalorder %v544, %v2751
        %vm2809 = vcmp.eq.s32.totalorder %v545, %v2751
        %vm2810 = vcmp.eq.s32.totalorder %v460, %v2754
        %vm2811 = vcmp.eq.s32.totalorder %v543, %v2754
        %vm2812 = vcmp.eq.s32.totalorder %v544, %v2754
        %vm2813 = vcmp.eq.s32.totalorder %v545, %v2754
        %vm2814 = vcmp.eq.s32.totalorder %v460, %v2757
        %vm2815 = vcmp.eq.s32.totalorder %v543, %v2757
        %vm2816 = vcmp.eq.s32.totalorder %v544, %v2757
        %vm2817 = vcmp.eq.s32.totalorder %v545, %v2757
        %vm2818 = vcmp.eq.s32.totalorder %v460, %v2760
        %vm2819 = vcmp.eq.s32.totalorder %v543, %v2760
        %vm2820 = vcmp.eq.s32.totalorder %v544, %v2760
        %vm2821 = vcmp.eq.s32.totalorder %v545, %v2760
        %vm2822 = vcmp.eq.s32.totalorder %v460, %v2763
        %vm2823 = vcmp.eq.s32.totalorder %v543, %v2763
        %vm2824 = vcmp.eq.s32.totalorder %v544, %v2763
        %vm2825 = vcmp.eq.s32.totalorder %v545, %v2763
        %vm2826 = vcmp.eq.s32.totalorder %v460, %v2766
        %vm2827 = vcmp.eq.s32.totalorder %v543, %v2766
        %vm2828 = vcmp.eq.s32.totalorder %v544, %v2766
        %vm2829 = vcmp.eq.s32.totalorder %v545, %v2766
        %vm2830 = vcmp.eq.s32.totalorder %v460, %v2769
        %vm2831 = vcmp.eq.s32.totalorder %v543, %v2769
        %vm2832 = vcmp.eq.s32.totalorder %v544, %v2769
        %vm2833 = vcmp.eq.s32.totalorder %v545, %v2769
        %2834 = vset.pattern.permute.xlu0 5
        %2835 = vperm.xlu0 %2834, %v658
        %v2836 = vpop.permute.xlu0 %2835
        %2837 = vset.pattern.permute.xlu0 5
        %2838 = vperm.xlu0 %2837, %v659
        %v2839 = vpop.permute.xlu0 %2838
        %2840 = vset.pattern.permute.xlu0 5
        %2841 = vperm.xlu0 %2840, %v660
        %v2842 = vpop.permute.xlu0 %2841
        %2843 = vset.pattern.permute.xlu0 5
        %2844 = vperm.xlu0 %2843, %v661
        %v2845 = vpop.permute.xlu0 %2844
        %2846 = vset.pattern.permute.xlu0 5
        %2847 = vperm.xlu0 %2846, %v662
        %v2848 = vpop.permute.xlu0 %2847
        %2849 = vset.pattern.permute.xlu0 5
        %2850 = vperm.xlu0 %2849, %v663
        %v2851 = vpop.permute.xlu0 %2850
        %2852 = vset.pattern.permute.xlu0 5
        %2853 = vperm.xlu0 %2852, %v664
        %v2854 = vpop.permute.xlu0 %2853
        %2855 = vset.pattern.permute.xlu0 5
        %2856 = vperm.xlu0 %2855, %v665
        %v2857 = vpop.permute.xlu0 %2856
        %2858 = vset.pattern.permute.xlu0 5
        %2859 = vperm.xlu0 %2858, %v666
        %v2860 = vpop.permute.xlu0 %2859
        %2861 = vset.pattern.permute.xlu0 5
        %2862 = vperm.xlu0 %2861, %v667
        %v2863 = vpop.permute.xlu0 %2862
        %2864 = vset.pattern.permute.xlu0 5
        %2865 = vperm.xlu0 %2864, %v668
        %v2866 = vpop.permute.xlu0 %2865
        %2867 = vset.pattern.permute.xlu0 5
        %2868 = vperm.xlu0 %2867, %v669
        %v2869 = vpop.permute.xlu0 %2868
        %2870 = vset.pattern.permute.xlu0 5
        %2871 = vperm.xlu0 %2870, %v670
        %v2872 = vpop.permute.xlu0 %2871
        %2873 = vset.pattern.permute.xlu0 5
        %2874 = vperm.xlu0 %2873, %v671
        %v2875 = vpop.permute.xlu0 %2874
        %2876 = vset.pattern.permute.xlu0 5
        %2877 = vperm.xlu0 %2876, %v672
        %v2878 = vpop.permute.xlu0 %2877
        %2879 = vset.pattern.permute.xlu0 5
        %2880 = vperm.xlu0 %2879, %v673
        %v2881 = vpop.permute.xlu0 %2880
        %vm2882 = vcmp.eq.s32.totalorder %v2836, 1
        %vm2883 = vcmp.eq.s32.totalorder %v2839, 1
        %vm2884 = vcmp.eq.s32.totalorder %v2842, 1
        %vm2885 = vcmp.eq.s32.totalorder %v2845, 1
        %vm2886 = vcmp.eq.s32.totalorder %v2848, 1
        %vm2887 = vcmp.eq.s32.totalorder %v2851, 1
        %vm2888 = vcmp.eq.s32.totalorder %v2854, 1
        %vm2889 = vcmp.eq.s32.totalorder %v2857, 1
        %vm2890 = vcmp.eq.s32.totalorder %v2860, 1
        %vm2891 = vcmp.eq.s32.totalorder %v2863, 1
        %vm2892 = vcmp.eq.s32.totalorder %v2866, 1
        %vm2893 = vcmp.eq.s32.totalorder %v2869, 1
        %vm2894 = vcmp.eq.s32.totalorder %v2872, 1
        %vm2895 = vcmp.eq.s32.totalorder %v2875, 1
        %vm2896 = vcmp.eq.s32.totalorder %v2878, 1
        %vm2897 = vcmp.eq.s32.totalorder %v2881, 1
        %vm2898 = vmand %vm2770, %vm2882
        %vm2899 = vmand %vm2771, %vm2882
        %vm2900 = vmand %vm2772, %vm2882
        %vm2901 = vmand %vm2773, %vm2882
        %vm2902 = vmand %vm2774, %vm2883
        %vm2903 = vmand %vm2775, %vm2883
        %vm2904 = vmand %vm2776, %vm2883
        %vm2905 = vmand %vm2777, %vm2883
        %vm2906 = vmand %vm2778, %vm2884
        %vm2907 = vmand %vm2779, %vm2884
        %vm2908 = vmand %vm2780, %vm2884
        %vm2909 = vmand %vm2781, %vm2884
        %vm2910 = vmand %vm2782, %vm2885
        %vm2911 = vmand %vm2783, %vm2885
        %vm2912 = vmand %vm2784, %vm2885
        %vm2913 = vmand %vm2785, %vm2885
        %vm2914 = vmand %vm2786, %vm2886
        %vm2915 = vmand %vm2787, %vm2886
        %vm2916 = vmand %vm2788, %vm2886
        %vm2917 = vmand %vm2789, %vm2886
        %vm2918 = vmand %vm2790, %vm2887
        %vm2919 = vmand %vm2791, %vm2887
        %vm2920 = vmand %vm2792, %vm2887
        %vm2921 = vmand %vm2793, %vm2887
        %vm2922 = vmand %vm2794, %vm2888
        %vm2923 = vmand %vm2795, %vm2888
        %vm2924 = vmand %vm2796, %vm2888
        %vm2925 = vmand %vm2797, %vm2888
        %vm2926 = vmand %vm2798, %vm2889
        %vm2927 = vmand %vm2799, %vm2889
        %vm2928 = vmand %vm2800, %vm2889
        %vm2929 = vmand %vm2801, %vm2889
        %vm2930 = vmand %vm2802, %vm2890
        %vm2931 = vmand %vm2803, %vm2890
        %vm2932 = vmand %vm2804, %vm2890
        %vm2933 = vmand %vm2805, %vm2890
        %vm2934 = vmand %vm2806, %vm2891
        %vm2935 = vmand %vm2807, %vm2891
        %vm2936 = vmand %vm2808, %vm2891
        %vm2937 = vmand %vm2809, %vm2891
        %vm2938 = vmand %vm2810, %vm2892
        %vm2939 = vmand %vm2811, %vm2892
        %vm2940 = vmand %vm2812, %vm2892
        %vm2941 = vmand %vm2813, %vm2892
        %vm2942 = vmand %vm2814, %vm2893
        %vm2943 = vmand %vm2815, %vm2893
        %vm2944 = vmand %vm2816, %vm2893
        %vm2945 = vmand %vm2817, %vm2893
        %vm2946 = vmand %vm2818, %vm2894
        %vm2947 = vmand %vm2819, %vm2894
        %vm2948 = vmand %vm2820, %vm2894
        %vm2949 = vmand %vm2821, %vm2894
        %vm2950 = vmand %vm2822, %vm2895
        %vm2951 = vmand %vm2823, %vm2895
        %vm2952 = vmand %vm2824, %vm2895
        %vm2953 = vmand %vm2825, %vm2895
        %vm2954 = vmand %vm2826, %vm2896
        %vm2955 = vmand %vm2827, %vm2896
        %vm2956 = vmand %vm2828, %vm2896
        %vm2957 = vmand %vm2829, %vm2896
        %vm2958 = vmand %vm2830, %vm2897
        %vm2959 = vmand %vm2831, %vm2897
        %vm2960 = vmand %vm2832, %vm2897
        %vm2961 = vmand %vm2833, %vm2897
        %v2962 = vsel %vm2898, 1, 0
        %v2963 = vsel %vm2899, 1, 0
        %v2964 = vsel %vm2900, 1, 0
        %v2965 = vsel %vm2901, 1, 0
        %v2966 = vsel %vm2902, 1, 0
        %v2967 = vsel %vm2903, 1, 0
        %v2968 = vsel %vm2904, 1, 0
        %v2969 = vsel %vm2905, 1, 0
        %v2970 = vsel %vm2906, 1, 0
        %v2971 = vsel %vm2907, 1, 0
        %v2972 = vsel %vm2908, 1, 0
        %v2973 = vsel %vm2909, 1, 0
        %v2974 = vsel %vm2910, 1, 0
        %v2975 = vsel %vm2911, 1, 0
        %v2976 = vsel %vm2912, 1, 0
        %v2977 = vsel %vm2913, 1, 0
        %v2978 = vsel %vm2914, 1, 0
        %v2979 = vsel %vm2915, 1, 0
        %v2980 = vsel %vm2916, 1, 0
        %v2981 = vsel %vm2917, 1, 0
        %v2982 = vsel %vm2918, 1, 0
        %v2983 = vsel %vm2919, 1, 0
        %v2984 = vsel %vm2920, 1, 0
        %v2985 = vsel %vm2921, 1, 0
        %v2986 = vsel %vm2922, 1, 0
        %v2987 = vsel %vm2923, 1, 0
        %v2988 = vsel %vm2924, 1, 0
        %v2989 = vsel %vm2925, 1, 0
        %v2990 = vsel %vm2926, 1, 0
        %v2991 = vsel %vm2927, 1, 0
        %v2992 = vsel %vm2928, 1, 0
        %v2993 = vsel %vm2929, 1, 0
        %v2994 = vsel %vm2930, 1, 0
        %v2995 = vsel %vm2931, 1, 0
        %v2996 = vsel %vm2932, 1, 0
        %v2997 = vsel %vm2933, 1, 0
        %v2998 = vsel %vm2934, 1, 0
        %v2999 = vsel %vm2935, 1, 0
        %v3000 = vsel %vm2936, 1, 0
        %v3001 = vsel %vm2937, 1, 0
        %v3002 = vsel %vm2938, 1, 0
        %v3003 = vsel %vm2939, 1, 0
        %v3004 = vsel %vm2940, 1, 0
        %v3005 = vsel %vm2941, 1, 0
        %v3006 = vsel %vm2942, 1, 0
        %v3007 = vsel %vm2943, 1, 0
        %v3008 = vsel %vm2944, 1, 0
        %v3009 = vsel %vm2945, 1, 0
        %v3010 = vsel %vm2946, 1, 0
        %v3011 = vsel %vm2947, 1, 0
        %v3012 = vsel %vm2948, 1, 0
        %v3013 = vsel %vm2949, 1, 0
        %v3014 = vsel %vm2950, 1, 0
        %v3015 = vsel %vm2951, 1, 0
        %v3016 = vsel %vm2952, 1, 0
        %v3017 = vsel %vm2953, 1, 0
        %v3018 = vsel %vm2954, 1, 0
        %v3019 = vsel %vm2955, 1, 0
        %v3020 = vsel %vm2956, 1, 0
        %v3021 = vsel %vm2957, 1, 0
        %v3022 = vsel %vm2958, 1, 0
        %v3023 = vsel %vm2959, 1, 0
        %v3024 = vsel %vm2960, 1, 0
        %v3025 = vsel %vm2961, 1, 0
        %v3026 = vcvt.s32.f32 %v2962
        %v3027 = vcvt.s32.f32 %v2963
        %v3028 = vcvt.s32.f32 %v2964
        %v3029 = vcvt.s32.f32 %v2965
        %v3030 = vcvt.s32.f32 %v2966
        %v3031 = vcvt.s32.f32 %v2967
        %v3032 = vcvt.s32.f32 %v2968
        %v3033 = vcvt.s32.f32 %v2969
        %v3034 = vcvt.s32.f32 %v2970
        %v3035 = vcvt.s32.f32 %v2971
        %v3036 = vcvt.s32.f32 %v2972
        %v3037 = vcvt.s32.f32 %v2973
        %v3038 = vcvt.s32.f32 %v2974
        %v3039 = vcvt.s32.f32 %v2975
        %v3040 = vcvt.s32.f32 %v2976
        %v3041 = vcvt.s32.f32 %v2977
        %v3042 = vcvt.s32.f32 %v2978
        %v3043 = vcvt.s32.f32 %v2979
        %v3044 = vcvt.s32.f32 %v2980
        %v3045 = vcvt.s32.f32 %v2981
        %v3046 = vcvt.s32.f32 %v2982
        %v3047 = vcvt.s32.f32 %v2983
        %v3048 = vcvt.s32.f32 %v2984
        %v3049 = vcvt.s32.f32 %v2985
        %v3050 = vcvt.s32.f32 %v2986
        %v3051 = vcvt.s32.f32 %v2987
        %v3052 = vcvt.s32.f32 %v2988
        %v3053 = vcvt.s32.f32 %v2989
        %v3054 = vcvt.s32.f32 %v2990
        %v3055 = vcvt.s32.f32 %v2991
        %v3056 = vcvt.s32.f32 %v2992
        %v3057 = vcvt.s32.f32 %v2993
        %v3058 = vcvt.s32.f32 %v2994
        %v3059 = vcvt.s32.f32 %v2995
        %v3060 = vcvt.s32.f32 %v2996
        %v3061 = vcvt.s32.f32 %v2997
        %v3062 = vcvt.s32.f32 %v2998
        %v3063 = vcvt.s32.f32 %v2999
        %v3064 = vcvt.s32.f32 %v3000
        %v3065 = vcvt.s32.f32 %v3001
        %v3066 = vcvt.s32.f32 %v3002
        %v3067 = vcvt.s32.f32 %v3003
        %v3068 = vcvt.s32.f32 %v3004
        %v3069 = vcvt.s32.f32 %v3005
        %v3070 = vcvt.s32.f32 %v3006
        %v3071 = vcvt.s32.f32 %v3007
        %v3072 = vcvt.s32.f32 %v3008
        %v3073 = vcvt.s32.f32 %v3009
        %v3074 = vcvt.s32.f32 %v3010
        %v3075 = vcvt.s32.f32 %v3011
        %v3076 = vcvt.s32.f32 %v3012
        %v3077 = vcvt.s32.f32 %v3013
        %v3078 = vcvt.s32.f32 %v3014
        %v3079 = vcvt.s32.f32 %v3015
        %v3080 = vcvt.s32.f32 %v3016
        %v3081 = vcvt.s32.f32 %v3017
        %v3082 = vcvt.s32.f32 %v3018
        %v3083 = vcvt.s32.f32 %v3019
        %v3084 = vcvt.s32.f32 %v3020
        %v3085 = vcvt.s32.f32 %v3021
        %v3086 = vcvt.s32.f32 %v3022
        %v3087 = vcvt.s32.f32 %v3023
        %v3088 = vcvt.s32.f32 %v3024
        %v3089 = vcvt.s32.f32 %v3025
        %v3090 = vadd.f32 %v2658, %v3026
        %v3091 = vadd.f32 %v2659, %v3027
        %v3092 = vadd.f32 %v2660, %v3028
        %v3093 = vadd.f32 %v2661, %v3029
        %v3094 = vadd.f32 %v2662, %v3030
        %v3095 = vadd.f32 %v2663, %v3031
        %v3096 = vadd.f32 %v2664, %v3032
        %v3097 = vadd.f32 %v2665, %v3033
        %v3098 = vadd.f32 %v2666, %v3034
        %v3099 = vadd.f32 %v2667, %v3035
        %v3100 = vadd.f32 %v2668, %v3036
        %v3101 = vadd.f32 %v2669, %v3037
        %v3102 = vadd.f32 %v2670, %v3038
        %v3103 = vadd.f32 %v2671, %v3039
        %v3104 = vadd.f32 %v2672, %v3040
        %v3105 = vadd.f32 %v2673, %v3041
        %v3106 = vadd.f32 %v2674, %v3042
        %v3107 = vadd.f32 %v2675, %v3043
        %v3108 = vadd.f32 %v2676, %v3044
        %v3109 = vadd.f32 %v2677, %v3045
        %v3110 = vadd.f32 %v2678, %v3046
        %v3111 = vadd.f32 %v2679, %v3047
        %v3112 = vadd.f32 %v2680, %v3048
        %v3113 = vadd.f32 %v2681, %v3049
        %v3114 = vadd.f32 %v2682, %v3050
        %v3115 = vadd.f32 %v2683, %v3051
        %v3116 = vadd.f32 %v2684, %v3052
        %v3117 = vadd.f32 %v2685, %v3053
        %v3118 = vadd.f32 %v2686, %v3054
        %v3119 = vadd.f32 %v2687, %v3055
        %v3120 = vadd.f32 %v2688, %v3056
        %v3121 = vadd.f32 %v2689, %v3057
        %v3122 = vadd.f32 %v2690, %v3058
        %v3123 = vadd.f32 %v2691, %v3059
        %v3124 = vadd.f32 %v2692, %v3060
        %v3125 = vadd.f32 %v2693, %v3061
        %v3126 = vadd.f32 %v2694, %v3062
        %v3127 = vadd.f32 %v2695, %v3063
        %v3128 = vadd.f32 %v2696, %v3064
        %v3129 = vadd.f32 %v2697, %v3065
        %v3130 = vadd.f32 %v2698, %v3066
        %v3131 = vadd.f32 %v2699, %v3067
        %v3132 = vadd.f32 %v2700, %v3068
        %v3133 = vadd.f32 %v2701, %v3069
        %v3134 = vadd.f32 %v2702, %v3070
        %v3135 = vadd.f32 %v2703, %v3071
        %v3136 = vadd.f32 %v2704, %v3072
        %v3137 = vadd.f32 %v2705, %v3073
        %v3138 = vadd.f32 %v2706, %v3074
        %v3139 = vadd.f32 %v2707, %v3075
        %v3140 = vadd.f32 %v2708, %v3076
        %v3141 = vadd.f32 %v2709, %v3077
        %v3142 = vadd.f32 %v2710, %v3078
        %v3143 = vadd.f32 %v2711, %v3079
        %v3144 = vadd.f32 %v2712, %v3080
        %v3145 = vadd.f32 %v2713, %v3081
        %v3146 = vadd.f32 %v2714, %v3082
        %v3147 = vadd.f32 %v2715, %v3083
        %v3148 = vadd.f32 %v2716, %v3084
        %v3149 = vadd.f32 %v2717, %v3085
        %v3150 = vadd.f32 %v2718, %v3086
        %v3151 = vadd.f32 %v2719, %v3087
        %v3152 = vadd.f32 %v2720, %v3088
        %v3153 = vadd.f32 %v2721, %v3089
        %3154 = vset.pattern.permute.xlu0 6
        %3155 = vperm.xlu0 %3154, %v527
        %v3156 = vpop.permute.xlu0 %3155
        %3157 = vset.pattern.permute.xlu0 6
        %3158 = vperm.xlu0 %3157, %v528
        %v3159 = vpop.permute.xlu0 %3158
        %3160 = vset.pattern.permute.xlu0 6
        %3161 = vperm.xlu0 %3160, %v529
        %v3162 = vpop.permute.xlu0 %3161
        %3163 = vset.pattern.permute.xlu0 6
        %3164 = vperm.xlu0 %3163, %v530
        %v3165 = vpop.permute.xlu0 %3164
        %3166 = vset.pattern.permute.xlu0 6
        %3167 = vperm.xlu0 %3166, %v531
        %v3168 = vpop.permute.xlu0 %3167
        %3169 = vset.pattern.permute.xlu0 6
        %3170 = vperm.xlu0 %3169, %v532
        %v3171 = vpop.permute.xlu0 %3170
        %3172 = vset.pattern.permute.xlu0 6
        %3173 = vperm.xlu0 %3172, %v533
        %v3174 = vpop.permute.xlu0 %3173
        %3175 = vset.pattern.permute.xlu0 6
        %3176 = vperm.xlu0 %3175, %v534
        %v3177 = vpop.permute.xlu0 %3176
        %3178 = vset.pattern.permute.xlu0 6
        %3179 = vperm.xlu0 %3178, %v535
        %v3180 = vpop.permute.xlu0 %3179
        %3181 = vset.pattern.permute.xlu0 6
        %3182 = vperm.xlu0 %3181, %v536
        %v3183 = vpop.permute.xlu0 %3182
        %3184 = vset.pattern.permute.xlu0 6
        %3185 = vperm.xlu0 %3184, %v537
        %v3186 = vpop.permute.xlu0 %3185
        %3187 = vset.pattern.permute.xlu0 6
        %3188 = vperm.xlu0 %3187, %v538
        %v3189 = vpop.permute.xlu0 %3188
        %3190 = vset.pattern.permute.xlu0 6
        %3191 = vperm.xlu0 %3190, %v539
        %v3192 = vpop.permute.xlu0 %3191
        %3193 = vset.pattern.permute.xlu0 6
        %3194 = vperm.xlu0 %3193, %v540
        %v3195 = vpop.permute.xlu0 %3194
        %3196 = vset.pattern.permute.xlu0 6
        %3197 = vperm.xlu0 %3196, %v541
        %v3198 = vpop.permute.xlu0 %3197
        %3199 = vset.pattern.permute.xlu0 6
        %3200 = vperm.xlu0 %3199, %v542
        %v3201 = vpop.permute.xlu0 %3200
        %vm3202 = vcmp.eq.s32.totalorder %v460, %v3156
        %vm3203 = vcmp.eq.s32.totalorder %v543, %v3156
        %vm3204 = vcmp.eq.s32.totalorder %v544, %v3156
        %vm3205 = vcmp.eq.s32.totalorder %v545, %v3156
        %vm3206 = vcmp.eq.s32.totalorder %v460, %v3159
        %vm3207 = vcmp.eq.s32.totalorder %v543, %v3159
        %vm3208 = vcmp.eq.s32.totalorder %v544, %v3159
        %vm3209 = vcmp.eq.s32.totalorder %v545, %v3159
        %vm3210 = vcmp.eq.s32.totalorder %v460, %v3162
        %vm3211 = vcmp.eq.s32.totalorder %v543, %v3162
        %vm3212 = vcmp.eq.s32.totalorder %v544, %v3162
        %vm3213 = vcmp.eq.s32.totalorder %v545, %v3162
        %vm3214 = vcmp.eq.s32.totalorder %v460, %v3165
        %vm3215 = vcmp.eq.s32.totalorder %v543, %v3165
        %vm3216 = vcmp.eq.s32.totalorder %v544, %v3165
        %vm3217 = vcmp.eq.s32.totalorder %v545, %v3165
        %vm3218 = vcmp.eq.s32.totalorder %v460, %v3168
        %vm3219 = vcmp.eq.s32.totalorder %v543, %v3168
        %vm3220 = vcmp.eq.s32.totalorder %v544, %v3168
        %vm3221 = vcmp.eq.s32.totalorder %v545, %v3168
        %vm3222 = vcmp.eq.s32.totalorder %v460, %v3171
        %vm3223 = vcmp.eq.s32.totalorder %v543, %v3171
        %vm3224 = vcmp.eq.s32.totalorder %v544, %v3171
        %vm3225 = vcmp.eq.s32.totalorder %v545, %v3171
        %vm3226 = vcmp.eq.s32.totalorder %v460, %v3174
        %vm3227 = vcmp.eq.s32.totalorder %v543, %v3174
        %vm3228 = vcmp.eq.s32.totalorder %v544, %v3174
        %vm3229 = vcmp.eq.s32.totalorder %v545, %v3174
        %vm3230 = vcmp.eq.s32.totalorder %v460, %v3177
        %vm3231 = vcmp.eq.s32.totalorder %v543, %v3177
        %vm3232 = vcmp.eq.s32.totalorder %v544, %v3177
        %vm3233 = vcmp.eq.s32.totalorder %v545, %v3177
        %vm3234 = vcmp.eq.s32.totalorder %v460, %v3180
        %vm3235 = vcmp.eq.s32.totalorder %v543, %v3180
        %vm3236 = vcmp.eq.s32.totalorder %v544, %v3180
        %vm3237 = vcmp.eq.s32.totalorder %v545, %v3180
        %vm3238 = vcmp.eq.s32.totalorder %v460, %v3183
        %vm3239 = vcmp.eq.s32.totalorder %v543, %v3183
        %vm3240 = vcmp.eq.s32.totalorder %v544, %v3183
        %vm3241 = vcmp.eq.s32.totalorder %v545, %v3183
        %vm3242 = vcmp.eq.s32.totalorder %v460, %v3186
        %vm3243 = vcmp.eq.s32.totalorder %v543, %v3186
        %vm3244 = vcmp.eq.s32.totalorder %v544, %v3186
        %vm3245 = vcmp.eq.s32.totalorder %v545, %v3186
        %vm3246 = vcmp.eq.s32.totalorder %v460, %v3189
        %vm3247 = vcmp.eq.s32.totalorder %v543, %v3189
        %vm3248 = vcmp.eq.s32.totalorder %v544, %v3189
        %vm3249 = vcmp.eq.s32.totalorder %v545, %v3189
        %vm3250 = vcmp.eq.s32.totalorder %v460, %v3192
        %vm3251 = vcmp.eq.s32.totalorder %v543, %v3192
        %vm3252 = vcmp.eq.s32.totalorder %v544, %v3192
        %vm3253 = vcmp.eq.s32.totalorder %v545, %v3192
        %vm3254 = vcmp.eq.s32.totalorder %v460, %v3195
        %vm3255 = vcmp.eq.s32.totalorder %v543, %v3195
        %vm3256 = vcmp.eq.s32.totalorder %v544, %v3195
        %vm3257 = vcmp.eq.s32.totalorder %v545, %v3195
        %vm3258 = vcmp.eq.s32.totalorder %v460, %v3198
        %vm3259 = vcmp.eq.s32.totalorder %v543, %v3198
        %vm3260 = vcmp.eq.s32.totalorder %v544, %v3198
        %vm3261 = vcmp.eq.s32.totalorder %v545, %v3198
        %vm3262 = vcmp.eq.s32.totalorder %v460, %v3201
        %vm3263 = vcmp.eq.s32.totalorder %v543, %v3201
        %vm3264 = vcmp.eq.s32.totalorder %v544, %v3201
        %vm3265 = vcmp.eq.s32.totalorder %v545, %v3201
        %3266 = vset.pattern.permute.xlu0 6
        %3267 = vperm.xlu0 %3266, %v658
        %v3268 = vpop.permute.xlu0 %3267
        %3269 = vset.pattern.permute.xlu0 6
        %3270 = vperm.xlu0 %3269, %v659
        %v3271 = vpop.permute.xlu0 %3270
        %3272 = vset.pattern.permute.xlu0 6
        %3273 = vperm.xlu0 %3272, %v660
        %v3274 = vpop.permute.xlu0 %3273
        %3275 = vset.pattern.permute.xlu0 6
        %3276 = vperm.xlu0 %3275, %v661
        %v3277 = vpop.permute.xlu0 %3276
        %3278 = vset.pattern.permute.xlu0 6
        %3279 = vperm.xlu0 %3278, %v662
        %v3280 = vpop.permute.xlu0 %3279
        %3281 = vset.pattern.permute.xlu0 6
        %3282 = vperm.xlu0 %3281, %v663
        %v3283 = vpop.permute.xlu0 %3282
        %3284 = vset.pattern.permute.xlu0 6
        %3285 = vperm.xlu0 %3284, %v664
        %v3286 = vpop.permute.xlu0 %3285
        %3287 = vset.pattern.permute.xlu0 6
        %3288 = vperm.xlu0 %3287, %v665
        %v3289 = vpop.permute.xlu0 %3288
        %3290 = vset.pattern.permute.xlu0 6
        %3291 = vperm.xlu0 %3290, %v666
        %v3292 = vpop.permute.xlu0 %3291
        %3293 = vset.pattern.permute.xlu0 6
        %3294 = vperm.xlu0 %3293, %v667
        %v3295 = vpop.permute.xlu0 %3294
        %3296 = vset.pattern.permute.xlu0 6
        %3297 = vperm.xlu0 %3296, %v668
        %v3298 = vpop.permute.xlu0 %3297
        %3299 = vset.pattern.permute.xlu0 6
        %3300 = vperm.xlu0 %3299, %v669
        %v3301 = vpop.permute.xlu0 %3300
        %3302 = vset.pattern.permute.xlu0 6
        %3303 = vperm.xlu0 %3302, %v670
        %v3304 = vpop.permute.xlu0 %3303
        %3305 = vset.pattern.permute.xlu0 6
        %3306 = vperm.xlu0 %3305, %v671
        %v3307 = vpop.permute.xlu0 %3306
        %3308 = vset.pattern.permute.xlu0 6
        %3309 = vperm.xlu0 %3308, %v672
        %v3310 = vpop.permute.xlu0 %3309
        %3311 = vset.pattern.permute.xlu0 6
        %3312 = vperm.xlu0 %3311, %v673
        %v3313 = vpop.permute.xlu0 %3312
        %vm3314 = vcmp.eq.s32.totalorder %v3268, 1
        %vm3315 = vcmp.eq.s32.totalorder %v3271, 1
        %vm3316 = vcmp.eq.s32.totalorder %v3274, 1
        %vm3317 = vcmp.eq.s32.totalorder %v3277, 1
        %vm3318 = vcmp.eq.s32.totalorder %v3280, 1
        %vm3319 = vcmp.eq.s32.totalorder %v3283, 1
        %vm3320 = vcmp.eq.s32.totalorder %v3286, 1
        %vm3321 = vcmp.eq.s32.totalorder %v3289, 1
        %vm3322 = vcmp.eq.s32.totalorder %v3292, 1
        %vm3323 = vcmp.eq.s32.totalorder %v3295, 1
        %vm3324 = vcmp.eq.s32.totalorder %v3298, 1
        %vm3325 = vcmp.eq.s32.totalorder %v3301, 1
        %vm3326 = vcmp.eq.s32.totalorder %v3304, 1
        %vm3327 = vcmp.eq.s32.totalorder %v3307, 1
        %vm3328 = vcmp.eq.s32.totalorder %v3310, 1
        %vm3329 = vcmp.eq.s32.totalorder %v3313, 1
        %vm3330 = vmand %vm3202, %vm3314
        %vm3331 = vmand %vm3203, %vm3314
        %vm3332 = vmand %vm3204, %vm3314
        %vm3333 = vmand %vm3205, %vm3314
        %vm3334 = vmand %vm3206, %vm3315
        %vm3335 = vmand %vm3207, %vm3315
        %vm3336 = vmand %vm3208, %vm3315
        %vm3337 = vmand %vm3209, %vm3315
        %vm3338 = vmand %vm3210, %vm3316
        %vm3339 = vmand %vm3211, %vm3316
        %vm3340 = vmand %vm3212, %vm3316
        %vm3341 = vmand %vm3213, %vm3316
        %vm3342 = vmand %vm3214, %vm3317
        %vm3343 = vmand %vm3215, %vm3317
        %vm3344 = vmand %vm3216, %vm3317
        %vm3345 = vmand %vm3217, %vm3317
        %vm3346 = vmand %vm3218, %vm3318
        %vm3347 = vmand %vm3219, %vm3318
        %vm3348 = vmand %vm3220, %vm3318
        %vm3349 = vmand %vm3221, %vm3318
        %vm3350 = vmand %vm3222, %vm3319
        %vm3351 = vmand %vm3223, %vm3319
        %vm3352 = vmand %vm3224, %vm3319
        %vm3353 = vmand %vm3225, %vm3319
        %vm3354 = vmand %vm3226, %vm3320
        %vm3355 = vmand %vm3227, %vm3320
        %vm3356 = vmand %vm3228, %vm3320
        %vm3357 = vmand %vm3229, %vm3320
        %vm3358 = vmand %vm3230, %vm3321
        %vm3359 = vmand %vm3231, %vm3321
        %vm3360 = vmand %vm3232, %vm3321
        %vm3361 = vmand %vm3233, %vm3321
        %vm3362 = vmand %vm3234, %vm3322
        %vm3363 = vmand %vm3235, %vm3322
        %vm3364 = vmand %vm3236, %vm3322
        %vm3365 = vmand %vm3237, %vm3322
        %vm3366 = vmand %vm3238, %vm3323
        %vm3367 = vmand %vm3239, %vm3323
        %vm3368 = vmand %vm3240, %vm3323
        %vm3369 = vmand %vm3241, %vm3323
        %vm3370 = vmand %vm3242, %vm3324
        %vm3371 = vmand %vm3243, %vm3324
        %vm3372 = vmand %vm3244, %vm3324
        %vm3373 = vmand %vm3245, %vm3324
        %vm3374 = vmand %vm3246, %vm3325
        %vm3375 = vmand %vm3247, %vm3325
        %vm3376 = vmand %vm3248, %vm3325
        %vm3377 = vmand %vm3249, %vm3325
        %vm3378 = vmand %vm3250, %vm3326
        %vm3379 = vmand %vm3251, %vm3326
        %vm3380 = vmand %vm3252, %vm3326
        %vm3381 = vmand %vm3253, %vm3326
        %vm3382 = vmand %vm3254, %vm3327
        %vm3383 = vmand %vm3255, %vm3327
        %vm3384 = vmand %vm3256, %vm3327
        %vm3385 = vmand %vm3257, %vm3327
        %vm3386 = vmand %vm3258, %vm3328
        %vm3387 = vmand %vm3259, %vm3328
        %vm3388 = vmand %vm3260, %vm3328
        %vm3389 = vmand %vm3261, %vm3328
        %vm3390 = vmand %vm3262, %vm3329
        %vm3391 = vmand %vm3263, %vm3329
        %vm3392 = vmand %vm3264, %vm3329
        %vm3393 = vmand %vm3265, %vm3329
        %v3394 = vsel %vm3330, 1, 0
        %v3395 = vsel %vm3331, 1, 0
        %v3396 = vsel %vm3332, 1, 0
        %v3397 = vsel %vm3333, 1, 0
        %v3398 = vsel %vm3334, 1, 0
        %v3399 = vsel %vm3335, 1, 0
        %v3400 = vsel %vm3336, 1, 0
        %v3401 = vsel %vm3337, 1, 0
        %v3402 = vsel %vm3338, 1, 0
        %v3403 = vsel %vm3339, 1, 0
        %v3404 = vsel %vm3340, 1, 0
        %v3405 = vsel %vm3341, 1, 0
        %v3406 = vsel %vm3342, 1, 0
        %v3407 = vsel %vm3343, 1, 0
        %v3408 = vsel %vm3344, 1, 0
        %v3409 = vsel %vm3345, 1, 0
        %v3410 = vsel %vm3346, 1, 0
        %v3411 = vsel %vm3347, 1, 0
        %v3412 = vsel %vm3348, 1, 0
        %v3413 = vsel %vm3349, 1, 0
        %v3414 = vsel %vm3350, 1, 0
        %v3415 = vsel %vm3351, 1, 0
        %v3416 = vsel %vm3352, 1, 0
        %v3417 = vsel %vm3353, 1, 0
        %v3418 = vsel %vm3354, 1, 0
        %v3419 = vsel %vm3355, 1, 0
        %v3420 = vsel %vm3356, 1, 0
        %v3421 = vsel %vm3357, 1, 0
        %v3422 = vsel %vm3358, 1, 0
        %v3423 = vsel %vm3359, 1, 0
        %v3424 = vsel %vm3360, 1, 0
        %v3425 = vsel %vm3361, 1, 0
        %v3426 = vsel %vm3362, 1, 0
        %v3427 = vsel %vm3363, 1, 0
        %v3428 = vsel %vm3364, 1, 0
        %v3429 = vsel %vm3365, 1, 0
        %v3430 = vsel %vm3366, 1, 0
        %v3431 = vsel %vm3367, 1, 0
        %v3432 = vsel %vm3368, 1, 0
        %v3433 = vsel %vm3369, 1, 0
        %v3434 = vsel %vm3370, 1, 0
        %v3435 = vsel %vm3371, 1, 0
        %v3436 = vsel %vm3372, 1, 0
        %v3437 = vsel %vm3373, 1, 0
        %v3438 = vsel %vm3374, 1, 0
        %v3439 = vsel %vm3375, 1, 0
        %v3440 = vsel %vm3376, 1, 0
        %v3441 = vsel %vm3377, 1, 0
        %v3442 = vsel %vm3378, 1, 0
        %v3443 = vsel %vm3379, 1, 0
        %v3444 = vsel %vm3380, 1, 0
        %v3445 = vsel %vm3381, 1, 0
        %v3446 = vsel %vm3382, 1, 0
        %v3447 = vsel %vm3383, 1, 0
        %v3448 = vsel %vm3384, 1, 0
        %v3449 = vsel %vm3385, 1, 0
        %v3450 = vsel %vm3386, 1, 0
        %v3451 = vsel %vm3387, 1, 0
        %v3452 = vsel %vm3388, 1, 0
        %v3453 = vsel %vm3389, 1, 0
        %v3454 = vsel %vm3390, 1, 0
        %v3455 = vsel %vm3391, 1, 0
        %v3456 = vsel %vm3392, 1, 0
        %v3457 = vsel %vm3393, 1, 0
        %v3458 = vcvt.s32.f32 %v3394
        %v3459 = vcvt.s32.f32 %v3395
        %v3460 = vcvt.s32.f32 %v3396
        %v3461 = vcvt.s32.f32 %v3397
        %v3462 = vcvt.s32.f32 %v3398
        %v3463 = vcvt.s32.f32 %v3399
        %v3464 = vcvt.s32.f32 %v3400
        %v3465 = vcvt.s32.f32 %v3401
        %v3466 = vcvt.s32.f32 %v3402
        %v3467 = vcvt.s32.f32 %v3403
        %v3468 = vcvt.s32.f32 %v3404
        %v3469 = vcvt.s32.f32 %v3405
        %v3470 = vcvt.s32.f32 %v3406
        %v3471 = vcvt.s32.f32 %v3407
        %v3472 = vcvt.s32.f32 %v3408
        %v3473 = vcvt.s32.f32 %v3409
        %v3474 = vcvt.s32.f32 %v3410
        %v3475 = vcvt.s32.f32 %v3411
        %v3476 = vcvt.s32.f32 %v3412
        %v3477 = vcvt.s32.f32 %v3413
        %v3478 = vcvt.s32.f32 %v3414
        %v3479 = vcvt.s32.f32 %v3415
        %v3480 = vcvt.s32.f32 %v3416
        %v3481 = vcvt.s32.f32 %v3417
        %v3482 = vcvt.s32.f32 %v3418
        %v3483 = vcvt.s32.f32 %v3419
        %v3484 = vcvt.s32.f32 %v3420
        %v3485 = vcvt.s32.f32 %v3421
        %v3486 = vcvt.s32.f32 %v3422
        %v3487 = vcvt.s32.f32 %v3423
        %v3488 = vcvt.s32.f32 %v3424
        %v3489 = vcvt.s32.f32 %v3425
        %v3490 = vcvt.s32.f32 %v3426
        %v3491 = vcvt.s32.f32 %v3427
        %v3492 = vcvt.s32.f32 %v3428
        %v3493 = vcvt.s32.f32 %v3429
        %v3494 = vcvt.s32.f32 %v3430
        %v3495 = vcvt.s32.f32 %v3431
        %v3496 = vcvt.s32.f32 %v3432
        %v3497 = vcvt.s32.f32 %v3433
        %v3498 = vcvt.s32.f32 %v3434
        %v3499 = vcvt.s32.f32 %v3435
        %v3500 = vcvt.s32.f32 %v3436
        %v3501 = vcvt.s32.f32 %v3437
        %v3502 = vcvt.s32.f32 %v3438
        %v3503 = vcvt.s32.f32 %v3439
        %v3504 = vcvt.s32.f32 %v3440
        %v3505 = vcvt.s32.f32 %v3441
        %v3506 = vcvt.s32.f32 %v3442
        %v3507 = vcvt.s32.f32 %v3443
        %v3508 = vcvt.s32.f32 %v3444
        %v3509 = vcvt.s32.f32 %v3445
        %v3510 = vcvt.s32.f32 %v3446
        %v3511 = vcvt.s32.f32 %v3447
        %v3512 = vcvt.s32.f32 %v3448
        %v3513 = vcvt.s32.f32 %v3449
        %v3514 = vcvt.s32.f32 %v3450
        %v3515 = vcvt.s32.f32 %v3451
        %v3516 = vcvt.s32.f32 %v3452
        %v3517 = vcvt.s32.f32 %v3453
        %v3518 = vcvt.s32.f32 %v3454
        %v3519 = vcvt.s32.f32 %v3455
        %v3520 = vcvt.s32.f32 %v3456
        %v3521 = vcvt.s32.f32 %v3457
        %v3522 = vadd.f32 %v3090, %v3458
        %v3523 = vadd.f32 %v3091, %v3459
        %v3524 = vadd.f32 %v3092, %v3460
        %v3525 = vadd.f32 %v3093, %v3461
        %v3526 = vadd.f32 %v3094, %v3462
        %v3527 = vadd.f32 %v3095, %v3463
        %v3528 = vadd.f32 %v3096, %v3464
        %v3529 = vadd.f32 %v3097, %v3465
        %v3530 = vadd.f32 %v3098, %v3466
        %v3531 = vadd.f32 %v3099, %v3467
        %v3532 = vadd.f32 %v3100, %v3468
        %v3533 = vadd.f32 %v3101, %v3469
        %v3534 = vadd.f32 %v3102, %v3470
        %v3535 = vadd.f32 %v3103, %v3471
        %v3536 = vadd.f32 %v3104, %v3472
        %v3537 = vadd.f32 %v3105, %v3473
        %v3538 = vadd.f32 %v3106, %v3474
        %v3539 = vadd.f32 %v3107, %v3475
        %v3540 = vadd.f32 %v3108, %v3476
        %v3541 = vadd.f32 %v3109, %v3477
        %v3542 = vadd.f32 %v3110, %v3478
        %v3543 = vadd.f32 %v3111, %v3479
        %v3544 = vadd.f32 %v3112, %v3480
        %v3545 = vadd.f32 %v3113, %v3481
        %v3546 = vadd.f32 %v3114, %v3482
        %v3547 = vadd.f32 %v3115, %v3483
        %v3548 = vadd.f32 %v3116, %v3484
        %v3549 = vadd.f32 %v3117, %v3485
        %v3550 = vadd.f32 %v3118, %v3486
        %v3551 = vadd.f32 %v3119, %v3487
        %v3552 = vadd.f32 %v3120, %v3488
        %v3553 = vadd.f32 %v3121, %v3489
        %v3554 = vadd.f32 %v3122, %v3490
        %v3555 = vadd.f32 %v3123, %v3491
        %v3556 = vadd.f32 %v3124, %v3492
        %v3557 = vadd.f32 %v3125, %v3493
        %v3558 = vadd.f32 %v3126, %v3494
        %v3559 = vadd.f32 %v3127, %v3495
        %v3560 = vadd.f32 %v3128, %v3496
        %v3561 = vadd.f32 %v3129, %v3497
        %v3562 = vadd.f32 %v3130, %v3498
        %v3563 = vadd.f32 %v3131, %v3499
        %v3564 = vadd.f32 %v3132, %v3500
        %v3565 = vadd.f32 %v3133, %v3501
        %v3566 = vadd.f32 %v3134, %v3502
        %v3567 = vadd.f32 %v3135, %v3503
        %v3568 = vadd.f32 %v3136, %v3504
        %v3569 = vadd.f32 %v3137, %v3505
        %v3570 = vadd.f32 %v3138, %v3506
        %v3571 = vadd.f32 %v3139, %v3507
        %v3572 = vadd.f32 %v3140, %v3508
        %v3573 = vadd.f32 %v3141, %v3509
        %v3574 = vadd.f32 %v3142, %v3510
        %v3575 = vadd.f32 %v3143, %v3511
        %v3576 = vadd.f32 %v3144, %v3512
        %v3577 = vadd.f32 %v3145, %v3513
        %v3578 = vadd.f32 %v3146, %v3514
        %v3579 = vadd.f32 %v3147, %v3515
        %v3580 = vadd.f32 %v3148, %v3516
        %v3581 = vadd.f32 %v3149, %v3517
        %v3582 = vadd.f32 %v3150, %v3518
        %v3583 = vadd.f32 %v3151, %v3519
        %v3584 = vadd.f32 %v3152, %v3520
        %v3585 = vadd.f32 %v3153, %v3521
        %3586 = vset.pattern.permute.xlu0 7
        %3587 = vperm.xlu0 %3586, %v527
        %v3588 = vpop.permute.xlu0 %3587
        %3589 = vset.pattern.permute.xlu0 7
        %3590 = vperm.xlu0 %3589, %v528
        %v3591 = vpop.permute.xlu0 %3590
        %3592 = vset.pattern.permute.xlu0 7
        %3593 = vperm.xlu0 %3592, %v529
        %v3594 = vpop.permute.xlu0 %3593
        %3595 = vset.pattern.permute.xlu0 7
        %3596 = vperm.xlu0 %3595, %v530
        %v3597 = vpop.permute.xlu0 %3596
        %3598 = vset.pattern.permute.xlu0 7
        %3599 = vperm.xlu0 %3598, %v531
        %v3600 = vpop.permute.xlu0 %3599
        %3601 = vset.pattern.permute.xlu0 7
        %3602 = vperm.xlu0 %3601, %v532
        %v3603 = vpop.permute.xlu0 %3602
        %3604 = vset.pattern.permute.xlu0 7
        %3605 = vperm.xlu0 %3604, %v533
        %v3606 = vpop.permute.xlu0 %3605
        %3607 = vset.pattern.permute.xlu0 7
        %3608 = vperm.xlu0 %3607, %v534
        %v3609 = vpop.permute.xlu0 %3608
        %3610 = vset.pattern.permute.xlu0 7
        %3611 = vperm.xlu0 %3610, %v535
        %v3612 = vpop.permute.xlu0 %3611
        %3613 = vset.pattern.permute.xlu0 7
        %3614 = vperm.xlu0 %3613, %v536
        %v3615 = vpop.permute.xlu0 %3614
        %3616 = vset.pattern.permute.xlu0 7
        %3617 = vperm.xlu0 %3616, %v537
        %v3618 = vpop.permute.xlu0 %3617
        %3619 = vset.pattern.permute.xlu0 7
        %3620 = vperm.xlu0 %3619, %v538
        %v3621 = vpop.permute.xlu0 %3620
        %3622 = vset.pattern.permute.xlu0 7
        %3623 = vperm.xlu0 %3622, %v539
        %v3624 = vpop.permute.xlu0 %3623
        %3625 = vset.pattern.permute.xlu0 7
        %3626 = vperm.xlu0 %3625, %v540
        %v3627 = vpop.permute.xlu0 %3626
        %3628 = vset.pattern.permute.xlu0 7
        %3629 = vperm.xlu0 %3628, %v541
        %v3630 = vpop.permute.xlu0 %3629
        %3631 = vset.pattern.permute.xlu0 7
        %3632 = vperm.xlu0 %3631, %v542
        %v3633 = vpop.permute.xlu0 %3632
        %vm3634 = vcmp.eq.s32.totalorder %v460, %v3588
        %vm3635 = vcmp.eq.s32.totalorder %v543, %v3588
        %vm3636 = vcmp.eq.s32.totalorder %v544, %v3588
        %vm3637 = vcmp.eq.s32.totalorder %v545, %v3588
        %vm3638 = vcmp.eq.s32.totalorder %v460, %v3591
        %vm3639 = vcmp.eq.s32.totalorder %v543, %v3591
        %vm3640 = vcmp.eq.s32.totalorder %v544, %v3591
        %vm3641 = vcmp.eq.s32.totalorder %v545, %v3591
        %vm3642 = vcmp.eq.s32.totalorder %v460, %v3594
        %vm3643 = vcmp.eq.s32.totalorder %v543, %v3594
        %vm3644 = vcmp.eq.s32.totalorder %v544, %v3594
        %vm3645 = vcmp.eq.s32.totalorder %v545, %v3594
        %vm3646 = vcmp.eq.s32.totalorder %v460, %v3597
        %vm3647 = vcmp.eq.s32.totalorder %v543, %v3597
        %vm3648 = vcmp.eq.s32.totalorder %v544, %v3597
        %vm3649 = vcmp.eq.s32.totalorder %v545, %v3597
        %vm3650 = vcmp.eq.s32.totalorder %v460, %v3600
        %vm3651 = vcmp.eq.s32.totalorder %v543, %v3600
        %vm3652 = vcmp.eq.s32.totalorder %v544, %v3600
        %vm3653 = vcmp.eq.s32.totalorder %v545, %v3600
        %vm3654 = vcmp.eq.s32.totalorder %v460, %v3603
        %vm3655 = vcmp.eq.s32.totalorder %v543, %v3603
        %vm3656 = vcmp.eq.s32.totalorder %v544, %v3603
        %vm3657 = vcmp.eq.s32.totalorder %v545, %v3603
        %vm3658 = vcmp.eq.s32.totalorder %v460, %v3606
        %vm3659 = vcmp.eq.s32.totalorder %v543, %v3606
        %vm3660 = vcmp.eq.s32.totalorder %v544, %v3606
        %vm3661 = vcmp.eq.s32.totalorder %v545, %v3606
        %vm3662 = vcmp.eq.s32.totalorder %v460, %v3609
        %vm3663 = vcmp.eq.s32.totalorder %v543, %v3609
        %vm3664 = vcmp.eq.s32.totalorder %v544, %v3609
        %vm3665 = vcmp.eq.s32.totalorder %v545, %v3609
        %vm3666 = vcmp.eq.s32.totalorder %v460, %v3612
        %vm3667 = vcmp.eq.s32.totalorder %v543, %v3612
        %vm3668 = vcmp.eq.s32.totalorder %v544, %v3612
        %vm3669 = vcmp.eq.s32.totalorder %v545, %v3612
        %vm3670 = vcmp.eq.s32.totalorder %v460, %v3615
        %vm3671 = vcmp.eq.s32.totalorder %v543, %v3615
        %vm3672 = vcmp.eq.s32.totalorder %v544, %v3615
        %vm3673 = vcmp.eq.s32.totalorder %v545, %v3615
        %vm3674 = vcmp.eq.s32.totalorder %v460, %v3618
        %vm3675 = vcmp.eq.s32.totalorder %v543, %v3618
        %vm3676 = vcmp.eq.s32.totalorder %v544, %v3618
        %vm3677 = vcmp.eq.s32.totalorder %v545, %v3618
        %vm3678 = vcmp.eq.s32.totalorder %v460, %v3621
        %vm3679 = vcmp.eq.s32.totalorder %v543, %v3621
        %vm3680 = vcmp.eq.s32.totalorder %v544, %v3621
        %vm3681 = vcmp.eq.s32.totalorder %v545, %v3621
        %vm3682 = vcmp.eq.s32.totalorder %v460, %v3624
        %vm3683 = vcmp.eq.s32.totalorder %v543, %v3624
        %vm3684 = vcmp.eq.s32.totalorder %v544, %v3624
        %vm3685 = vcmp.eq.s32.totalorder %v545, %v3624
        %vm3686 = vcmp.eq.s32.totalorder %v460, %v3627
        %vm3687 = vcmp.eq.s32.totalorder %v543, %v3627
        %vm3688 = vcmp.eq.s32.totalorder %v544, %v3627
        %vm3689 = vcmp.eq.s32.totalorder %v545, %v3627
        %vm3690 = vcmp.eq.s32.totalorder %v460, %v3630
        %vm3691 = vcmp.eq.s32.totalorder %v543, %v3630
        %vm3692 = vcmp.eq.s32.totalorder %v544, %v3630
        %vm3693 = vcmp.eq.s32.totalorder %v545, %v3630
        %vm3694 = vcmp.eq.s32.totalorder %v460, %v3633
        %vm3695 = vcmp.eq.s32.totalorder %v543, %v3633
        %vm3696 = vcmp.eq.s32.totalorder %v544, %v3633
        %vm3697 = vcmp.eq.s32.totalorder %v545, %v3633
        %3698 = vset.pattern.permute.xlu0 7
        %3699 = vperm.xlu0 %3698, %v658
        %v3700 = vpop.permute.xlu0 %3699
        %3701 = vset.pattern.permute.xlu0 7
        %3702 = vperm.xlu0 %3701, %v659
        %v3703 = vpop.permute.xlu0 %3702
        %3704 = vset.pattern.permute.xlu0 7
        %3705 = vperm.xlu0 %3704, %v660
        %v3706 = vpop.permute.xlu0 %3705
        %3707 = vset.pattern.permute.xlu0 7
        %3708 = vperm.xlu0 %3707, %v661
        %v3709 = vpop.permute.xlu0 %3708
        %3710 = vset.pattern.permute.xlu0 7
        %3711 = vperm.xlu0 %3710, %v662
        %v3712 = vpop.permute.xlu0 %3711
        %3713 = vset.pattern.permute.xlu0 7
        %3714 = vperm.xlu0 %3713, %v663
        %v3715 = vpop.permute.xlu0 %3714
        %3716 = vset.pattern.permute.xlu0 7
        %3717 = vperm.xlu0 %3716, %v664
        %v3718 = vpop.permute.xlu0 %3717
        %3719 = vset.pattern.permute.xlu0 7
        %3720 = vperm.xlu0 %3719, %v665
        %v3721 = vpop.permute.xlu0 %3720
        %3722 = vset.pattern.permute.xlu0 7
        %3723 = vperm.xlu0 %3722, %v666
        %v3724 = vpop.permute.xlu0 %3723
        %3725 = vset.pattern.permute.xlu0 7
        %3726 = vperm.xlu0 %3725, %v667
        %v3727 = vpop.permute.xlu0 %3726
        %3728 = vset.pattern.permute.xlu0 7
        %3729 = vperm.xlu0 %3728, %v668
        %v3730 = vpop.permute.xlu0 %3729
        %3731 = vset.pattern.permute.xlu0 7
        %3732 = vperm.xlu0 %3731, %v669
        %v3733 = vpop.permute.xlu0 %3732
        %3734 = vset.pattern.permute.xlu0 7
        %3735 = vperm.xlu0 %3734, %v670
        %v3736 = vpop.permute.xlu0 %3735
        %3737 = vset.pattern.permute.xlu0 7
        %3738 = vperm.xlu0 %3737, %v671
        %v3739 = vpop.permute.xlu0 %3738
        %3740 = vset.pattern.permute.xlu0 7
        %3741 = vperm.xlu0 %3740, %v672
        %v3742 = vpop.permute.xlu0 %3741
        %3743 = vset.pattern.permute.xlu0 7
        %3744 = vperm.xlu0 %3743, %v673
        %v3745 = vpop.permute.xlu0 %3744
        %vm3746 = vcmp.eq.s32.totalorder %v3700, 1
        %vm3747 = vcmp.eq.s32.totalorder %v3703, 1
        %vm3748 = vcmp.eq.s32.totalorder %v3706, 1
        %vm3749 = vcmp.eq.s32.totalorder %v3709, 1
        %vm3750 = vcmp.eq.s32.totalorder %v3712, 1
        %vm3751 = vcmp.eq.s32.totalorder %v3715, 1
        %vm3752 = vcmp.eq.s32.totalorder %v3718, 1
        %vm3753 = vcmp.eq.s32.totalorder %v3721, 1
        %vm3754 = vcmp.eq.s32.totalorder %v3724, 1
        %vm3755 = vcmp.eq.s32.totalorder %v3727, 1
        %vm3756 = vcmp.eq.s32.totalorder %v3730, 1
        %vm3757 = vcmp.eq.s32.totalorder %v3733, 1
        %vm3758 = vcmp.eq.s32.totalorder %v3736, 1
        %vm3759 = vcmp.eq.s32.totalorder %v3739, 1
        %vm3760 = vcmp.eq.s32.totalorder %v3742, 1
        %vm3761 = vcmp.eq.s32.totalorder %v3745, 1
        %vm3762 = vmand %vm3634, %vm3746
        %vm3763 = vmand %vm3635, %vm3746
        %vm3764 = vmand %vm3636, %vm3746
        %vm3765 = vmand %vm3637, %vm3746
        %vm3766 = vmand %vm3638, %vm3747
        %vm3767 = vmand %vm3639, %vm3747
        %vm3768 = vmand %vm3640, %vm3747
        %vm3769 = vmand %vm3641, %vm3747
        %vm3770 = vmand %vm3642, %vm3748
        %vm3771 = vmand %vm3643, %vm3748
        %vm3772 = vmand %vm3644, %vm3748
        %vm3773 = vmand %vm3645, %vm3748
        %vm3774 = vmand %vm3646, %vm3749
        %vm3775 = vmand %vm3647, %vm3749
        %vm3776 = vmand %vm3648, %vm3749
        %vm3777 = vmand %vm3649, %vm3749
        %vm3778 = vmand %vm3650, %vm3750
        %vm3779 = vmand %vm3651, %vm3750
        %vm3780 = vmand %vm3652, %vm3750
        %vm3781 = vmand %vm3653, %vm3750
        %vm3782 = vmand %vm3654, %vm3751
        %vm3783 = vmand %vm3655, %vm3751
        %vm3784 = vmand %vm3656, %vm3751
        %vm3785 = vmand %vm3657, %vm3751
        %vm3786 = vmand %vm3658, %vm3752
        %vm3787 = vmand %vm3659, %vm3752
        %vm3788 = vmand %vm3660, %vm3752
        %vm3789 = vmand %vm3661, %vm3752
        %vm3790 = vmand %vm3662, %vm3753
        %vm3791 = vmand %vm3663, %vm3753
        %vm3792 = vmand %vm3664, %vm3753
        %vm3793 = vmand %vm3665, %vm3753
        %vm3794 = vmand %vm3666, %vm3754
        %vm3795 = vmand %vm3667, %vm3754
        %vm3796 = vmand %vm3668, %vm3754
        %vm3797 = vmand %vm3669, %vm3754
        %vm3798 = vmand %vm3670, %vm3755
        %vm3799 = vmand %vm3671, %vm3755
        %vm3800 = vmand %vm3672, %vm3755
        %vm3801 = vmand %vm3673, %vm3755
        %vm3802 = vmand %vm3674, %vm3756
        %vm3803 = vmand %vm3675, %vm3756
        %vm3804 = vmand %vm3676, %vm3756
        %vm3805 = vmand %vm3677, %vm3756
        %vm3806 = vmand %vm3678, %vm3757
        %vm3807 = vmand %vm3679, %vm3757
        %vm3808 = vmand %vm3680, %vm3757
        %vm3809 = vmand %vm3681, %vm3757
        %vm3810 = vmand %vm3682, %vm3758
        %vm3811 = vmand %vm3683, %vm3758
        %vm3812 = vmand %vm3684, %vm3758
        %vm3813 = vmand %vm3685, %vm3758
        %vm3814 = vmand %vm3686, %vm3759
        %vm3815 = vmand %vm3687, %vm3759
        %vm3816 = vmand %vm3688, %vm3759
        %vm3817 = vmand %vm3689, %vm3759
        %vm3818 = vmand %vm3690, %vm3760
        %vm3819 = vmand %vm3691, %vm3760
        %vm3820 = vmand %vm3692, %vm3760
        %vm3821 = vmand %vm3693, %vm3760
        %vm3822 = vmand %vm3694, %vm3761
        %vm3823 = vmand %vm3695, %vm3761
        %vm3824 = vmand %vm3696, %vm3761
        %vm3825 = vmand %vm3697, %vm3761
        %v3826 = vsel %vm3762, 1, 0
        %v3827 = vsel %vm3763, 1, 0
        %v3828 = vsel %vm3764, 1, 0
        %v3829 = vsel %vm3765, 1, 0
        %v3830 = vsel %vm3766, 1, 0
        %v3831 = vsel %vm3767, 1, 0
        %v3832 = vsel %vm3768, 1, 0
        %v3833 = vsel %vm3769, 1, 0
        %v3834 = vsel %vm3770, 1, 0
        %v3835 = vsel %vm3771, 1, 0
        %v3836 = vsel %vm3772, 1, 0
        %v3837 = vsel %vm3773, 1, 0
        %v3838 = vsel %vm3774, 1, 0
        %v3839 = vsel %vm3775, 1, 0
        %v3840 = vsel %vm3776, 1, 0
        %v3841 = vsel %vm3777, 1, 0
        %v3842 = vsel %vm3778, 1, 0
        %v3843 = vsel %vm3779, 1, 0
        %v3844 = vsel %vm3780, 1, 0
        %v3845 = vsel %vm3781, 1, 0
        %v3846 = vsel %vm3782, 1, 0
        %v3847 = vsel %vm3783, 1, 0
        %v3848 = vsel %vm3784, 1, 0
        %v3849 = vsel %vm3785, 1, 0
        %v3850 = vsel %vm3786, 1, 0
        %v3851 = vsel %vm3787, 1, 0
        %v3852 = vsel %vm3788, 1, 0
        %v3853 = vsel %vm3789, 1, 0
        %v3854 = vsel %vm3790, 1, 0
        %v3855 = vsel %vm3791, 1, 0
        %v3856 = vsel %vm3792, 1, 0
        %v3857 = vsel %vm3793, 1, 0
        %v3858 = vsel %vm3794, 1, 0
        %v3859 = vsel %vm3795, 1, 0
        %v3860 = vsel %vm3796, 1, 0
        %v3861 = vsel %vm3797, 1, 0
        %v3862 = vsel %vm3798, 1, 0
        %v3863 = vsel %vm3799, 1, 0
        %v3864 = vsel %vm3800, 1, 0
        %v3865 = vsel %vm3801, 1, 0
        %v3866 = vsel %vm3802, 1, 0
        %v3867 = vsel %vm3803, 1, 0
        %v3868 = vsel %vm3804, 1, 0
        %v3869 = vsel %vm3805, 1, 0
        %v3870 = vsel %vm3806, 1, 0
        %v3871 = vsel %vm3807, 1, 0
        %v3872 = vsel %vm3808, 1, 0
        %v3873 = vsel %vm3809, 1, 0
        %v3874 = vsel %vm3810, 1, 0
        %v3875 = vsel %vm3811, 1, 0
        %v3876 = vsel %vm3812, 1, 0
        %v3877 = vsel %vm3813, 1, 0
        %v3878 = vsel %vm3814, 1, 0
        %v3879 = vsel %vm3815, 1, 0
        %v3880 = vsel %vm3816, 1, 0
        %v3881 = vsel %vm3817, 1, 0
        %v3882 = vsel %vm3818, 1, 0
        %v3883 = vsel %vm3819, 1, 0
        %v3884 = vsel %vm3820, 1, 0
        %v3885 = vsel %vm3821, 1, 0
        %v3886 = vsel %vm3822, 1, 0
        %v3887 = vsel %vm3823, 1, 0
        %v3888 = vsel %vm3824, 1, 0
        %v3889 = vsel %vm3825, 1, 0
        %v3890 = vcvt.s32.f32 %v3826
        %v3891 = vcvt.s32.f32 %v3827
        %v3892 = vcvt.s32.f32 %v3828
        %v3893 = vcvt.s32.f32 %v3829
        %v3894 = vcvt.s32.f32 %v3830
        %v3895 = vcvt.s32.f32 %v3831
        %v3896 = vcvt.s32.f32 %v3832
        %v3897 = vcvt.s32.f32 %v3833
        %v3898 = vcvt.s32.f32 %v3834
        %v3899 = vcvt.s32.f32 %v3835
        %v3900 = vcvt.s32.f32 %v3836
        %v3901 = vcvt.s32.f32 %v3837
        %v3902 = vcvt.s32.f32 %v3838
        %v3903 = vcvt.s32.f32 %v3839
        %v3904 = vcvt.s32.f32 %v3840
        %v3905 = vcvt.s32.f32 %v3841
        %v3906 = vcvt.s32.f32 %v3842
        %v3907 = vcvt.s32.f32 %v3843
        %v3908 = vcvt.s32.f32 %v3844
        %v3909 = vcvt.s32.f32 %v3845
        %v3910 = vcvt.s32.f32 %v3846
        %v3911 = vcvt.s32.f32 %v3847
        %v3912 = vcvt.s32.f32 %v3848
        %v3913 = vcvt.s32.f32 %v3849
        %v3914 = vcvt.s32.f32 %v3850
        %v3915 = vcvt.s32.f32 %v3851
        %v3916 = vcvt.s32.f32 %v3852
        %v3917 = vcvt.s32.f32 %v3853
        %v3918 = vcvt.s32.f32 %v3854
        %v3919 = vcvt.s32.f32 %v3855
        %v3920 = vcvt.s32.f32 %v3856
        %v3921 = vcvt.s32.f32 %v3857
        %v3922 = vcvt.s32.f32 %v3858
        %v3923 = vcvt.s32.f32 %v3859
        %v3924 = vcvt.s32.f32 %v3860
        %v3925 = vcvt.s32.f32 %v3861
        %v3926 = vcvt.s32.f32 %v3862
        %v3927 = vcvt.s32.f32 %v3863
        %v3928 = vcvt.s32.f32 %v3864
        %v3929 = vcvt.s32.f32 %v3865
        %v3930 = vcvt.s32.f32 %v3866
        %v3931 = vcvt.s32.f32 %v3867
        %v3932 = vcvt.s32.f32 %v3868
        %v3933 = vcvt.s32.f32 %v3869
        %v3934 = vcvt.s32.f32 %v3870
        %v3935 = vcvt.s32.f32 %v3871
        %v3936 = vcvt.s32.f32 %v3872
        %v3937 = vcvt.s32.f32 %v3873
        %v3938 = vcvt.s32.f32 %v3874
        %v3939 = vcvt.s32.f32 %v3875
        %v3940 = vcvt.s32.f32 %v3876
        %v3941 = vcvt.s32.f32 %v3877
        %v3942 = vcvt.s32.f32 %v3878
        %v3943 = vcvt.s32.f32 %v3879
        %v3944 = vcvt.s32.f32 %v3880
        %v3945 = vcvt.s32.f32 %v3881
        %v3946 = vcvt.s32.f32 %v3882
        %v3947 = vcvt.s32.f32 %v3883
        %v3948 = vcvt.s32.f32 %v3884
        %v3949 = vcvt.s32.f32 %v3885
        %v3950 = vcvt.s32.f32 %v3886
        %v3951 = vcvt.s32.f32 %v3887
        %v3952 = vcvt.s32.f32 %v3888
        %v3953 = vcvt.s32.f32 %v3889
        %v3954 = vadd.f32 %v3522, %v3890
        %v3955 = vadd.f32 %v3523, %v3891
        %v3956 = vadd.f32 %v3524, %v3892
        %v3957 = vadd.f32 %v3525, %v3893
        %v3958 = vadd.f32 %v3526, %v3894
        %v3959 = vadd.f32 %v3527, %v3895
        %v3960 = vadd.f32 %v3528, %v3896
        %v3961 = vadd.f32 %v3529, %v3897
        %v3962 = vadd.f32 %v3530, %v3898
        %v3963 = vadd.f32 %v3531, %v3899
        %v3964 = vadd.f32 %v3532, %v3900
        %v3965 = vadd.f32 %v3533, %v3901
        %v3966 = vadd.f32 %v3534, %v3902
        %v3967 = vadd.f32 %v3535, %v3903
        %v3968 = vadd.f32 %v3536, %v3904
        %v3969 = vadd.f32 %v3537, %v3905
        %v3970 = vadd.f32 %v3538, %v3906
        %v3971 = vadd.f32 %v3539, %v3907
        %v3972 = vadd.f32 %v3540, %v3908
        %v3973 = vadd.f32 %v3541, %v3909
        %v3974 = vadd.f32 %v3542, %v3910
        %v3975 = vadd.f32 %v3543, %v3911
        %v3976 = vadd.f32 %v3544, %v3912
        %v3977 = vadd.f32 %v3545, %v3913
        %v3978 = vadd.f32 %v3546, %v3914
        %v3979 = vadd.f32 %v3547, %v3915
        %v3980 = vadd.f32 %v3548, %v3916
        %v3981 = vadd.f32 %v3549, %v3917
        %v3982 = vadd.f32 %v3550, %v3918
        %v3983 = vadd.f32 %v3551, %v3919
        %v3984 = vadd.f32 %v3552, %v3920
        %v3985 = vadd.f32 %v3553, %v3921
        %v3986 = vadd.f32 %v3554, %v3922
        %v3987 = vadd.f32 %v3555, %v3923
        %v3988 = vadd.f32 %v3556, %v3924
        %v3989 = vadd.f32 %v3557, %v3925
        %v3990 = vadd.f32 %v3558, %v3926
        %v3991 = vadd.f32 %v3559, %v3927
        %v3992 = vadd.f32 %v3560, %v3928
        %v3993 = vadd.f32 %v3561, %v3929
        %v3994 = vadd.f32 %v3562, %v3930
        %v3995 = vadd.f32 %v3563, %v3931
        %v3996 = vadd.f32 %v3564, %v3932
        %v3997 = vadd.f32 %v3565, %v3933
        %v3998 = vadd.f32 %v3566, %v3934
        %v3999 = vadd.f32 %v3567, %v3935
        %v4000 = vadd.f32 %v3568, %v3936
        %v4001 = vadd.f32 %v3569, %v3937
        %v4002 = vadd.f32 %v3570, %v3938
        %v4003 = vadd.f32 %v3571, %v3939
        %v4004 = vadd.f32 %v3572, %v3940
        %v4005 = vadd.f32 %v3573, %v3941
        %v4006 = vadd.f32 %v3574, %v3942
        %v4007 = vadd.f32 %v3575, %v3943
        %v4008 = vadd.f32 %v3576, %v3944
        %v4009 = vadd.f32 %v3577, %v3945
        %v4010 = vadd.f32 %v3578, %v3946
        %v4011 = vadd.f32 %v3579, %v3947
        %v4012 = vadd.f32 %v3580, %v3948
        %v4013 = vadd.f32 %v3581, %v3949
        %v4014 = vadd.f32 %v3582, %v3950
        %v4015 = vadd.f32 %v3583, %v3951
        %v4016 = vadd.f32 %v3584, %v3952
        %v4017 = vadd.f32 %v3585, %v3953
        %v4018 = vld [vmem:[%s247] sm:$0xff]
        %v4019 = vld [vmem:[%s247 + $0x8] sm:$0xff]
        %v4020 = vld [vmem:[%s247 + $0x10] sm:$0xff]
        %v4021 = vld [vmem:[%s247 + $0x18] sm:$0xff]
        %v4022 = vld [vmem:[%s247 + $0x20] sm:$0xff]
        %v4023 = vld [vmem:[%s247 + $0x28] sm:$0xff]
        %v4024 = vld [vmem:[%s247 + $0x30] sm:$0xff]
        %v4025 = vld [vmem:[%s247 + $0x38] sm:$0xff]
        %v4026 = vld [vmem:[%s247 + $0x40] sm:$0xff]
        %v4027 = vld [vmem:[%s247 + $0x48] sm:$0xff]
        %v4028 = vld [vmem:[%s247 + $0x50] sm:$0xff]
        %v4029 = vld [vmem:[%s247 + $0x58] sm:$0xff]
        %v4030 = vld [vmem:[%s247 + $0x60] sm:$0xff]
        %v4031 = vld [vmem:[%s247 + $0x68] sm:$0xff]
        %v4032 = vld [vmem:[%s247 + $0x70] sm:$0xff]
        %v4033 = vld [vmem:[%s247 + $0x78] sm:$0xff]
        %v4034 = vpack.c.bf16 %v3958, %v3954
        %v4035 = vpack.c.bf16 %v3959, %v3955
        %v4036 = vpack.c.bf16 %v3960, %v3956
        %v4037 = vpack.c.bf16 %v3961, %v3957
        %v4038 = vpack.c.bf16 %v3966, %v3962
        %v4039 = vpack.c.bf16 %v3967, %v3963
        %v4040 = vpack.c.bf16 %v3968, %v3964
        %v4041 = vpack.c.bf16 %v3969, %v3965
        %v4042 = vpack.c.bf16 %v3974, %v3970
        %v4043 = vpack.c.bf16 %v3975, %v3971
        %v4044 = vpack.c.bf16 %v3976, %v3972
        %v4045 = vpack.c.bf16 %v3977, %v3973
        %v4046 = vpack.c.bf16 %v3982, %v3978
        %v4047 = vpack.c.bf16 %v3983, %v3979
        %v4048 = vpack.c.bf16 %v3984, %v3980
        %v4049 = vpack.c.bf16 %v3985, %v3981
        %v4050 = vpack.c.bf16 %v3990, %v3986
        %v4051 = vpack.c.bf16 %v3991, %v3987
        %v4052 = vpack.c.bf16 %v3992, %v3988
        %v4053 = vpack.c.bf16 %v3993, %v3989
        %v4054 = vpack.c.bf16 %v3998, %v3994
        %v4055 = vpack.c.bf16 %v3999, %v3995
        %v4056 = vpack.c.bf16 %v4000, %v3996
        %v4057 = vpack.c.bf16 %v4001, %v3997
        %v4058 = vpack.c.bf16 %v4006, %v4002
        %v4059 = vpack.c.bf16 %v4007, %v4003
        %v4060 = vpack.c.bf16 %v4008, %v4004
        %v4061 = vpack.c.bf16 %v4009, %v4005
        %v4062 = vpack.c.bf16 %v4014, %v4010
        %v4063 = vpack.c.bf16 %v4015, %v4011
        %v4064 = vpack.c.bf16 %v4016, %v4012
        %v4065 = vpack.c.bf16 %v4017, %v4013
        %v4130 = vunpack.c.l.b16 %v331
        %v4131 = vunpack.c.l.b16 %v332
        %v4132 = vunpack.c.l.b16 %v333
        %v4133 = vunpack.c.l.b16 %v334
        %v4134 = vunpack.c.l.b16 %v335
        %v4135 = vunpack.c.l.b16 %v336
        %v4136 = vunpack.c.l.b16 %v337
        %v4137 = vunpack.c.l.b16 %v338
        %v4138 = vunpack.c.l.b16 %v339
        %v4139 = vunpack.c.l.b16 %v340
        %v4140 = vunpack.c.l.b16 %v341
        %v4141 = vunpack.c.l.b16 %v342
        %v4142 = vunpack.c.l.b16 %v343
        %v4143 = vunpack.c.l.b16 %v344
        %v4144 = vunpack.c.l.b16 %v345
        %v4145 = vunpack.c.l.b16 %v346
        %v4146 = vunpack.c.l.b16 %v347
        %v4147 = vunpack.c.l.b16 %v348
        %v4148 = vunpack.c.l.b16 %v349
        %v4149 = vunpack.c.l.b16 %v350
        %v4150 = vunpack.c.l.b16 %v351
        %v4151 = vunpack.c.l.b16 %v352
        %v4152 = vunpack.c.l.b16 %v353
        %v4153 = vunpack.c.l.b16 %v354
        %v4154 = vunpack.c.l.b16 %v355
        %v4155 = vunpack.c.l.b16 %v356
        %v4156 = vunpack.c.l.b16 %v357
        %v4157 = vunpack.c.l.b16 %v358
        %v4158 = vunpack.c.l.b16 %v359
        %v4159 = vunpack.c.l.b16 %v360
        %v4160 = vunpack.c.l.b16 %v361
        %v4161 = vunpack.c.l.b16 %v362
        %v4162 = vunpack.c.l.b16 %v363
        %v4163 = vunpack.c.l.b16 %v364
        %v4164 = vunpack.c.l.b16 %v365
        %v4165 = vunpack.c.l.b16 %v366
        %v4166 = vunpack.c.l.b16 %v367
        %v4167 = vunpack.c.l.b16 %v368
        %v4168 = vunpack.c.l.b16 %v369
        %v4169 = vunpack.c.l.b16 %v370
        %v4170 = vunpack.c.l.b16 %v371
        %v4171 = vunpack.c.l.b16 %v372
        %v4172 = vunpack.c.l.b16 %v373
        %v4173 = vunpack.c.l.b16 %v374
        %v4174 = vunpack.c.l.b16 %v375
        %v4175 = vunpack.c.l.b16 %v376
        %v4176 = vunpack.c.l.b16 %v377
        %v4177 = vunpack.c.l.b16 %v378
        %v4178 = vunpack.c.l.b16 %v379
        %v4179 = vunpack.c.l.b16 %v380
        %v4180 = vunpack.c.l.b16 %v381
        %v4181 = vunpack.c.l.b16 %v382
        %v4182 = vunpack.c.l.b16 %v383
        %v4183 = vunpack.c.l.b16 %v384
        %v4184 = vunpack.c.l.b16 %v385
        %v4185 = vunpack.c.l.b16 %v386
        %v4186 = vunpack.c.l.b16 %v387
        %v4187 = vunpack.c.l.b16 %v388
        %v4188 = vunpack.c.l.b16 %v389
        %v4189 = vunpack.c.l.b16 %v390
        %v4190 = vunpack.c.l.b16 %v391
        %v4191 = vunpack.c.l.b16 %v392
        %v4192 = vunpack.c.l.b16 %v393
        %v4193 = vunpack.c.l.b16 %v394
        %v4194 = vpack.c.b16 %v4131, %v4130
        %v4195 = vpack.c.b16 %v4133, %v4132
        %v4196 = vpack.c.b16 %v4135, %v4134
        %v4197 = vpack.c.b16 %v4137, %v4136
        %v4198 = vpack.c.b16 %v4139, %v4138
        %v4199 = vpack.c.b16 %v4141, %v4140
        %v4200 = vpack.c.b16 %v4143, %v4142
        %v4201 = vpack.c.b16 %v4145, %v4144
        %v4202 = vpack.c.b16 %v4147, %v4146
        %v4203 = vpack.c.b16 %v4149, %v4148
        %v4204 = vpack.c.b16 %v4151, %v4150
        %v4205 = vpack.c.b16 %v4153, %v4152
        %v4206 = vpack.c.b16 %v4155, %v4154
        %v4207 = vpack.c.b16 %v4157, %v4156
        %v4208 = vpack.c.b16 %v4159, %v4158
        %v4209 = vpack.c.b16 %v4161, %v4160
        %v4210 = vpack.c.b16 %v4163, %v4162
        %v4211 = vpack.c.b16 %v4165, %v4164
        %v4212 = vpack.c.b16 %v4167, %v4166
        %v4213 = vpack.c.b16 %v4169, %v4168
        %v4214 = vpack.c.b16 %v4171, %v4170
        %v4215 = vpack.c.b16 %v4173, %v4172
        %v4216 = vpack.c.b16 %v4175, %v4174
        %v4217 = vpack.c.b16 %v4177, %v4176
        %v4218 = vpack.c.b16 %v4179, %v4178
        %v4219 = vpack.c.b16 %v4181, %v4180
        %v4220 = vpack.c.b16 %v4183, %v4182
        %v4221 = vpack.c.b16 %v4185, %v4184
        %v4222 = vpack.c.b16 %v4187, %v4186
        %v4223 = vpack.c.b16 %v4189, %v4188
        %v4224 = vpack.c.b16 %v4191, %v4190
        %v4225 = vpack.c.b16 %v4193, %v4192
        %4258 = vmatpush.bf16.msra.mxu0 %v4201
        %4259 = vmatpush.bf16.msra.mxu0 %v4200
        %4260 = vmatpush.bf16.msra.mxu0 %v4199
        %4261 = vmatpush.bf16.msra.mxu0 %v4198
        %4262 = vmatpush.bf16.msra.mxu0 %v4197
        %4263 = vmatpush.bf16.msra.mxu0 %v4196
        %4264 = vmatpush.bf16.msra.mxu0 %v4195
        %4265 = vmatpush.bf16.msra.mxu0 %v4194
        %4266 = vmatmul.bf16.gmra.mxu0 %v4034
        %v4267 = vpop.f32.mrf.mxu0
        %v4268 = vadd.f32 0.0, %v4267
        %v4269 = vpop.f32.mrf.mxu0
        %v4270 = vadd.f32 0.0, %v4269
        %4271 = vmatmul.bf16.gmra.mxu0 %v4038
        %v4272 = vpop.f32.mrf.mxu0
        %v4273 = vadd.f32 0.0, %v4272
        %v4274 = vpop.f32.mrf.mxu0
        %v4275 = vadd.f32 0.0, %v4274
        %4276 = vmatmul.bf16.gmra.mxu0 %v4042
        %v4277 = vpop.f32.mrf.mxu0
        %v4278 = vadd.f32 0.0, %v4277
        %v4279 = vpop.f32.mrf.mxu0
        %v4280 = vadd.f32 0.0, %v4279
        %4281 = vmatmul.bf16.gmra.mxu0 %v4046
        %v4282 = vpop.f32.mrf.mxu0
        %v4283 = vadd.f32 0.0, %v4282
        %v4284 = vpop.f32.mrf.mxu0
        %v4285 = vadd.f32 0.0, %v4284
        %4286 = vmatmul.bf16.gmra.mxu0 %v4050
        %v4287 = vpop.f32.mrf.mxu0
        %v4288 = vadd.f32 0.0, %v4287
        %v4289 = vpop.f32.mrf.mxu0
        %v4290 = vadd.f32 0.0, %v4289
        %4291 = vmatmul.bf16.gmra.mxu0 %v4054
        %v4292 = vpop.f32.mrf.mxu0
        %v4293 = vadd.f32 0.0, %v4292
        %v4294 = vpop.f32.mrf.mxu0
        %v4295 = vadd.f32 0.0, %v4294
        %4296 = vmatmul.bf16.gmra.mxu0 %v4058
        %v4297 = vpop.f32.mrf.mxu0
        %v4298 = vadd.f32 0.0, %v4297
        %v4299 = vpop.f32.mrf.mxu0
        %v4300 = vadd.f32 0.0, %v4299
        %4301 = vmatmul.bf16.gmra.mxu0 %v4062
        %v4302 = vpop.f32.mrf.mxu0
        %v4303 = vadd.f32 0.0, %v4302
        %v4304 = vpop.f32.mrf.mxu0
        %v4305 = vadd.f32 0.0, %v4304
        %4306 = vdwg.mxu0
        %4307 = vmatpush.bf16.msra.mxu0 %v4209
        %4308 = vmatpush.bf16.msra.mxu0 %v4208
        %4309 = vmatpush.bf16.msra.mxu0 %v4207
        %4310 = vmatpush.bf16.msra.mxu0 %v4206
        %4311 = vmatpush.bf16.msra.mxu0 %v4205
        %4312 = vmatpush.bf16.msra.mxu0 %v4204
        %4313 = vmatpush.bf16.msra.mxu0 %v4203
        %4314 = vmatpush.bf16.msra.mxu0 %v4202
        %4315 = vmatmul.bf16.gmra.mxu0 %v4035
        %v4316 = vpop.f32.mrf.mxu0
        %v4317 = vadd.f32 %v4268, %v4316
        %v4318 = vpop.f32.mrf.mxu0
        %v4319 = vadd.f32 %v4270, %v4318
        %4320 = vmatmul.bf16.gmra.mxu0 %v4039
        %v4321 = vpop.f32.mrf.mxu0
        %v4322 = vadd.f32 %v4273, %v4321
        %v4323 = vpop.f32.mrf.mxu0
        %v4324 = vadd.f32 %v4275, %v4323
        %4325 = vmatmul.bf16.gmra.mxu0 %v4043
        %v4326 = vpop.f32.mrf.mxu0
        %v4327 = vadd.f32 %v4278, %v4326
        %v4328 = vpop.f32.mrf.mxu0
        %v4329 = vadd.f32 %v4280, %v4328
        %4330 = vmatmul.bf16.gmra.mxu0 %v4047
        %v4331 = vpop.f32.mrf.mxu0
        %v4332 = vadd.f32 %v4283, %v4331
        %v4333 = vpop.f32.mrf.mxu0
        %v4334 = vadd.f32 %v4285, %v4333
        %4335 = vmatmul.bf16.gmra.mxu0 %v4051
        %v4336 = vpop.f32.mrf.mxu0
        %v4337 = vadd.f32 %v4288, %v4336
        %v4338 = vpop.f32.mrf.mxu0
        %v4339 = vadd.f32 %v4290, %v4338
        %4340 = vmatmul.bf16.gmra.mxu0 %v4055
        %v4341 = vpop.f32.mrf.mxu0
        %v4342 = vadd.f32 %v4293, %v4341
        %v4343 = vpop.f32.mrf.mxu0
        %v4344 = vadd.f32 %v4295, %v4343
        %4345 = vmatmul.bf16.gmra.mxu0 %v4059
        %v4346 = vpop.f32.mrf.mxu0
        %v4347 = vadd.f32 %v4298, %v4346
        %v4348 = vpop.f32.mrf.mxu0
        %v4349 = vadd.f32 %v4300, %v4348
        %4350 = vmatmul.bf16.gmra.mxu0 %v4063
        %v4351 = vpop.f32.mrf.mxu0
        %v4352 = vadd.f32 %v4303, %v4351
        %v4353 = vpop.f32.mrf.mxu0
        %v4354 = vadd.f32 %v4305, %v4353
        %4355 = vdwg.mxu0
        %4356 = vmatpush.bf16.msra.mxu0 %v4217
        %4357 = vmatpush.bf16.msra.mxu0 %v4216
        %4358 = vmatpush.bf16.msra.mxu0 %v4215
        %4359 = vmatpush.bf16.msra.mxu0 %v4214
        %4360 = vmatpush.bf16.msra.mxu0 %v4213
        %4361 = vmatpush.bf16.msra.mxu0 %v4212
        %4362 = vmatpush.bf16.msra.mxu0 %v4211
        %4363 = vmatpush.bf16.msra.mxu0 %v4210
        %4364 = vmatmul.bf16.gmra.mxu0 %v4036
        %v4365 = vpop.f32.mrf.mxu0
        %v4366 = vadd.f32 %v4317, %v4365
        %v4367 = vpop.f32.mrf.mxu0
        %v4368 = vadd.f32 %v4319, %v4367
        %4369 = vmatmul.bf16.gmra.mxu0 %v4040
        %v4370 = vpop.f32.mrf.mxu0
        %v4371 = vadd.f32 %v4322, %v4370
        %v4372 = vpop.f32.mrf.mxu0
        %v4373 = vadd.f32 %v4324, %v4372
        %4374 = vmatmul.bf16.gmra.mxu0 %v4044
        %v4375 = vpop.f32.mrf.mxu0
        %v4376 = vadd.f32 %v4327, %v4375
        %v4377 = vpop.f32.mrf.mxu0
        %v4378 = vadd.f32 %v4329, %v4377
        %4379 = vmatmul.bf16.gmra.mxu0 %v4048
        %v4380 = vpop.f32.mrf.mxu0
        %v4381 = vadd.f32 %v4332, %v4380
        %v4382 = vpop.f32.mrf.mxu0
        %v4383 = vadd.f32 %v4334, %v4382
        %4384 = vmatmul.bf16.gmra.mxu0 %v4052
        %v4385 = vpop.f32.mrf.mxu0
        %v4386 = vadd.f32 %v4337, %v4385
        %v4387 = vpop.f32.mrf.mxu0
        %v4388 = vadd.f32 %v4339, %v4387
        %4389 = vmatmul.bf16.gmra.mxu0 %v4056
        %v4390 = vpop.f32.mrf.mxu0
        %v4391 = vadd.f32 %v4342, %v4390
        %v4392 = vpop.f32.mrf.mxu0
        %v4393 = vadd.f32 %v4344, %v4392
        %4394 = vmatmul.bf16.gmra.mxu0 %v4060
        %v4395 = vpop.f32.mrf.mxu0
        %v4396 = vadd.f32 %v4347, %v4395
        %v4397 = vpop.f32.mrf.mxu0
        %v4398 = vadd.f32 %v4349, %v4397
        %4399 = vmatmul.bf16.gmra.mxu0 %v4064
        %v4400 = vpop.f32.mrf.mxu0
        %v4401 = vadd.f32 %v4352, %v4400
        %v4402 = vpop.f32.mrf.mxu0
        %v4403 = vadd.f32 %v4354, %v4402
        %4404 = vdwg.mxu0
        %4405 = vmatpush.bf16.msra.mxu0 %v4225
        %4406 = vmatpush.bf16.msra.mxu0 %v4224
        %4407 = vmatpush.bf16.msra.mxu0 %v4223
        %4408 = vmatpush.bf16.msra.mxu0 %v4222
        %4409 = vmatpush.bf16.msra.mxu0 %v4221
        %4410 = vmatpush.bf16.msra.mxu0 %v4220
        %4411 = vmatpush.bf16.msra.mxu0 %v4219
        %4412 = vmatpush.bf16.msra.mxu0 %v4218
        %4413 = vmatmul.bf16.gmra.mxu0 %v4037
        %v4414 = vpop.f32.mrf.mxu0
        %v4415 = vadd.f32 %v4366, %v4414
        %v4416 = vpop.f32.mrf.mxu0
        %v4417 = vadd.f32 %v4368, %v4416
        %4418 = vmatmul.bf16.gmra.mxu0 %v4041
        %v4419 = vpop.f32.mrf.mxu0
        %v4420 = vadd.f32 %v4371, %v4419
        %v4421 = vpop.f32.mrf.mxu0
        %v4422 = vadd.f32 %v4373, %v4421
        %4423 = vmatmul.bf16.gmra.mxu0 %v4045
        %v4424 = vpop.f32.mrf.mxu0
        %v4425 = vadd.f32 %v4376, %v4424
        %v4426 = vpop.f32.mrf.mxu0
        %v4427 = vadd.f32 %v4378, %v4426
        %4428 = vmatmul.bf16.gmra.mxu0 %v4049
        %v4429 = vpop.f32.mrf.mxu0
        %v4430 = vadd.f32 %v4381, %v4429
        %v4431 = vpop.f32.mrf.mxu0
        %v4432 = vadd.f32 %v4383, %v4431
        %4433 = vmatmul.bf16.gmra.mxu0 %v4053
        %v4434 = vpop.f32.mrf.mxu0
        %v4435 = vadd.f32 %v4386, %v4434
        %v4436 = vpop.f32.mrf.mxu0
        %v4437 = vadd.f32 %v4388, %v4436
        %4438 = vmatmul.bf16.gmra.mxu0 %v4057
        %v4439 = vpop.f32.mrf.mxu0
        %v4440 = vadd.f32 %v4391, %v4439
        %v4441 = vpop.f32.mrf.mxu0
        %v4442 = vadd.f32 %v4393, %v4441
        %4443 = vmatmul.bf16.gmra.mxu0 %v4061
        %v4444 = vpop.f32.mrf.mxu0
        %v4445 = vadd.f32 %v4396, %v4444
        %v4446 = vpop.f32.mrf.mxu0
        %v4447 = vadd.f32 %v4398, %v4446
        %4448 = vmatmul.bf16.gmra.mxu0 %v4065
        %v4449 = vpop.f32.mrf.mxu0
        %v4450 = vadd.f32 %v4401, %v4449
        %v4451 = vpop.f32.mrf.mxu0
        %v4452 = vadd.f32 %v4403, %v4451
        %4453 = vdwg.mxu0
        %v4454 = vadd.f32 %v4018, %v4415
        %v4455 = vadd.f32 %v4019, %v4417
        %v4456 = vadd.f32 %v4020, %v4420
        %v4457 = vadd.f32 %v4021, %v4422
        %v4458 = vadd.f32 %v4022, %v4425
        %v4459 = vadd.f32 %v4023, %v4427
        %v4460 = vadd.f32 %v4024, %v4430
        %v4461 = vadd.f32 %v4025, %v4432
        %v4462 = vadd.f32 %v4026, %v4435
        %v4463 = vadd.f32 %v4027, %v4437
        %v4464 = vadd.f32 %v4028, %v4440
        %v4465 = vadd.f32 %v4029, %v4442
        %v4466 = vadd.f32 %v4030, %v4445
        %v4467 = vadd.f32 %v4031, %v4447
        %v4468 = vadd.f32 %v4032, %v4450
        %v4469 = vadd.f32 %v4033, %v4452
        %4470 = vst [vmem:[%s247] sm:$0xff] %v4454
        %4471 = vst [vmem:[%s247 + $0x8] sm:$0xff] %v4455
        %4472 = vst [vmem:[%s247 + $0x10] sm:$0xff] %v4456
        %4473 = vst [vmem:[%s247 + $0x18] sm:$0xff] %v4457
        %4474 = vst [vmem:[%s247 + $0x20] sm:$0xff] %v4458
        %4475 = vst [vmem:[%s247 + $0x28] sm:$0xff] %v4459
        %4476 = vst [vmem:[%s247 + $0x30] sm:$0xff] %v4460
        %4477 = vst [vmem:[%s247 + $0x38] sm:$0xff] %v4461
        %4478 = vst [vmem:[%s247 + $0x40] sm:$0xff] %v4462
        %4479 = vst [vmem:[%s247 + $0x48] sm:$0xff] %v4463
        %4480 = vst [vmem:[%s247 + $0x50] sm:$0xff] %v4464
        %4481 = vst [vmem:[%s247 + $0x58] sm:$0xff] %v4465
        %4482 = vst [vmem:[%s247 + $0x60] sm:$0xff] %v4466
        %4483 = vst [vmem:[%s247 + $0x68] sm:$0xff] %v4467
        %4484 = vst [vmem:[%s247 + $0x70] sm:$0xff] %v4468
        %4485 = vst [vmem:[%s247 + $0x78] sm:$0xff] %v4469
        %s4486 = sand.u32 %s130, 1
        %s4487 = scalar_lea.sflag [#allocation3], %s4486
        %s4488 = sand.u32 %s130, 1
        %s4489 = smul.addr %s4488, 128
        %s4490 = scalar_lea.vmem [#allocation2], %s4489
        // Predicated region
        $region37: #{tpu_custom_call.1} parent=31 // pred_check
          %p4491 = pneg %p140
        $region38: #{tpu_custom_call.1} parent=31 // pred_check_branch
          %4493 = sbr.rel (%p4491) target = $region40
        $region39: #{tpu_custom_call.1} parent=31 // pred_region
          %s4494 = smul.u32 16, %s23
          %4496 = vsyncadd %s4487, 0
          %s4497 = smul.addr %s22, 32
          %s4498 = sadd.s32 %s4494, %s4497
          %s4499 = smul.addr %s4498, 8
          %s4500 = scalar_lea.hbm %s3, %s4499
          %s4501 = sshll.u32 %s4490, 4
          %s4502 = int_to_ptr.vmem [resolvable:$true] %s4501
          %s4503 = sshll.u32 %s4500, 4
          %s4504 = int_to_ptr.hbm [resolvable:$true] %s4503
          %4509 = dma.vmem_to_hbm [thread:$0]  %s4502, 2048, %s4504, %s4487, 128, 128, 8
        $region40: #{tpu_custom_call.1} parent=31 // pred_fallthru
          _
      $region32: #{tpu_custom_call.1} parent=5 // pred_fallthru
        _
      %p4510 = scmp.le.s32.totalorder 2, %s12
      // Predicated region
      $region41: #{tpu_custom_call.1} parent=5 // pred_check
        %p4511 = pneg %p4510
      $region42: #{tpu_custom_call.1} parent=5 // pred_check_branch
        %4513 = sbr.rel (%p4511) target = $region44
      $region43: #{tpu_custom_call.1} parent=5 // pred_region
        %s4514 = ssub.s32 %s12, 2
        // Predicated region
        $region45: #{tpu_custom_call.1} parent=43 // pred_check
          %p4515 = pneg %p146
        $region46: #{tpu_custom_call.1} parent=43 // pred_check_branch
          %4517 = sbr.rel (%p4515) target = $region48
        $region47: #{tpu_custom_call.1} parent=43 // pred_region
          %s4518 = sand.u32 %s131, 1
          %s4519 = scalar_lea.sflag [#allocation3], %s4518
          %s4520 = sand.u32 %s131, 1
          %s4521 = smul.addr %s4520, 128
          %s4522 = scalar_lea.vmem [#allocation2], %s4521
          %4524 = dma.done %s4519, 2048
        $region48: #{tpu_custom_call.1} parent=43 // pred_fallthru
          _
      $region44: #{tpu_custom_call.1} parent=5 // pred_fallthru
        _
    $region6: #{tpu_custom_call.1} parent=1 // loop_footer
      %s16 = sadd.s32 1, %s12
    $region7: #{tpu_custom_call.1} parent=1 // loop_footer_branch
      %11 = sbr.rel target = $region3
    $region8: #{tpu_custom_call.1} parent=1 // loop_exit
      _
    %4525 = vsyncpa [#allocation3], 1
    %s4526 = scalar_lea.sflag [#allocation3], 1
    %4527 = vsyncpa %s4526, 1

</llo_original>
